<compile_context>
chip_gen: v7x
topology: tpu7x:2x2x1
jax: 0.10.0
libtpu: 0.0.40
codegen_flags: <defaults>
</compile_context>

<pallas_src>
import functools

import jax
import jax.numpy as jnp
from jax.experimental import pallas as pl
from jax.experimental.pallas import tpu as pltpu

NEG_SLOPE = 0.2
BN_EPS = 1e-3      # nn.BatchNorm2d(..., eps=0.001) in the reference module
KSIZE = 4
STRIDE = 2


def _round_up(x, m):
    return ((x + m - 1) // m) * m


# ----------------------------------------------------------------------------
# Pallas kernel: K-tiled (patches @ weights) with f32 accumulator, fused
# per-channel affine (+ optional LeakyReLU) epilogue on the final K step.
# ----------------------------------------------------------------------------
def _fused_conv_kernel(p_ref, w_ref, s_ref, b_ref, o_ref, acc_ref, *, lrelu):
    k = pl.program_id(2)

    @pl.when(k == 0)
    def _():
        acc_ref[...] = jnp.zeros_like(acc_ref)

    acc_ref[...] += jnp.dot(p_ref[...], w_ref[...],
                            preferred_element_type=jnp.float32)

    @pl.when(k == pl.num_programs(2) - 1)
    def _():
        y = acc_ref[...] * s_ref[...] + b_ref[...]
        if lrelu:
            y = jnp.where(y >= 0.0, y, NEG_SLOPE * y)
        o_ref[...] = y.astype(o_ref.dtype)


def fused_conv_matmul(patches, w2d, scale, shift, lrelu):
    """patches: (M, K) f32, w2d: (K, C) f32, scale/shift: (C,) f32 -> (M, C) f32."""
    M, K = patches.shape
    _, C = w2d.shape

    # ---- tile plan ---------------------------------------------------------
    # M: pad to a multiple of 16 (bf16 sublane packing), tile at 256.
    TM_TARGET = 256
    Mp = _round_up(M, 16)
    if Mp <= TM_TARGET:
        tm = Mp
    else:
        Mp = _round_up(M, TM_TARGET)
        tm = TM_TARGET

    # K (reduction): lane-dense multiples of 128, tile at 512.
    TK_TARGET = 512
    Kp = _round_up(K, 128)
    if Kp <= TK_TARGET:
        tk = Kp
    else:
        Kp = _round_up(K, TK_TARGET)
        tk = TK_TARGET

    # N (output channels): 256-wide tiles feed the full-width MXU on v6e/v7x
    # for the channel-heavy layers; 128 otherwise.  Padding C keeps narrow
    # layers (conv1: 64) lane-dense so stores are unmasked.
    tn = 256 if C >= 256 else 128
    Cp = _round_up(C, tn)

    # ---- pad + cast (bf16 matmul operands, f32 epilogue params) ------------
    p_pad = jnp.pad(patches, ((0, Mp - M), (0, Kp - K))).astype(jnp.bfloat16)
    w_pad = jnp.pad(w2d, ((0, Kp - K), (0, Cp - C))).astype(jnp.bfloat16)
    s_pad = jnp.pad(scale.reshape(1, C).astype(jnp.float32),
                    ((0, 0), (0, Cp - C)))
    b_pad = jnp.pad(shift.reshape(1, C).astype(jnp.float32),
                    ((0, 0), (0, Cp - C)))

    grid = (Mp // tm, Cp // tn, Kp // tk)
    kern = functools.partial(_fused_conv_kernel, lrelu=lrelu)

    out = pl.pallas_call(
        kern,
        out_shape=jax.ShapeDtypeStruct((Mp, Cp), jnp.float32),
        grid_spec=pltpu.PrefetchScalarGridSpec(
            num_scalar_prefetch=0,
            grid=grid,
            in_specs=[
                pl.BlockSpec((tm, tk), lambda i, j, k: (i, k)),   # patches
                pl.BlockSpec((tk, tn), lambda i, j, k: (k, j)),   # weights
                pl.BlockSpec((1, tn), lambda i, j, k: (0, j)),    # scale
                pl.BlockSpec((1, tn), lambda i, j, k: (0, j)),    # shift
            ],
            out_specs=pl.BlockSpec((tm, tn), lambda i, j, k: (i, j)),
            scratch_shapes=[pltpu.VMEM((tm, tn), jnp.float32)],
        ),
        compiler_params=pltpu.CompilerParams(
            # M / N parallel (v7x megacore sharding), K reduction arbitrary.
            dimension_semantics=("parallel", "parallel", "arbitrary"),
            # No vmem_limit override: tiles (<=256x512 bf16 + 256x256 f32,
            # double-buffered) fit the default scoped-VMEM budget everywhere,
            # leaving headroom under v7x's 64 MiB ceiling.
        ),
    )(p_pad, w_pad, s_pad, b_pad)

    return out[:M, :C]


# ----------------------------------------------------------------------------
# Plain-JAX glue: TF-"SAME" im2col patch extraction (stride 2, kernel 4)
# ----------------------------------------------------------------------------
def extract_patches_same(x, k=KSIZE, stride=STRIDE):
    """x: (N, H, W, C) -> patches (N*Ho*Wo, k*k*C) flattened (kh, kw, cin)."""
    N, H, W, C = x.shape
    Ho = -(-H // stride)
    Wo = -(-W // stride)
    ph = max((Ho - 1) * stride + k - H, 0)
    pw = max((Wo - 1) * stride + k - W, 0)
    x = jnp.pad(x, ((0, 0), (ph // 2, ph - ph // 2), (pw // 2, pw - pw // 2),
                    (0, 0)))
    cols = []
    for i in range(k):
        for j in range(k):
            cols.append(x[:, i:i + stride * (Ho - 1) + 1:stride,
                             j:j + stride * (Wo - 1) + 1:stride, :])
    patches = jnp.concatenate(cols, axis=-1)          # (N, Ho, Wo, k*k*C)
    return patches.reshape(N * Ho * Wo, k * k * C), (N, Ho, Wo)


def conv_block(x_nhwc, w_hwio, bias, bn=None, lrelu=True):
    k, _, cin, cout = w_hwio.shape
    patches, (n, ho, wo) = extract_patches_same(x_nhwc, k=k, stride=STRIDE)
    w2d = w_hwio.reshape(k * k * cin, cout)
    if bn is None:
        scale = jnp.ones((cout,), jnp.float32)
        shift = bias.astype(jnp.float32)
    else:
        gamma, beta, rmean, rvar = bn
        s = gamma / jnp.sqrt(rvar + BN_EPS)
        scale = s
        shift = (bias - rmean) * s + beta
    out = fused_conv_matmul(patches, w2d, scale, shift, lrelu)
    return out.reshape(n, ho, wo, cout)


# ----------------------------------------------------------------------------
# Parameter construction (deterministic, synthetic)
# ----------------------------------------------------------------------------
def init_params(key):
    def conv(key, cin, cout):
        kw, kb = jax.random.split(key)
        w = 0.05 * jax.random.normal(kw, (KSIZE, KSIZE, cin, cout), jnp.float32)
        b = 0.05 * jax.random.normal(kb, (cout,), jnp.float32)
        return w, b

    def bn(key, c):
        k1, k2, k3, k4 = jax.random.split(key, 4)
        gamma = 1.0 + 0.1 * jax.random.normal(k1, (c,), jnp.float32)
        beta = 0.1 * jax.random.normal(k2, (c,), jnp.float32)
        rmean = 0.1 * jax.random.normal(k3, (c,), jnp.float32)
        rvar = 1.0 + 0.1 * jnp.abs(jax.random.normal(k4, (c,), jnp.float32))
        return gamma, beta, rmean, rvar

    keys = jax.random.split(key, 8)
    return {
        "conv1": conv(keys[0], 3, 64),
        "conv2": conv(keys[1], 69, 128),
        "bn2": bn(keys[2], 128),
        "conv3": conv(keys[3], 128, 256),
        "bn3": bn(keys[4], 256),
        "conv4": conv(keys[5], 256, 512),
        "bn4": bn(keys[6], 512),
        "conv5": conv(keys[7], 512, 512),
    }


# ----------------------------------------------------------------------------
# Forward pass (PatchDiscriminator.forward)
# ----------------------------------------------------------------------------
def patch_discriminator_forward(params, x_nchw, cond_nchw):
    x = jnp.transpose(x_nchw, (0, 2, 3, 1)).astype(jnp.float32)        # NHWC
    cond = jnp.transpose(cond_nchw, (0, 2, 3, 1)).astype(jnp.float32)  # NHWC

    w1, b1 = params["conv1"]
    h = conv_block(x, w1, b1, bn=None, lrelu=True)                 # lrelu(conv1)
    h = jnp.concatenate([h, cond], axis=-1)                        # cat on channels

    w2, b2 = params["conv2"]
    h = conv_block(h, w2, b2, bn=params["bn2"], lrelu=True)        # lrelu(bn2(conv2))
    w3, b3 = params["conv3"]
    h = conv_block(h, w3, b3, bn=params["bn3"], lrelu=True)        # lrelu(bn3(conv3))
    w4, b4 = params["conv4"]
    h = conv_block(h, w4, b4, bn=params["bn4"], lrelu=True)        # lrelu(bn4(conv4))
    w5, b5 = params["conv5"]
    h = conv_block(h, w5, b5, bn=None, lrelu=False)                # conv5 (no act)

    return jnp.transpose(h, (0, 3, 1, 2))                          # back to NCHW


if __name__ == "__main__":
    key = jax.random.PRNGKey(0)
    kp, kx, kc = jax.random.split(key, 3)

    params = init_params(kp)
    # x: (N, 3, 16, 16); condition is concatenated after conv1 (which halves
    # the spatial dims to 8x8 and has 64 channels), so condition has
    # 69 - 64 = 5 channels at 8x8.
    x = jax.random.normal(kx, (2, 3, 16, 16), jnp.float32)
    condition = jax.random.normal(kc, (2, 5, 8, 8), jnp.float32)

    fwd = jax.jit(patch_discriminator_forward)
    out = fwd(params, x, condition)
    out = jax.block_until_ready(out)

    assert out.shape == (2, 512, 1, 1), out.shape
    assert out.dtype == jnp.float32
    assert bool(jnp.all(jnp.isfinite(out)))
    print("KERNEL_OK")
</pallas_src>

<mosaic_0001>
module attributes {stable_mosaic.version = 11 : i64} {
  func.func @_fused_conv_kernel(%arg0: i32, %arg1: i32, %arg2: i32, %arg3: memref<128x128xbf16, #tpu.memory_space<vmem>>, %arg4: memref<128x128xbf16, #tpu.memory_space<vmem>>, %arg5: memref<1x128xf32, #tpu.memory_space<vmem>>, %arg6: memref<1x128xf32, #tpu.memory_space<vmem>>, %arg7: memref<128x128xf32, #tpu.memory_space<vmem>>, %arg8: memref<128x128xf32, #tpu.memory_space<vmem>>) attributes {dimension_semantics = [#tpu.dimension_semantics<parallel>, #tpu.dimension_semantics<parallel>, #tpu.dimension_semantics<arbitrary>], iteration_bounds = array<i64: 1, 1, 1>, scalar_prefetch = 0 : i64, scratch_operands = 1 : i64, tpu.core_type = #tpu.core_type<tc>, window_params = [{transform_indices = @transform_0, window_bounds = array<i64: 128, 128>}, {transform_indices = @transform_1, window_bounds = array<i64: 128, 128>}, {transform_indices = @transform_2, window_bounds = array<i64: 1, 128>}, {transform_indices = @transform_3, window_bounds = array<i64: 1, 128>}, {transform_indices = @transform_4, window_bounds = array<i64: 128, 128>}]} {
    %c0_i32 = arith.constant 0 : i32
    %0 = arith.cmpi eq, %arg2, %c0_i32 : i32
    %1 = arith.extui %0 : i1 to i32
    %c0_i32_0 = arith.constant 0 : i32
    %2 = arith.cmpi ne, %1, %c0_i32_0 : i32
    scf.if %2 {
      %cst_10 = arith.constant 0.000000e+00 : f32
      %12 = vector.broadcast %cst_10 : f32 to vector<128x128xf32>
      %c0_11 = arith.constant 0 : index
      %c0_12 = arith.constant 0 : index
      %13 = vector.load %arg8[%c0_11, %c0_12] : memref<128x128xf32, #tpu.memory_space<vmem>>, vector<128x128xf32>
      tpu.vector_store %arg8[%c0_11, %c0_12], %12 {strides = array<i32>} : memref<128x128xf32, #tpu.memory_space<vmem>>, vector<128x128xf32>,
    } else {
    }
    %c0 = arith.constant 0 : index
    %c0_1 = arith.constant 0 : index
    %3 = vector.load %arg8[%c0, %c0_1] : memref<128x128xf32, #tpu.memory_space<vmem>>, vector<128x128xf32>
    %c0_2 = arith.constant 0 : index
    %c0_3 = arith.constant 0 : index
    %4 = vector.load %arg3[%c0_2, %c0_3] : memref<128x128xbf16, #tpu.memory_space<vmem>>, vector<128x128xbf16>
    %c0_4 = arith.constant 0 : index
    %c0_5 = arith.constant 0 : index
    %5 = vector.load %arg4[%c0_4, %c0_5] : memref<128x128xbf16, #tpu.memory_space<vmem>>, vector<128x128xbf16>
    %cst = arith.constant dense<0.000000e+00> : vector<128x128xf32>
    %6 = tpu.matmul %4, %5, %cst {dimension_numbers = #tpu.dot_dimension_numbers<[1], [0], [0], [1], [0, 0, 1, 1], [], []>} : vector<128x128xbf16>, vector<128x128xbf16>, vector<128x128xf32> -> vector<128x128xf32>
    %7 = arith.addf %3, %6 : vector<128x128xf32>
    %c0_6 = arith.constant 0 : index
    %c0_7 = arith.constant 0 : index
    %8 = vector.load %arg8[%c0_6, %c0_7] : memref<128x128xf32, #tpu.memory_space<vmem>>, vector<128x128xf32>
    tpu.vector_store %arg8[%c0_6, %c0_7], %7 {strides = array<i32>} : memref<128x128xf32, #tpu.memory_space<vmem>>, vector<128x128xf32>,
    %c0_i32_8 = arith.constant 0 : i32
    %9 = arith.cmpi eq, %arg2, %c0_i32_8 : i32
    %10 = arith.extui %9 : i1 to i32
    %c0_i32_9 = arith.constant 0 : i32
    %11 = arith.cmpi ne, %10, %c0_i32_9 : i32
    scf.if %11 {
      %c0_10 = arith.constant 0 : index
      %c0_11 = arith.constant 0 : index
      %12 = vector.load %arg8[%c0_10, %c0_11] : memref<128x128xf32, #tpu.memory_space<vmem>>, vector<128x128xf32>
      %c0_12 = arith.constant 0 : index
      %c0_13 = arith.constant 0 : index
      %13 = vector.load %arg5[%c0_12, %c0_13] : memref<1x128xf32, #tpu.memory_space<vmem>>, vector<1x128xf32>
      %14 = vector.broadcast %13 : vector<1x128xf32> to vector<128x128xf32>
      %15 = arith.mulf %12, %14 : vector<128x128xf32>
      %c0_14 = arith.constant 0 : index
      %c0_15 = arith.constant 0 : index
      %16 = vector.load %arg6[%c0_14, %c0_15] : memref<1x128xf32, #tpu.memory_space<vmem>>, vector<1x128xf32>
      %17 = vector.broadcast %16 : vector<1x128xf32> to vector<128x128xf32>
      %18 = arith.addf %15, %17 : vector<128x128xf32>
      %cst_16 = arith.constant 0.000000e+00 : f32
      %19 = vector.broadcast %cst_16 : f32 to vector<128x128xf32>
      %20 = arith.cmpf oge, %18, %19 : vector<128x128xf32>
      %cst_17 = arith.constant 2.000000e-01 : f32
      %21 = vector.broadcast %cst_17 : f32 to vector<128x128xf32>
      %22 = arith.mulf %21, %18 : vector<128x128xf32>
      %23 = arith.select %20, %18, %22 : vector<128x128xi1>, vector<128x128xf32>
      %c0_18 = arith.constant 0 : index
      %c0_19 = arith.constant 0 : index
      %24 = vector.load %arg7[%c0_18, %c0_19] : memref<128x128xf32, #tpu.memory_space<vmem>>, vector<128x128xf32>
      tpu.vector_store %arg7[%c0_18, %c0_19], %23 {strides = array<i32>} : memref<128x128xf32, #tpu.memory_space<vmem>>, vector<128x128xf32>,
    } else {
    }
    return
  }
  func.func @transform_0(%arg0: i32, %arg1: i32, %arg2: i32) -> (i32, i32) {
    %c0_i32 = arith.constant 0 : i32
    return %arg0, %arg2 : i32, i32
  }
  func.func @transform_1(%arg0: i32, %arg1: i32, %arg2: i32) -> (i32, i32) {
    %c0_i32 = arith.constant 0 : i32
    return %arg2, %arg1 : i32, i32
  }
  func.func @transform_2(%arg0: i32, %arg1: i32, %arg2: i32) -> (i32, i32) {
    %c0_i32 = arith.constant 0 : i32
    %c0_i32_0 = arith.constant 0 : i32
    return %c0_i32, %arg1 : i32, i32
  }
  func.func @transform_3(%arg0: i32, %arg1: i32, %arg2: i32) -> (i32, i32) {
    %c0_i32 = arith.constant 0 : i32
    %c0_i32_0 = arith.constant 0 : i32
    return %c0_i32, %arg1 : i32, i32
  }
  func.func @transform_4(%arg0: i32, %arg1: i32, %arg2: i32) -> (i32, i32) {
    %c0_i32 = arith.constant 0 : i32
    return %arg0, %arg1 : i32, i32
  }
}

module attributes {stable_mosaic.version = 11 : i64} {
  func.func @_fused_conv_kernel(%arg0: i32, %arg1: i32, %arg2: i32, %arg3: memref<32x512xbf16, #tpu.memory_space<vmem>>, %arg4: memref<512x128xbf16, #tpu.memory_space<vmem>>, %arg5: memref<1x128xf32, #tpu.memory_space<vmem>>, %arg6: memref<1x128xf32, #tpu.memory_space<vmem>>, %arg7: memref<32x128xf32, #tpu.memory_space<vmem>>, %arg8: memref<32x128xf32, #tpu.memory_space<vmem>>) attributes {dimension_semantics = [#tpu.dimension_semantics<parallel>, #tpu.dimension_semantics<parallel>, #tpu.dimension_semantics<arbitrary>], iteration_bounds = array<i64: 1, 1, 3>, scalar_prefetch = 0 : i64, scratch_operands = 1 : i64, tpu.core_type = #tpu.core_type<tc>, window_params = [{transform_indices = @transform_0, window_bounds = array<i64: 32, 512>}, {transform_indices = @transform_1, window_bounds = array<i64: 512, 128>}, {transform_indices = @transform_2, window_bounds = array<i64: 1, 128>}, {transform_indices = @transform_3, window_bounds = array<i64: 1, 128>}, {transform_indices = @transform_4, window_bounds = array<i64: 32, 128>}]} {
    %c0_i32 = arith.constant 0 : i32
    %0 = arith.cmpi eq, %arg2, %c0_i32 : i32
    %1 = arith.extui %0 : i1 to i32
    %c0_i32_0 = arith.constant 0 : i32
    %2 = arith.cmpi ne, %1, %c0_i32_0 : i32
    scf.if %2 {
      %cst_9 = arith.constant 0.000000e+00 : f32
      %12 = vector.broadcast %cst_9 : f32 to vector<32x128xf32>
      %c0_10 = arith.constant 0 : index
      %c0_11 = arith.constant 0 : index
      %13 = vector.load %arg8[%c0_10, %c0_11] : memref<32x128xf32, #tpu.memory_space<vmem>>, vector<32x128xf32>
      tpu.vector_store %arg8[%c0_10, %c0_11], %12 {strides = array<i32>} : memref<32x128xf32, #tpu.memory_space<vmem>>, vector<32x128xf32>,
    } else {
    }
    %c0 = arith.constant 0 : index
    %c0_1 = arith.constant 0 : index
    %3 = vector.load %arg8[%c0, %c0_1] : memref<32x128xf32, #tpu.memory_space<vmem>>, vector<32x128xf32>
    %c0_2 = arith.constant 0 : index
    %c0_3 = arith.constant 0 : index
    %4 = vector.load %arg3[%c0_2, %c0_3] : memref<32x512xbf16, #tpu.memory_space<vmem>>, vector<32x512xbf16>
    %c0_4 = arith.constant 0 : index
    %c0_5 = arith.constant 0 : index
    %5 = vector.load %arg4[%c0_4, %c0_5] : memref<512x128xbf16, #tpu.memory_space<vmem>>, vector<512x128xbf16>
    %cst = arith.constant dense<0.000000e+00> : vector<32x128xf32>
    %6 = tpu.matmul %4, %5, %cst {dimension_numbers = #tpu.dot_dimension_numbers<[1], [0], [0], [1], [0, 0, 1, 1], [], []>} : vector<32x512xbf16>, vector<512x128xbf16>, vector<32x128xf32> -> vector<32x128xf32>
    %7 = arith.addf %3, %6 : vector<32x128xf32>
    %c0_6 = arith.constant 0 : index
    %c0_7 = arith.constant 0 : index
    %8 = vector.load %arg8[%c0_6, %c0_7] : memref<32x128xf32, #tpu.memory_space<vmem>>, vector<32x128xf32>
    tpu.vector_store %arg8[%c0_6, %c0_7], %7 {strides = array<i32>} : memref<32x128xf32, #tpu.memory_space<vmem>>, vector<32x128xf32>,
    %c2_i32 = arith.constant 2 : i32
    %9 = arith.cmpi eq, %arg2, %c2_i32 : i32
    %10 = arith.extui %9 : i1 to i32
    %c0_i32_8 = arith.constant 0 : i32
    %11 = arith.cmpi ne, %10, %c0_i32_8 : i32
    scf.if %11 {
      %c0_9 = arith.constant 0 : index
      %c0_10 = arith.constant 0 : index
      %12 = vector.load %arg8[%c0_9, %c0_10] : memref<32x128xf32, #tpu.memory_space<vmem>>, vector<32x128xf32>
      %c0_11 = arith.constant 0 : index
      %c0_12 = arith.constant 0 : index
      %13 = vector.load %arg5[%c0_11, %c0_12] : memref<1x128xf32, #tpu.memory_space<vmem>>, vector<1x128xf32>
      %14 = vector.broadcast %13 : vector<1x128xf32> to vector<32x128xf32>
      %15 = arith.mulf %12, %14 : vector<32x128xf32>
      %c0_13 = arith.constant 0 : index
      %c0_14 = arith.constant 0 : index
      %16 = vector.load %arg6[%c0_13, %c0_14] : memref<1x128xf32, #tpu.memory_space<vmem>>, vector<1x128xf32>
      %17 = vector.broadcast %16 : vector<1x128xf32> to vector<32x128xf32>
      %18 = arith.addf %15, %17 : vector<32x128xf32>
      %cst_15 = arith.constant 0.000000e+00 : f32
      %19 = vector.broadcast %cst_15 : f32 to vector<32x128xf32>
      %20 = arith.cmpf oge, %18, %19 : vector<32x128xf32>
      %cst_16 = arith.constant 2.000000e-01 : f32
      %21 = vector.broadcast %cst_16 : f32 to vector<32x128xf32>
      %22 = arith.mulf %21, %18 : vector<32x128xf32>
      %23 = arith.select %20, %18, %22 : vector<32x128xi1>, vector<32x128xf32>
      %c0_17 = arith.constant 0 : index
      %c0_18 = arith.constant 0 : index
      %24 = vector.load %arg7[%c0_17, %c0_18] : memref<32x128xf32, #tpu.memory_space<vmem>>, vector<32x128xf32>
      tpu.vector_store %arg7[%c0_17, %c0_18], %23 {strides = array<i32>} : memref<32x128xf32, #tpu.memory_space<vmem>>, vector<32x128xf32>,
    } else {
    }
    return
  }
  func.func @transform_0(%arg0: i32, %arg1: i32, %arg2: i32) -> (i32, i32) {
    %c0_i32 = arith.constant 0 : i32
    return %arg0, %arg2 : i32, i32
  }
  func.func @transform_1(%arg0: i32, %arg1: i32, %arg2: i32) -> (i32, i32) {
    %c0_i32 = arith.constant 0 : i32
    return %arg2, %arg1 : i32, i32
  }
  func.func @transform_2(%arg0: i32, %arg1: i32, %arg2: i32) -> (i32, i32) {
    %c0_i32 = arith.constant 0 : i32
    %c0_i32_0 = arith.constant 0 : i32
    return %c0_i32, %arg1 : i32, i32
  }
  func.func @transform_3(%arg0: i32, %arg1: i32, %arg2: i32) -> (i32, i32) {
    %c0_i32 = arith.constant 0 : i32
    %c0_i32_0 = arith.constant 0 : i32
    return %c0_i32, %arg1 : i32, i32
  }
  func.func @transform_4(%arg0: i32, %arg1: i32, %arg2: i32) -> (i32, i32) {
    %c0_i32 = arith.constant 0 : i32
    return %arg0, %arg1 : i32, i32
  }
}

module attributes {stable_mosaic.version = 11 : i64} {
  func.func @_fused_conv_kernel(%arg0: i32, %arg1: i32, %arg2: i32, %arg3: memref<16x512xbf16, #tpu.memory_space<vmem>>, %arg4: memref<512x256xbf16, #tpu.memory_space<vmem>>, %arg5: memref<1x256xf32, #tpu.memory_space<vmem>>, %arg6: memref<1x256xf32, #tpu.memory_space<vmem>>, %arg7: memref<16x256xf32, #tpu.memory_space<vmem>>, %arg8: memref<16x256xf32, #tpu.memory_space<vmem>>) attributes {dimension_semantics = [#tpu.dimension_semantics<parallel>, #tpu.dimension_semantics<parallel>, #tpu.dimension_semantics<arbitrary>], iteration_bounds = array<i64: 1, 1, 4>, scalar_prefetch = 0 : i64, scratch_operands = 1 : i64, tpu.core_type = #tpu.core_type<tc>, window_params = [{transform_indices = @transform_0, window_bounds = array<i64: 16, 512>}, {transform_indices = @transform_1, window_bounds = array<i64: 512, 256>}, {transform_indices = @transform_2, window_bounds = array<i64: 1, 256>}, {transform_indices = @transform_3, window_bounds = array<i64: 1, 256>}, {transform_indices = @transform_4, window_bounds = array<i64: 16, 256>}]} {
    %c0_i32 = arith.constant 0 : i32
    %0 = arith.cmpi eq, %arg2, %c0_i32 : i32
    %1 = arith.extui %0 : i1 to i32
    %c0_i32_0 = arith.constant 0 : i32
    %2 = arith.cmpi ne, %1, %c0_i32_0 : i32
    scf.if %2 {
      %cst_9 = arith.constant 0.000000e+00 : f32
      %12 = vector.broadcast %cst_9 : f32 to vector<16x256xf32>
      %c0_10 = arith.constant 0 : index
      %c0_11 = arith.constant 0 : index
      %13 = vector.load %arg8[%c0_10, %c0_11] : memref<16x256xf32, #tpu.memory_space<vmem>>, vector<16x256xf32>
      tpu.vector_store %arg8[%c0_10, %c0_11], %12 {strides = array<i32>} : memref<16x256xf32, #tpu.memory_space<vmem>>, vector<16x256xf32>,
    } else {
    }
    %c0 = arith.constant 0 : index
    %c0_1 = arith.constant 0 : index
    %3 = vector.load %arg8[%c0, %c0_1] : memref<16x256xf32, #tpu.memory_space<vmem>>, vector<16x256xf32>
    %c0_2 = arith.constant 0 : index
    %c0_3 = arith.constant 0 : index
    %4 = vector.load %arg3[%c0_2, %c0_3] : memref<16x512xbf16, #tpu.memory_space<vmem>>, vector<16x512xbf16>
    %c0_4 = arith.constant 0 : index
    %c0_5 = arith.constant 0 : index
    %5 = vector.load %arg4[%c0_4, %c0_5] : memref<512x256xbf16, #tpu.memory_space<vmem>>, vector<512x256xbf16>
    %cst = arith.constant dense<0.000000e+00> : vector<16x256xf32>
    %6 = tpu.matmul %4, %5, %cst {dimension_numbers = #tpu.dot_dimension_numbers<[1], [0], [0], [1], [0, 0, 1, 1], [], []>} : vector<16x512xbf16>, vector<512x256xbf16>, vector<16x256xf32> -> vector<16x256xf32>
    %7 = arith.addf %3, %6 : vector<16x256xf32>
    %c0_6 = arith.constant 0 : index
    %c0_7 = arith.constant 0 : index
    %8 = vector.load %arg8[%c0_6, %c0_7] : memref<16x256xf32, #tpu.memory_space<vmem>>, vector<16x256xf32>
    tpu.vector_store %arg8[%c0_6, %c0_7], %7 {strides = array<i32>} : memref<16x256xf32, #tpu.memory_space<vmem>>, vector<16x256xf32>,
    %c3_i32 = arith.constant 3 : i32
    %9 = arith.cmpi eq, %arg2, %c3_i32 : i32
    %10 = arith.extui %9 : i1 to i32
    %c0_i32_8 = arith.constant 0 : i32
    %11 = arith.cmpi ne, %10, %c0_i32_8 : i32
    scf.if %11 {
      %c0_9 = arith.constant 0 : index
      %c0_10 = arith.constant 0 : index
      %12 = vector.load %arg8[%c0_9, %c0_10] : memref<16x256xf32, #tpu.memory_space<vmem>>, vector<16x256xf32>
      %c0_11 = arith.constant 0 : index
      %c0_12 = arith.constant 0 : index
      %13 = vector.load %arg5[%c0_11, %c0_12] : memref<1x256xf32, #tpu.memory_space<vmem>>, vector<1x256xf32>
      %14 = vector.broadcast %13 : vector<1x256xf32> to vector<16x256xf32>
      %15 = arith.mulf %12, %14 : vector<16x256xf32>
      %c0_13 = arith.constant 0 : index
      %c0_14 = arith.constant 0 : index
      %16 = vector.load %arg6[%c0_13, %c0_14] : memref<1x256xf32, #tpu.memory_space<vmem>>, vector<1x256xf32>
      %17 = vector.broadcast %16 : vector<1x256xf32> to vector<16x256xf32>
      %18 = arith.addf %15, %17 : vector<16x256xf32>
      %cst_15 = arith.constant 0.000000e+00 : f32
      %19 = vector.broadcast %cst_15 : f32 to vector<16x256xf32>
      %20 = arith.cmpf oge, %18, %19 : vector<16x256xf32>
      %cst_16 = arith.constant 2.000000e-01 : f32
      %21 = vector.broadcast %cst_16 : f32 to vector<16x256xf32>
      %22 = arith.mulf %21, %18 : vector<16x256xf32>
      %23 = arith.select %20, %18, %22 : vector<16x256xi1>, vector<16x256xf32>
      %c0_17 = arith.constant 0 : index
      %c0_18 = arith.constant 0 : index
      %24 = vector.load %arg7[%c0_17, %c0_18] : memref<16x256xf32, #tpu.memory_space<vmem>>, vector<16x256xf32>
      tpu.vector_store %arg7[%c0_17, %c0_18], %23 {strides = array<i32>} : memref<16x256xf32, #tpu.memory_space<vmem>>, vector<16x256xf32>,
    } else {
    }
    return
  }
  func.func @transform_0(%arg0: i32, %arg1: i32, %arg2: i32) -> (i32, i32) {
    %c0_i32 = arith.constant 0 : i32
    return %arg0, %arg2 : i32, i32
  }
  func.func @transform_1(%arg0: i32, %arg1: i32, %arg2: i32) -> (i32, i32) {
    %c0_i32 = arith.constant 0 : i32
    return %arg2, %arg1 : i32, i32
  }
  func.func @transform_2(%arg0: i32, %arg1: i32, %arg2: i32) -> (i32, i32) {
    %c0_i32 = arith.constant 0 : i32
    %c0_i32_0 = arith.constant 0 : i32
    return %c0_i32, %arg1 : i32, i32
  }
  func.func @transform_3(%arg0: i32, %arg1: i32, %arg2: i32) -> (i32, i32) {
    %c0_i32 = arith.constant 0 : i32
    %c0_i32_0 = arith.constant 0 : i32
    return %c0_i32, %arg1 : i32, i32
  }
  func.func @transform_4(%arg0: i32, %arg1: i32, %arg2: i32) -> (i32, i32) {
    %c0_i32 = arith.constant 0 : i32
    return %arg0, %arg1 : i32, i32
  }
}

module attributes {stable_mosaic.version = 11 : i64} {
  func.func @_fused_conv_kernel(%arg0: i32, %arg1: i32, %arg2: i32, %arg3: memref<16x512xbf16, #tpu.memory_space<vmem>>, %arg4: memref<512x256xbf16, #tpu.memory_space<vmem>>, %arg5: memref<1x256xf32, #tpu.memory_space<vmem>>, %arg6: memref<1x256xf32, #tpu.memory_space<vmem>>, %arg7: memref<16x256xf32, #tpu.memory_space<vmem>>, %arg8: memref<16x256xf32, #tpu.memory_space<vmem>>) attributes {dimension_semantics = [#tpu.dimension_semantics<parallel>, #tpu.dimension_semantics<parallel>, #tpu.dimension_semantics<arbitrary>], iteration_bounds = array<i64: 1, 2, 8>, scalar_prefetch = 0 : i64, scratch_operands = 1 : i64, tpu.core_type = #tpu.core_type<tc>, window_params = [{transform_indices = @transform_0, window_bounds = array<i64: 16, 512>}, {transform_indices = @transform_1, window_bounds = array<i64: 512, 256>}, {transform_indices = @transform_2, window_bounds = array<i64: 1, 256>}, {transform_indices = @transform_3, window_bounds = array<i64: 1, 256>}, {transform_indices = @transform_4, window_bounds = array<i64: 16, 256>}]} {
    %c0_i32 = arith.constant 0 : i32
    %0 = arith.cmpi eq, %arg2, %c0_i32 : i32
    %1 = arith.extui %0 : i1 to i32
    %c0_i32_0 = arith.constant 0 : i32
    %2 = arith.cmpi ne, %1, %c0_i32_0 : i32
    scf.if %2 {
      %cst_9 = arith.constant 0.000000e+00 : f32
      %12 = vector.broadcast %cst_9 : f32 to vector<16x256xf32>
      %c0_10 = arith.constant 0 : index
      %c0_11 = arith.constant 0 : index
      %13 = vector.load %arg8[%c0_10, %c0_11] : memref<16x256xf32, #tpu.memory_space<vmem>>, vector<16x256xf32>
      tpu.vector_store %arg8[%c0_10, %c0_11], %12 {strides = array<i32>} : memref<16x256xf32, #tpu.memory_space<vmem>>, vector<16x256xf32>,
    } else {
    }
    %c0 = arith.constant 0 : index
    %c0_1 = arith.constant 0 : index
    %3 = vector.load %arg8[%c0, %c0_1] : memref<16x256xf32, #tpu.memory_space<vmem>>, vector<16x256xf32>
    %c0_2 = arith.constant 0 : index
    %c0_3 = arith.constant 0 : index
    %4 = vector.load %arg3[%c0_2, %c0_3] : memref<16x512xbf16, #tpu.memory_space<vmem>>, vector<16x512xbf16>
    %c0_4 = arith.constant 0 : index
    %c0_5 = arith.constant 0 : index
    %5 = vector.load %arg4[%c0_4, %c0_5] : memref<512x256xbf16, #tpu.memory_space<vmem>>, vector<512x256xbf16>
    %cst = arith.constant dense<0.000000e+00> : vector<16x256xf32>
    %6 = tpu.matmul %4, %5, %cst {dimension_numbers = #tpu.dot_dimension_numbers<[1], [0], [0], [1], [0, 0, 1, 1], [], []>} : vector<16x512xbf16>, vector<512x256xbf16>, vector<16x256xf32> -> vector<16x256xf32>
    %7 = arith.addf %3, %6 : vector<16x256xf32>
    %c0_6 = arith.constant 0 : index
    %c0_7 = arith.constant 0 : index
    %8 = vector.load %arg8[%c0_6, %c0_7] : memref<16x256xf32, #tpu.memory_space<vmem>>, vector<16x256xf32>
    tpu.vector_store %arg8[%c0_6, %c0_7], %7 {strides = array<i32>} : memref<16x256xf32, #tpu.memory_space<vmem>>, vector<16x256xf32>,
    %c7_i32 = arith.constant 7 : i32
    %9 = arith.cmpi eq, %arg2, %c7_i32 : i32
    %10 = arith.extui %9 : i1 to i32
    %c0_i32_8 = arith.constant 0 : i32
    %11 = arith.cmpi ne, %10, %c0_i32_8 : i32
    scf.if %11 {
      %c0_9 = arith.constant 0 : index
      %c0_10 = arith.constant 0 : index
      %12 = vector.load %arg8[%c0_9, %c0_10] : memref<16x256xf32, #tpu.memory_space<vmem>>, vector<16x256xf32>
      %c0_11 = arith.constant 0 : index
      %c0_12 = arith.constant 0 : index
      %13 = vector.load %arg5[%c0_11, %c0_12] : memref<1x256xf32, #tpu.memory_space<vmem>>, vector<1x256xf32>
      %14 = vector.broadcast %13 : vector<1x256xf32> to vector<16x256xf32>
      %15 = arith.mulf %12, %14 : vector<16x256xf32>
      %c0_13 = arith.constant 0 : index
      %c0_14 = arith.constant 0 : index
      %16 = vector.load %arg6[%c0_13, %c0_14] : memref<1x256xf32, #tpu.memory_space<vmem>>, vector<1x256xf32>
      %17 = vector.broadcast %16 : vector<1x256xf32> to vector<16x256xf32>
      %18 = arith.addf %15, %17 : vector<16x256xf32>
      %cst_15 = arith.constant 0.000000e+00 : f32
      %19 = vector.broadcast %cst_15 : f32 to vector<16x256xf32>
      %20 = arith.cmpf oge, %18, %19 : vector<16x256xf32>
      %cst_16 = arith.constant 2.000000e-01 : f32
      %21 = vector.broadcast %cst_16 : f32 to vector<16x256xf32>
      %22 = arith.mulf %21, %18 : vector<16x256xf32>
      %23 = arith.select %20, %18, %22 : vector<16x256xi1>, vector<16x256xf32>
      %c0_17 = arith.constant 0 : index
      %c0_18 = arith.constant 0 : index
      %24 = vector.load %arg7[%c0_17, %c0_18] : memref<16x256xf32, #tpu.memory_space<vmem>>, vector<16x256xf32>
      tpu.vector_store %arg7[%c0_17, %c0_18], %23 {strides = array<i32>} : memref<16x256xf32, #tpu.memory_space<vmem>>, vector<16x256xf32>,
    } else {
    }
    return
  }
  func.func @transform_0(%arg0: i32, %arg1: i32, %arg2: i32) -> (i32, i32) {
    %c0_i32 = arith.constant 0 : i32
    return %arg0, %arg2 : i32, i32
  }
  func.func @transform_1(%arg0: i32, %arg1: i32, %arg2: i32) -> (i32, i32) {
    %c0_i32 = arith.constant 0 : i32
    return %arg2, %arg1 : i32, i32
  }
  func.func @transform_2(%arg0: i32, %arg1: i32, %arg2: i32) -> (i32, i32) {
    %c0_i32 = arith.constant 0 : i32
    %c0_i32_0 = arith.constant 0 : i32
    return %c0_i32, %arg1 : i32, i32
  }
  func.func @transform_3(%arg0: i32, %arg1: i32, %arg2: i32) -> (i32, i32) {
    %c0_i32 = arith.constant 0 : i32
    %c0_i32_0 = arith.constant 0 : i32
    return %c0_i32, %arg1 : i32, i32
  }
  func.func @transform_4(%arg0: i32, %arg1: i32, %arg2: i32) -> (i32, i32) {
    %c0_i32 = arith.constant 0 : i32
    return %arg0, %arg1 : i32, i32
  }
}

module attributes {stable_mosaic.version = 11 : i64} {
  func.func @_fused_conv_kernel(%arg0: i32, %arg1: i32, %arg2: i32, %arg3: memref<16x512xbf16, #tpu.memory_space<vmem>>, %arg4: memref<512x256xbf16, #tpu.memory_space<vmem>>, %arg5: memref<1x256xf32, #tpu.memory_space<vmem>>, %arg6: memref<1x256xf32, #tpu.memory_space<vmem>>, %arg7: memref<16x256xf32, #tpu.memory_space<vmem>>, %arg8: memref<16x256xf32, #tpu.memory_space<vmem>>) attributes {dimension_semantics = [#tpu.dimension_semantics<parallel>, #tpu.dimension_semantics<parallel>, #tpu.dimension_semantics<arbitrary>], iteration_bounds = array<i64: 1, 2, 16>, scalar_prefetch = 0 : i64, scratch_operands = 1 : i64, tpu.core_type = #tpu.core_type<tc>, window_params = [{transform_indices = @transform_0, window_bounds = array<i64: 16, 512>}, {transform_indices = @transform_1, window_bounds = array<i64: 512, 256>}, {transform_indices = @transform_2, window_bounds = array<i64: 1, 256>}, {transform_indices = @transform_3, window_bounds = array<i64: 1, 256>}, {transform_indices = @transform_4, window_bounds = array<i64: 16, 256>}]} {
    %c0_i32 = arith.constant 0 : i32
    %0 = arith.cmpi eq, %arg2, %c0_i32 : i32
    %1 = arith.extui %0 : i1 to i32
    %c0_i32_0 = arith.constant 0 : i32
    %2 = arith.cmpi ne, %1, %c0_i32_0 : i32
    scf.if %2 {
      %cst_9 = arith.constant 0.000000e+00 : f32
      %12 = vector.broadcast %cst_9 : f32 to vector<16x256xf32>
      %c0_10 = arith.constant 0 : index
      %c0_11 = arith.constant 0 : index
      %13 = vector.load %arg8[%c0_10, %c0_11] : memref<16x256xf32, #tpu.memory_space<vmem>>, vector<16x256xf32>
      tpu.vector_store %arg8[%c0_10, %c0_11], %12 {strides = array<i32>} : memref<16x256xf32, #tpu.memory_space<vmem>>, vector<16x256xf32>,
    } else {
    }
    %c0 = arith.constant 0 : index
    %c0_1 = arith.constant 0 : index
    %3 = vector.load %arg8[%c0, %c0_1] : memref<16x256xf32, #tpu.memory_space<vmem>>, vector<16x256xf32>
    %c0_2 = arith.constant 0 : index
    %c0_3 = arith.constant 0 : index
    %4 = vector.load %arg3[%c0_2, %c0_3] : memref<16x512xbf16, #tpu.memory_space<vmem>>, vector<16x512xbf16>
    %c0_4 = arith.constant 0 : index
    %c0_5 = arith.constant 0 : index
    %5 = vector.load %arg4[%c0_4, %c0_5] : memref<512x256xbf16, #tpu.memory_space<vmem>>, vector<512x256xbf16>
    %cst = arith.constant dense<0.000000e+00> : vector<16x256xf32>
    %6 = tpu.matmul %4, %5, %cst {dimension_numbers = #tpu.dot_dimension_numbers<[1], [0], [0], [1], [0, 0, 1, 1], [], []>} : vector<16x512xbf16>, vector<512x256xbf16>, vector<16x256xf32> -> vector<16x256xf32>
    %7 = arith.addf %3, %6 : vector<16x256xf32>
    %c0_6 = arith.constant 0 : index
    %c0_7 = arith.constant 0 : index
    %8 = vector.load %arg8[%c0_6, %c0_7] : memref<16x256xf32, #tpu.memory_space<vmem>>, vector<16x256xf32>
    tpu.vector_store %arg8[%c0_6, %c0_7], %7 {strides = array<i32>} : memref<16x256xf32, #tpu.memory_space<vmem>>, vector<16x256xf32>,
    %c15_i32 = arith.constant 15 : i32
    %9 = arith.cmpi eq, %arg2, %c15_i32 : i32
    %10 = arith.extui %9 : i1 to i32
    %c0_i32_8 = arith.constant 0 : i32
    %11 = arith.cmpi ne, %10, %c0_i32_8 : i32
    scf.if %11 {
      %c0_9 = arith.constant 0 : index
      %c0_10 = arith.constant 0 : index
      %12 = vector.load %arg8[%c0_9, %c0_10] : memref<16x256xf32, #tpu.memory_space<vmem>>, vector<16x256xf32>
      %c0_11 = arith.constant 0 : index
      %c0_12 = arith.constant 0 : index
      %13 = vector.load %arg5[%c0_11, %c0_12] : memref<1x256xf32, #tpu.memory_space<vmem>>, vector<1x256xf32>
      %14 = vector.broadcast %13 : vector<1x256xf32> to vector<16x256xf32>
      %15 = arith.mulf %12, %14 : vector<16x256xf32>
      %c0_13 = arith.constant 0 : index
      %c0_14 = arith.constant 0 : index
      %16 = vector.load %arg6[%c0_13, %c0_14] : memref<1x256xf32, #tpu.memory_space<vmem>>, vector<1x256xf32>
      %17 = vector.broadcast %16 : vector<1x256xf32> to vector<16x256xf32>
      %18 = arith.addf %15, %17 : vector<16x256xf32>
      %c0_15 = arith.constant 0 : index
      %c0_16 = arith.constant 0 : index
      %19 = vector.load %arg7[%c0_15, %c0_16] : memref<16x256xf32, #tpu.memory_space<vmem>>, vector<16x256xf32>
      tpu.vector_store %arg7[%c0_15, %c0_16], %18 {strides = array<i32>} : memref<16x256xf32, #tpu.memory_space<vmem>>, vector<16x256xf32>,
    } else {
    }
    return
  }
  func.func @transform_0(%arg0: i32, %arg1: i32, %arg2: i32) -> (i32, i32) {
    %c0_i32 = arith.constant 0 : i32
    return %arg0, %arg2 : i32, i32
  }
  func.func @transform_1(%arg0: i32, %arg1: i32, %arg2: i32) -> (i32, i32) {
    %c0_i32 = arith.constant 0 : i32
    return %arg2, %arg1 : i32, i32
  }
  func.func @transform_2(%arg0: i32, %arg1: i32, %arg2: i32) -> (i32, i32) {
    %c0_i32 = arith.constant 0 : i32
    %c0_i32_0 = arith.constant 0 : i32
    return %c0_i32, %arg1 : i32, i32
  }
  func.func @transform_3(%arg0: i32, %arg1: i32, %arg2: i32) -> (i32, i32) {
    %c0_i32 = arith.constant 0 : i32
    %c0_i32_0 = arith.constant 0 : i32
    return %c0_i32, %arg1 : i32, i32
  }
  func.func @transform_4(%arg0: i32, %arg1: i32, %arg2: i32) -> (i32, i32) {
    %c0_i32 = arith.constant 0 : i32
    return %arg0, %arg1 : i32, i32
  }
}

</mosaic_0001>

<llo_original>
// kernel: patch_discriminator_forward.5
$region0: #{patch_discriminator_forward.5}
  #allocation0 [shape = 'u32[]', space=smem, size = 0x4, offset = 0x4, fixed_abs, tag = 'smem constant byte address 0x4 - core index']
  #allocation1 [shape = 'u32[144,128]{1,0:T(1,128)}', space=vmem, size = 0x12000, scoped, tag = 'internal scratch']
  #allocation2 [shape = 'f32[128,128]{1,0:T(8,128)}', space=vmem, size = 0x10000, scoped, tag = 'scratch operand']
  %s0 = inlined_call_operand.vmem [shape: bf16[128,128], index: 0, kind: input, shape index: {}]
  %s1 = inlined_call_operand.vmem [shape: bf16[128,128], index: 1, kind: input, shape index: {}]
  %s2 = inlined_call_operand.vmem [shape: f32[1,128], index: 2, kind: input, shape index: {}]
  %s3 = inlined_call_operand.vmem [shape: f32[1,128], index: 3, kind: input, shape index: {}]
  %s4 = inlined_call_operand.vmem [shape: f32[128,128], index: 4, kind: output, shape index: {}]
  %s5 = sld [smem:[#allocation0]]
  $region34: #{patch_discriminator_forward.5} parent=0
    _
  %s7 = ssub.s32 1, %s5
  %s8 = scalar_select 0, %s7, %s5
  // Predicated region
  $region2: #{patch_discriminator_forward.5} parent=0 // pred_check
    _
  $region3: #{patch_discriminator_forward.5} parent=0 // pred_check_branch
    %10 = sbr.rel (0) target = $region5
  $region4: #{patch_discriminator_forward.5} parent=0 // pred_region
    _
  $region5: #{patch_discriminator_forward.5} parent=0 // pred_fallthru
    _
  // Predicated region
  $region6: #{patch_discriminator_forward.5} parent=0 // pred_check
    _
  $region7: #{patch_discriminator_forward.5} parent=0 // pred_check_branch
    %12 = sbr.rel (0) target = $region9
  $region8: #{patch_discriminator_forward.5} parent=0 // pred_region
    _
  $region9: #{patch_discriminator_forward.5} parent=0 // pred_fallthru
    _
  // Predicated region
  $region10: #{patch_discriminator_forward.5} parent=0 // pred_check
    _
  $region11: #{patch_discriminator_forward.5} parent=0 // pred_check_branch
    %14 = sbr.rel (0) target = $region13
  $region12: #{patch_discriminator_forward.5} parent=0 // pred_region
    _
  $region13: #{patch_discriminator_forward.5} parent=0 // pred_fallthru
    _
  // Predicated region
  $region14: #{patch_discriminator_forward.5} parent=0 // pred_check
    _
  $region15: #{patch_discriminator_forward.5} parent=0 // pred_check_branch
    %16 = sbr.rel (0) target = $region17
  $region16: #{patch_discriminator_forward.5} parent=0 // pred_region
    _
  $region17: #{patch_discriminator_forward.5} parent=0 // pred_fallthru
    _
  %p18 = scmp.eq.s32.totalorder 0, 0
  // Predicated region
  $region18: #{patch_discriminator_forward.5} parent=0 // pred_check
    %p19 = pneg %p18
  $region19: #{patch_discriminator_forward.5} parent=0 // pred_check_branch
    %21 = sbr.rel (%p19) target = $region21
  $region20: #{patch_discriminator_forward.5} parent=0 // pred_region
    %22 = vst [vmem:[#allocation2] sm:$0xff] 0.0
    %23 = vst [vmem:[#allocation2 + $0x8] sm:$0xff] 0.0
    %24 = vst [vmem:[#allocation2 + $0x10] sm:$0xff] 0.0
    %25 = vst [vmem:[#allocation2 + $0x18] sm:$0xff] 0.0
    %26 = vst [vmem:[#allocation2 + $0x20] sm:$0xff] 0.0
    %27 = vst [vmem:[#allocation2 + $0x28] sm:$0xff] 0.0
    %28 = vst [vmem:[#allocation2 + $0x30] sm:$0xff] 0.0
    %29 = vst [vmem:[#allocation2 + $0x38] sm:$0xff] 0.0
    %30 = vst [vmem:[#allocation2 + $0x40] sm:$0xff] 0.0
    %31 = vst [vmem:[#allocation2 + $0x48] sm:$0xff] 0.0
    %32 = vst [vmem:[#allocation2 + $0x50] sm:$0xff] 0.0
    %33 = vst [vmem:[#allocation2 + $0x58] sm:$0xff] 0.0
    %34 = vst [vmem:[#allocation2 + $0x60] sm:$0xff] 0.0
    %35 = vst [vmem:[#allocation2 + $0x68] sm:$0xff] 0.0
    %36 = vst [vmem:[#allocation2 + $0x70] sm:$0xff] 0.0
    %37 = vst [vmem:[#allocation2 + $0x78] sm:$0xff] 0.0
  $region21: #{patch_discriminator_forward.5} parent=0 // pred_fallthru
    _
  %v38 = vld [vmem:[#allocation2] sm:$0xff]
  %v39 = vld [vmem:[#allocation2 + $0x8] sm:$0xff]
  %v40 = vld [vmem:[#allocation2 + $0x10] sm:$0xff]
  %v41 = vld [vmem:[#allocation2 + $0x18] sm:$0xff]
  %v42 = vld [vmem:[#allocation2 + $0x20] sm:$0xff]
  %v43 = vld [vmem:[#allocation2 + $0x28] sm:$0xff]
  %v44 = vld [vmem:[#allocation2 + $0x30] sm:$0xff]
  %v45 = vld [vmem:[#allocation2 + $0x38] sm:$0xff]
  %v46 = vld [vmem:[#allocation2 + $0x40] sm:$0xff]
  %v47 = vld [vmem:[#allocation2 + $0x48] sm:$0xff]
  %v48 = vld [vmem:[#allocation2 + $0x50] sm:$0xff]
  %v49 = vld [vmem:[#allocation2 + $0x58] sm:$0xff]
  %v50 = vld [vmem:[#allocation2 + $0x60] sm:$0xff]
  %v51 = vld [vmem:[#allocation2 + $0x68] sm:$0xff]
  %v52 = vld [vmem:[#allocation2 + $0x70] sm:$0xff]
  %v53 = vld [vmem:[#allocation2 + $0x78] sm:$0xff]
  %v54 = vld [vmem:[%s0] sm:$0xf]
  %v55 = vld [vmem:[%s0 + $0x4] sm:$0xf]
  %v56 = vld [vmem:[%s0 + $0x8] sm:$0xf]
  %v57 = vld [vmem:[%s0 + $0xc] sm:$0xf]
  %v58 = vld [vmem:[%s0 + $0x10] sm:$0xf]
  %v59 = vld [vmem:[%s0 + $0x14] sm:$0xf]
  %v60 = vld [vmem:[%s0 + $0x18] sm:$0xf]
  %v61 = vld [vmem:[%s0 + $0x1c] sm:$0xf]
  %v62 = vld [vmem:[%s0 + $0x20] sm:$0xf]
  %v63 = vld [vmem:[%s0 + $0x24] sm:$0xf]
  %v64 = vld [vmem:[%s0 + $0x28] sm:$0xf]
  %v65 = vld [vmem:[%s0 + $0x2c] sm:$0xf]
  %v66 = vld [vmem:[%s0 + $0x30] sm:$0xf]
  %v67 = vld [vmem:[%s0 + $0x34] sm:$0xf]
  %v68 = vld [vmem:[%s0 + $0x38] sm:$0xf]
  %v69 = vld [vmem:[%s0 + $0x3c] sm:$0xf]
  %v70 = vld [vmem:[%s1] sm:$0xf]
  %v71 = vld [vmem:[%s1 + $0x4] sm:$0xf]
  %v72 = vld [vmem:[%s1 + $0x8] sm:$0xf]
  %v73 = vld [vmem:[%s1 + $0xc] sm:$0xf]
  %v74 = vld [vmem:[%s1 + $0x10] sm:$0xf]
  %v75 = vld [vmem:[%s1 + $0x14] sm:$0xf]
  %v76 = vld [vmem:[%s1 + $0x18] sm:$0xf]
  %v77 = vld [vmem:[%s1 + $0x1c] sm:$0xf]
  %v78 = vld [vmem:[%s1 + $0x20] sm:$0xf]
  %v79 = vld [vmem:[%s1 + $0x24] sm:$0xf]
  %v80 = vld [vmem:[%s1 + $0x28] sm:$0xf]
  %v81 = vld [vmem:[%s1 + $0x2c] sm:$0xf]
  %v82 = vld [vmem:[%s1 + $0x30] sm:$0xf]
  %v83 = vld [vmem:[%s1 + $0x34] sm:$0xf]
  %v84 = vld [vmem:[%s1 + $0x38] sm:$0xf]
  %v85 = vld [vmem:[%s1 + $0x3c] sm:$0xf]
  %v102 = vunpack.c.l.b16 %v54
  %v103 = vunpack.c.l.b16 %v55
  %v104 = vunpack.c.l.b16 %v56
  %v105 = vunpack.c.l.b16 %v57
  %v106 = vunpack.c.l.b16 %v58
  %v107 = vunpack.c.l.b16 %v59
  %v108 = vunpack.c.l.b16 %v60
  %v109 = vunpack.c.l.b16 %v61
  %v110 = vunpack.c.l.b16 %v62
  %v111 = vunpack.c.l.b16 %v63
  %v112 = vunpack.c.l.b16 %v64
  %v113 = vunpack.c.l.b16 %v65
  %v114 = vunpack.c.l.b16 %v66
  %v115 = vunpack.c.l.b16 %v67
  %v116 = vunpack.c.l.b16 %v68
  %v117 = vunpack.c.l.b16 %v69
  %v118 = vpack.c.b16 %v103, %v102
  %v119 = vpack.c.b16 %v105, %v104
  %v120 = vpack.c.b16 %v107, %v106
  %v121 = vpack.c.b16 %v109, %v108
  %v122 = vpack.c.b16 %v111, %v110
  %v123 = vpack.c.b16 %v113, %v112
  %v124 = vpack.c.b16 %v115, %v114
  %v125 = vpack.c.b16 %v117, %v116
  %v150 = vunpack.c.l.b16 %v70
  %v151 = vunpack.c.l.b16 %v71
  %v152 = vunpack.c.l.b16 %v72
  %v153 = vunpack.c.l.b16 %v73
  %v154 = vunpack.c.l.b16 %v74
  %v155 = vunpack.c.l.b16 %v75
  %v156 = vunpack.c.l.b16 %v76
  %v157 = vunpack.c.l.b16 %v77
  %v158 = vunpack.c.l.b16 %v78
  %v159 = vunpack.c.l.b16 %v79
  %v160 = vunpack.c.l.b16 %v80
  %v161 = vunpack.c.l.b16 %v81
  %v162 = vunpack.c.l.b16 %v82
  %v163 = vunpack.c.l.b16 %v83
  %v164 = vunpack.c.l.b16 %v84
  %v165 = vunpack.c.l.b16 %v85
  %v166 = vpack.c.b16 %v151, %v150
  %v167 = vpack.c.b16 %v153, %v152
  %v168 = vpack.c.b16 %v155, %v154
  %v169 = vpack.c.b16 %v157, %v156
  %v170 = vpack.c.b16 %v159, %v158
  %v171 = vpack.c.b16 %v161, %v160
  %v172 = vpack.c.b16 %v163, %v162
  %v173 = vpack.c.b16 %v165, %v164
  %182 = vmatprep.subr.bf16.mxu0 0
  %183 = vmatpush1.bf16.msra.mxu0 %v166
  %184 = vmatprep.subr.bf16.mxu0 0
  %185 = vmatpush1.bf16.msra.mxu0 %v167
  %186 = vmatprep.subr.bf16.mxu0 0
  %187 = vmatpush1.bf16.msra.mxu0 %v168
  %188 = vmatprep.subr.bf16.mxu0 0
  %189 = vmatpush1.bf16.msra.mxu0 %v169
  %190 = vmatprep.subr.bf16.mxu0 0
  %191 = vmatpush1.bf16.msra.mxu0 %v170
  %192 = vmatprep.subr.bf16.mxu0 0
  %193 = vmatpush1.bf16.msra.mxu0 %v171
  %194 = vmatprep.subr.bf16.mxu0 0
  %195 = vmatpush1.bf16.msra.mxu0 %v172
  %196 = vmatprep.subr.bf16.mxu0 0
  %197 = vmatpush1.bf16.msra.mxu0 %v173
  %198 = vmatprep.subr.bf16.mxu0 0
  %199 = vmatpush1.bf16.msra.mxu0 0
  %200 = vmatprep.subr.bf16.mxu0 0
  %201 = vmatpush1.bf16.msra.mxu0 0
  %202 = vmatprep.subr.bf16.mxu0 0
  %203 = vmatpush1.bf16.msra.mxu0 0
  %204 = vmatprep.subr.bf16.mxu0 0
  %205 = vmatpush1.bf16.msra.mxu0 0
  %206 = vmatprep.subr.bf16.mxu0 0
  %207 = vmatpush1.bf16.msra.mxu0 0
  %208 = vmatprep.subr.bf16.mxu0 0
  %209 = vmatpush1.bf16.msra.mxu0 0
  %210 = vmatprep.subr.bf16.mxu0 0
  %211 = vmatpush1.bf16.msra.mxu0 0
  %212 = vmatprep.subr.bf16.mxu0 0
  %213 = vmatpush1.bf16.msra.mxu0 0
  %214 = vmatprep.mubr.bf16.mxu0 0
  %215 = vmatmul.mubr.bf16.gmra.mrb[0].mxu0 %v118
  %v216 = vpop.f32.mrb[0].mxu0
  %v217 = vadd.f32 0.0, %v216
  %v218 = vpop.f32.mrb[0].mxu0
  %v219 = vpop.f32.mrb[0].mxu0
  %v220 = vadd.f32 0.0, %v219
  %v221 = vpop.f32.mrb[0].mxu0
  %222 = vmatprep.mubr.bf16.mxu0 0
  %223 = vmatmul.mubr.bf16.gmra.mrb[0].mxu0 %v119
  %v224 = vpop.f32.mrb[0].mxu0
  %v225 = vadd.f32 0.0, %v224
  %v226 = vpop.f32.mrb[0].mxu0
  %v227 = vpop.f32.mrb[0].mxu0
  %v228 = vadd.f32 0.0, %v227
  %v229 = vpop.f32.mrb[0].mxu0
  %230 = vmatprep.mubr.bf16.mxu0 0
  %231 = vmatmul.mubr.bf16.gmra.mrb[0].mxu0 %v120
  %v232 = vpop.f32.mrb[0].mxu0
  %v233 = vadd.f32 0.0, %v232
  %v234 = vpop.f32.mrb[0].mxu0
  %v235 = vpop.f32.mrb[0].mxu0
  %v236 = vadd.f32 0.0, %v235
  %v237 = vpop.f32.mrb[0].mxu0
  %238 = vmatprep.mubr.bf16.mxu0 0
  %239 = vmatmul.mubr.bf16.gmra.mrb[0].mxu0 %v121
  %v240 = vpop.f32.mrb[0].mxu0
  %v241 = vadd.f32 0.0, %v240
  %v242 = vpop.f32.mrb[0].mxu0
  %v243 = vpop.f32.mrb[0].mxu0
  %v244 = vadd.f32 0.0, %v243
  %v245 = vpop.f32.mrb[0].mxu0
  %246 = vmatprep.mubr.bf16.mxu0 0
  %247 = vmatmul.mubr.bf16.gmra.mrb[0].mxu0 %v122
  %v248 = vpop.f32.mrb[0].mxu0
  %v249 = vadd.f32 0.0, %v248
  %v250 = vpop.f32.mrb[0].mxu0
  %v251 = vpop.f32.mrb[0].mxu0
  %v252 = vadd.f32 0.0, %v251
  %v253 = vpop.f32.mrb[0].mxu0
  %254 = vmatprep.mubr.bf16.mxu0 0
  %255 = vmatmul.mubr.bf16.gmra.mrb[0].mxu0 %v123
  %v256 = vpop.f32.mrb[0].mxu0
  %v257 = vadd.f32 0.0, %v256
  %v258 = vpop.f32.mrb[0].mxu0
  %v259 = vpop.f32.mrb[0].mxu0
  %v260 = vadd.f32 0.0, %v259
  %v261 = vpop.f32.mrb[0].mxu0
  %262 = vmatprep.mubr.bf16.mxu0 0
  %263 = vmatmul.mubr.bf16.gmra.mrb[0].mxu0 %v124
  %v264 = vpop.f32.mrb[0].mxu0
  %v265 = vadd.f32 0.0, %v264
  %v266 = vpop.f32.mrb[0].mxu0
  %v267 = vpop.f32.mrb[0].mxu0
  %v268 = vadd.f32 0.0, %v267
  %v269 = vpop.f32.mrb[0].mxu0
  %270 = vmatprep.mubr.bf16.mxu0 0
  %271 = vmatmul.mubr.bf16.gmra.mrb[0].mxu0 %v125
  %v272 = vpop.f32.mrb[0].mxu0
  %v273 = vadd.f32 0.0, %v272
  %v274 = vpop.f32.mrb[0].mxu0
  %v275 = vpop.f32.mrb[0].mxu0
  %v276 = vadd.f32 0.0, %v275
  %v277 = vpop.f32.mrb[0].mxu0
  %278 = vdwg.mxu0
  %v279 = vadd.f32 %v38, %v217
  %v280 = vadd.f32 %v39, %v220
  %v281 = vadd.f32 %v40, %v225
  %v282 = vadd.f32 %v41, %v228
  %v283 = vadd.f32 %v42, %v233
  %v284 = vadd.f32 %v43, %v236
  %v285 = vadd.f32 %v44, %v241
  %v286 = vadd.f32 %v45, %v244
  %v287 = vadd.f32 %v46, %v249
  %v288 = vadd.f32 %v47, %v252
  %v289 = vadd.f32 %v48, %v257
  %v290 = vadd.f32 %v49, %v260
  %v291 = vadd.f32 %v50, %v265
  %v292 = vadd.f32 %v51, %v268
  %v293 = vadd.f32 %v52, %v273
  %v294 = vadd.f32 %v53, %v276
  %295 = vst [vmem:[#allocation2] sm:$0xff] %v279
  %296 = vst [vmem:[#allocation2 + $0x8] sm:$0xff] %v280
  %297 = vst [vmem:[#allocation2 + $0x10] sm:$0xff] %v281
  %298 = vst [vmem:[#allocation2 + $0x18] sm:$0xff] %v282
  %299 = vst [vmem:[#allocation2 + $0x20] sm:$0xff] %v283
  %300 = vst [vmem:[#allocation2 + $0x28] sm:$0xff] %v284
  %301 = vst [vmem:[#allocation2 + $0x30] sm:$0xff] %v285
  %302 = vst [vmem:[#allocation2 + $0x38] sm:$0xff] %v286
  %303 = vst [vmem:[#allocation2 + $0x40] sm:$0xff] %v287
  %304 = vst [vmem:[#allocation2 + $0x48] sm:$0xff] %v288
  %305 = vst [vmem:[#allocation2 + $0x50] sm:$0xff] %v289
  %306 = vst [vmem:[#allocation2 + $0x58] sm:$0xff] %v290
  %307 = vst [vmem:[#allocation2 + $0x60] sm:$0xff] %v291
  %308 = vst [vmem:[#allocation2 + $0x68] sm:$0xff] %v292
  %309 = vst [vmem:[#allocation2 + $0x70] sm:$0xff] %v293
  %310 = vst [vmem:[#allocation2 + $0x78] sm:$0xff] %v294
  // Predicated region
  $region22: #{patch_discriminator_forward.5} parent=0 // pred_check
    %p311 = pneg %p18
  $region23: #{patch_discriminator_forward.5} parent=0 // pred_check_branch
    %313 = sbr.rel (%p311) target = $region25
  $region24: #{patch_discriminator_forward.5} parent=0 // pred_region
    %v314 = vld [vmem:[#allocation2] sm:$0xff]
    %v315 = vld [vmem:[#allocation2 + $0x8] sm:$0xff]
    %v316 = vld [vmem:[#allocation2 + $0x10] sm:$0xff]
    %v317 = vld [vmem:[#allocation2 + $0x18] sm:$0xff]
    %v318 = vld [vmem:[#allocation2 + $0x20] sm:$0xff]
    %v319 = vld [vmem:[#allocation2 + $0x28] sm:$0xff]
    %v320 = vld [vmem:[#allocation2 + $0x30] sm:$0xff]
    %v321 = vld [vmem:[#allocation2 + $0x38] sm:$0xff]
    %v322 = vld [vmem:[#allocation2 + $0x40] sm:$0xff]
    %v323 = vld [vmem:[#allocation2 + $0x48] sm:$0xff]
    %v324 = vld [vmem:[#allocation2 + $0x50] sm:$0xff]
    %v325 = vld [vmem:[#allocation2 + $0x58] sm:$0xff]
    %v326 = vld [vmem:[#allocation2 + $0x60] sm:$0xff]
    %v327 = vld [vmem:[#allocation2 + $0x68] sm:$0xff]
    %v328 = vld [vmem:[#allocation2 + $0x70] sm:$0xff]
    %v329 = vld [vmem:[#allocation2 + $0x78] sm:$0xff]
    %v330 = vld [vmem:[%s2] sm:$0x1]
    %v332 = vlaneseq
    %v333 = vshrl.u32 %v332, 7
    %v334 = vsub.s32 0, %v333
    %v335 = vrot.slane %v330, %v334
    %v337 = vmul.f32 %v314, %v335
    %v338 = vmul.f32 %v315, %v335
    %v339 = vmul.f32 %v316, %v335
    %v340 = vmul.f32 %v317, %v335
    %v341 = vmul.f32 %v318, %v335
    %v342 = vmul.f32 %v319, %v335
    %v343 = vmul.f32 %v320, %v335
    %v344 = vmul.f32 %v321, %v335
    %v345 = vmul.f32 %v322, %v335
    %v346 = vmul.f32 %v323, %v335
    %v347 = vmul.f32 %v324, %v335
    %v348 = vmul.f32 %v325, %v335
    %v349 = vmul.f32 %v326, %v335
    %v350 = vmul.f32 %v327, %v335
    %v351 = vmul.f32 %v328, %v335
    %v352 = vmul.f32 %v329, %v335
    %v353 = vld [vmem:[%s3] sm:$0x1]
    %v355 = vlaneseq
    %v356 = vshrl.u32 %v355, 7
    %v357 = vsub.s32 0, %v356
    %v358 = vrot.slane %v353, %v357
    %v360 = vadd.f32 %v337, %v358
    %v361 = vadd.f32 %v338, %v358
    %v362 = vadd.f32 %v339, %v358
    %v363 = vadd.f32 %v340, %v358
    %v364 = vadd.f32 %v341, %v358
    %v365 = vadd.f32 %v342, %v358
    %v366 = vadd.f32 %v343, %v358
    %v367 = vadd.f32 %v344, %v358
    %v368 = vadd.f32 %v345, %v358
    %v369 = vadd.f32 %v346, %v358
    %v370 = vadd.f32 %v347, %v358
    %v371 = vadd.f32 %v348, %v358
    %v372 = vadd.f32 %v349, %v358
    %v373 = vadd.f32 %v350, %v358
    %v374 = vadd.f32 %v351, %v358
    %v375 = vadd.f32 %v352, %v358
    %vm376 = vcmp.ge.f32.partialorder %v360, 0.0
    %vm377 = vcmp.ge.f32.partialorder %v361, 0.0
    %vm378 = vcmp.ge.f32.partialorder %v362, 0.0
    %vm379 = vcmp.ge.f32.partialorder %v363, 0.0
    %vm380 = vcmp.ge.f32.partialorder %v364, 0.0
    %vm381 = vcmp.ge.f32.partialorder %v365, 0.0
    %vm382 = vcmp.ge.f32.partialorder %v366, 0.0
    %vm383 = vcmp.ge.f32.partialorder %v367, 0.0
    %vm384 = vcmp.ge.f32.partialorder %v368, 0.0
    %vm385 = vcmp.ge.f32.partialorder %v369, 0.0
    %vm386 = vcmp.ge.f32.partialorder %v370, 0.0
    %vm387 = vcmp.ge.f32.partialorder %v371, 0.0
    %vm388 = vcmp.ge.f32.partialorder %v372, 0.0
    %vm389 = vcmp.ge.f32.partialorder %v373, 0.0
    %vm390 = vcmp.ge.f32.partialorder %v374, 0.0
    %vm391 = vcmp.ge.f32.partialorder %v375, 0.0
    %v392 = vmul.f32 %v360, 0.2
    %v393 = vmul.f32 %v361, 0.2
    %v394 = vmul.f32 %v362, 0.2
    %v395 = vmul.f32 %v363, 0.2
    %v396 = vmul.f32 %v364, 0.2
    %v397 = vmul.f32 %v365, 0.2
    %v398 = vmul.f32 %v366, 0.2
    %v399 = vmul.f32 %v367, 0.2
    %v400 = vmul.f32 %v368, 0.2
    %v401 = vmul.f32 %v369, 0.2
    %v402 = vmul.f32 %v370, 0.2
    %v403 = vmul.f32 %v371, 0.2
    %v404 = vmul.f32 %v372, 0.2
    %v405 = vmul.f32 %v373, 0.2
    %v406 = vmul.f32 %v374, 0.2
    %v407 = vmul.f32 %v375, 0.2
    %v408 = vsel %vm376, %v360, %v392
    %v409 = vsel %vm377, %v361, %v393
    %v410 = vsel %vm378, %v362, %v394
    %v411 = vsel %vm379, %v363, %v395
    %v412 = vsel %vm380, %v364, %v396
    %v413 = vsel %vm381, %v365, %v397
    %v414 = vsel %vm382, %v366, %v398
    %v415 = vsel %vm383, %v367, %v399
    %v416 = vsel %vm384, %v368, %v400
    %v417 = vsel %vm385, %v369, %v401
    %v418 = vsel %vm386, %v370, %v402
    %v419 = vsel %vm387, %v371, %v403
    %v420 = vsel %vm388, %v372, %v404
    %v421 = vsel %vm389, %v373, %v405
    %v422 = vsel %vm390, %v374, %v406
    %v423 = vsel %vm391, %v375, %v407
    %424 = vst [vmem:[%s4] sm:$0xff] %v408
    %425 = vst [vmem:[%s4 + $0x8] sm:$0xff] %v409
    %426 = vst [vmem:[%s4 + $0x10] sm:$0xff] %v410
    %427 = vst [vmem:[%s4 + $0x18] sm:$0xff] %v411
    %428 = vst [vmem:[%s4 + $0x20] sm:$0xff] %v412
    %429 = vst [vmem:[%s4 + $0x28] sm:$0xff] %v413
    %430 = vst [vmem:[%s4 + $0x30] sm:$0xff] %v414
    %431 = vst [vmem:[%s4 + $0x38] sm:$0xff] %v415
    %432 = vst [vmem:[%s4 + $0x40] sm:$0xff] %v416
    %433 = vst [vmem:[%s4 + $0x48] sm:$0xff] %v417
    %434 = vst [vmem:[%s4 + $0x50] sm:$0xff] %v418
    %435 = vst [vmem:[%s4 + $0x58] sm:$0xff] %v419
    %436 = vst [vmem:[%s4 + $0x60] sm:$0xff] %v420
    %437 = vst [vmem:[%s4 + $0x68] sm:$0xff] %v421
    %438 = vst [vmem:[%s4 + $0x70] sm:$0xff] %v422
    %439 = vst [vmem:[%s4 + $0x78] sm:$0xff] %v423
  $region25: #{patch_discriminator_forward.5} parent=0 // pred_fallthru
    _
  // Predicated region
  $region26: #{patch_discriminator_forward.5} parent=0 // pred_check
    _
  $region27: #{patch_discriminator_forward.5} parent=0 // pred_check_branch
    %441 = sbr.rel (0) target = $region29
  $region28: #{patch_discriminator_forward.5} parent=0 // pred_region
    _
  $region29: #{patch_discriminator_forward.5} parent=0 // pred_fallthru
    _
  // Predicated region
  $region30: #{patch_discriminator_forward.5} parent=0 // pred_check
    _
  $region31: #{patch_discriminator_forward.5} parent=0 // pred_check_branch
    %443 = sbr.rel (0) target = $region33
  $region32: #{patch_discriminator_forward.5} parent=0 // pred_region
    _
  $region33: #{patch_discriminator_forward.5} parent=0 // pred_fallthru
    _

// kernel: patch_discriminator_forward.6
$region0: #{patch_discriminator_forward.6}
  #allocation0 [shape = 'u32[]', space=smem, size = 0x4, offset = 0x4, fixed_abs, tag = 'smem constant byte address 0x4 - core index']
  #allocation1 [shape = 'u32[144,128]{1,0:T(1,128)}', space=vmem, size = 0x12000, scoped, tag = 'internal scratch']
  #allocation2 [shape = 'f32[32,128]{1,0:T(8,128)}', space=vmem, size = 0x4000, scoped, tag = 'scratch operand']
  %s0 = inlined_call_operand.vmem [shape: bf16[32,1536], index: 0, kind: input, shape index: {}]
  %s1 = inlined_call_operand.vmem [shape: bf16[1536,128], index: 1, kind: input, shape index: {}]
  %s2 = inlined_call_operand.vmem [shape: f32[1,128], index: 2, kind: input, shape index: {}]
  %s3 = inlined_call_operand.vmem [shape: f32[1,128], index: 3, kind: input, shape index: {}]
  %s4 = inlined_call_operand.vmem [shape: f32[32,128], index: 4, kind: output, shape index: {}]
  %s5 = sld [smem:[#allocation0]]
  $region80: #{patch_discriminator_forward.6} parent=0
    _
  %s7 = ssub.s32 1, %s5
  %s8 = scalar_select 0, %s7, %s5
  $region1: #{patch_discriminator_forward.6} parent=0
    #allocation3 [shape = 'u8[65536]{0}', space=vmem, size = 0x10000, scoped, tag = 'input window, operand 0']
    loop: start=0, step=1, limit=5
    $region2: #{patch_discriminator_forward.6} parent=1 // loop_pre_header
      _
    $region3: #{patch_discriminator_forward.6} parent=1 // loop_header
      %s10 = sphi 0, %s14
      %p11 = scmp.ge.s32.totalorder %s10, 5
      %s17 = sphi 0, %s36
      %s18 = sphi 0, %s32
      %s19 = sphi 0, %s28
      %s20 = sphi 0, %s17
      %s21 = sphi 0, %s18
      %s22 = sphi 0, %s19
      %s23 = sphi 0, %s20
      %s24 = sphi 0, %s21
      %s25 = sphi 0, %s22
      %s41 = sphi 0, %s43
      %s44 = sphi 0, %s41
      %s45 = sphi 0, %s44
      %s61 = sphi 0, %s45
      %s69 = sphi 0, %s71
      %s72 = sphi 0, %s69
      %s73 = sphi 0, %s72
      %s89 = sphi 0, %s73
      %s95 = sphi 0, %s97
      %s98 = sphi 0, %s95
      %s99 = sphi 0, %s98
      %s115 = sphi 0, %s99
      %s121 = sphi 0, %s123
      %s124 = sphi 0, %s121
      %s125 = sphi 0, %s124
      %s141 = sphi 0, %s125
      %s149 = sphi 0, %s151
      %s152 = sphi 0, %s149
      %s153 = sphi 0, %s152
      %s169 = sphi 0, %s153
    $region4: #{patch_discriminator_forward.6} parent=1 // loop_header_branch
      %13 = sbr.rel (%p11) target = $region8
    $region5: #{patch_discriminator_forward.6} parent=1 // loop_body
      %s15 = ssub.s32 %s10, 1
      %s16 = ssub.s32 %s10, 2
      %s26 = sadd.s32 1, %s19
      %p27 = scmp.ge.s32.totalorder %s26, 3
      %s28 = scalar_select %p27, 0, %s26
      %s29 = sadd.s32 1, %s18
      %s30 = scalar_select %p27, %s29, %s18
      %p31 = scmp.ge.s32.totalorder %s30, 1
      %s32 = scalar_select %p31, 0, %s30
      %s33 = sadd.s32 1, %s17
      %s34 = scalar_select %p31, %s33, %s17
      %p35 = scmp.ge.s32.totalorder %s34, 1
      %s36 = scalar_select %p35, 0, %s34
      %s37 = ssub.s32 %s17, %s36
      %s38 = ssub.s32 %s19, %s28
      %s39 = sor.u32 %s37, %s38
      %p40 = scmp.eq.s32.totalorder %s39, 0
      %s42 = sadd.s32 %s41, 1
      %s43 = scalar_select %p40, %s41, %s42
      %p46 = pneg %p40
      %p47 = scmp.eq.s32.totalorder %s10, 2
      %p48 = por %p46, %p47
      %p49 = scmp.ne.s32.totalorder %s41, %s44
      %p50 = scmp.eq.s32.totalorder %s10, 0
      %p51 = por %p49, %p50
      %p52 = scmp.ne.s32.totalorder %s41, %s44
      %p53 = scmp.eq.s32.totalorder %s15, 2
      %p54 = por %p52, %p53
      %p55 = scmp.ne.s32.totalorder %s44, %s45
      %p56 = scmp.eq.s32.totalorder %s15, 0
      %p57 = por %p55, %p56
      %p58 = scmp.ne.s32.totalorder %s44, %s45
      %p59 = scmp.eq.s32.totalorder %s16, 2
      %p60 = por %p58, %p59
      %p62 = scmp.ne.s32.totalorder %s45, %s61
      %p63 = scmp.eq.s32.totalorder %s16, 0
      %p64 = por %p62, %p63
      %s65 = ssub.s32 %s19, %s28
      %s66 = ssub.s32 %s18, %s32
      %s67 = sor.u32 %s65, %s66
      %p68 = scmp.eq.s32.totalorder %s67, 0
      %s70 = sadd.s32 %s69, 1
      %s71 = scalar_select %p68, %s69, %s70
      %p74 = pneg %p68
      %p75 = scmp.eq.s32.totalorder %s10, 2
      %p76 = por %p74, %p75
      %p77 = scmp.ne.s32.totalorder %s69, %s72
      %p78 = scmp.eq.s32.totalorder %s10, 0
      %p79 = por %p77, %p78
      %p80 = scmp.ne.s32.totalorder %s69, %s72
      %p81 = scmp.eq.s32.totalorder %s15, 2
      %p82 = por %p80, %p81
      %p83 = scmp.ne.s32.totalorder %s72, %s73
      %p84 = scmp.eq.s32.totalorder %s15, 0
      %p85 = por %p83, %p84
      %p86 = scmp.ne.s32.totalorder %s72, %s73
      %p87 = scmp.eq.s32.totalorder %s16, 2
      %p88 = por %p86, %p87
      %p90 = scmp.ne.s32.totalorder %s73, %s89
      %p91 = scmp.eq.s32.totalorder %s16, 0
      %p92 = por %p90, %p91
      %s93 = ssub.s32 %s18, %s32
      %p94 = scmp.eq.s32.totalorder %s93, 0
      %s96 = sadd.s32 %s95, 1
      %s97 = scalar_select %p94, %s95, %s96
      %p100 = pneg %p94
      %p101 = scmp.eq.s32.totalorder %s10, 2
      %p102 = por %p100, %p101
      %p103 = scmp.ne.s32.totalorder %s95, %s98
      %p104 = scmp.eq.s32.totalorder %s10, 0
      %p105 = por %p103, %p104
      %p106 = scmp.ne.s32.totalorder %s95, %s98
      %p107 = scmp.eq.s32.totalorder %s15, 2
      %p108 = por %p106, %p107
      %p109 = scmp.ne.s32.totalorder %s98, %s99
      %p110 = scmp.eq.s32.totalorder %s15, 0
      %p111 = por %p109, %p110
      %p112 = scmp.ne.s32.totalorder %s98, %s99
      %p113 = scmp.eq.s32.totalorder %s16, 2
      %p114 = por %p112, %p113
      %p116 = scmp.ne.s32.totalorder %s99, %s115
      %p117 = scmp.eq.s32.totalorder %s16, 0
      %p118 = por %p116, %p117
      %s119 = ssub.s32 %s18, %s32
      %p120 = scmp.eq.s32.totalorder %s119, 0
      %s122 = sadd.s32 %s121, 1
      %s123 = scalar_select %p120, %s121, %s122
      %p126 = pneg %p120
      %p127 = scmp.eq.s32.totalorder %s10, 2
      %p128 = por %p126, %p127
      %p129 = scmp.ne.s32.totalorder %s121, %s124
      %p130 = scmp.eq.s32.totalorder %s10, 0
      %p131 = por %p129, %p130
      %p132 = scmp.ne.s32.totalorder %s121, %s124
      %p133 = scmp.eq.s32.totalorder %s15, 2
      %p134 = por %p132, %p133
      %p135 = scmp.ne.s32.totalorder %s124, %s125
      %p136 = scmp.eq.s32.totalorder %s15, 0
      %p137 = por %p135, %p136
      %p138 = scmp.ne.s32.totalorder %s124, %s125
      %p139 = scmp.eq.s32.totalorder %s16, 2
      %p140 = por %p138, %p139
      %p142 = scmp.ne.s32.totalorder %s125, %s141
      %p143 = scmp.eq.s32.totalorder %s16, 0
      %p144 = por %p142, %p143
      %s145 = ssub.s32 %s17, %s36
      %s146 = ssub.s32 %s18, %s32
      %s147 = sor.u32 %s145, %s146
      %p148 = scmp.eq.s32.totalorder %s147, 0
      %s150 = sadd.s32 %s149, 1
      %s151 = scalar_select %p148, %s149, %s150
      %p154 = pneg %p148
      %p155 = scmp.eq.s32.totalorder %s10, 2
      %p156 = por %p154, %p155
      %p157 = scmp.ne.s32.totalorder %s149, %s152
      %p158 = scmp.eq.s32.totalorder %s10, 0
      %p159 = por %p157, %p158
      %p160 = scmp.ne.s32.totalorder %s149, %s152
      %p161 = scmp.eq.s32.totalorder %s15, 2
      %p162 = por %p160, %p161
      %p163 = scmp.ne.s32.totalorder %s152, %s153
      %p164 = scmp.eq.s32.totalorder %s15, 0
      %p165 = por %p163, %p164
      %p166 = scmp.ne.s32.totalorder %s152, %s153
      %p167 = scmp.eq.s32.totalorder %s16, 2
      %p168 = por %p166, %p167
      %p170 = scmp.ne.s32.totalorder %s153, %s169
      %p171 = scmp.eq.s32.totalorder %s16, 0
      %p172 = por %p170, %p171
      %p173 = scmp.le.s32.totalorder 1, %s10
      %p174 = scmp.lt.s32.totalorder %s10, 4
      %p175 = pnand %p173, %p174
      %p176 = pneg %p175
      // Predicated region
      $region9: #{patch_discriminator_forward.6} parent=5 // pred_check
        _
      $region10: #{patch_discriminator_forward.6} parent=5 // pred_check_branch
        %178 = sbr.rel (%p175) target = $region12
      $region11: #{patch_discriminator_forward.6} parent=5 // pred_region
        %s179 = ssub.s32 %s10, 1
        // Predicated region
        $region13: #{patch_discriminator_forward.6} parent=11 // pred_check
          %p180 = pneg %p111
        $region14: #{patch_discriminator_forward.6} parent=11 // pred_check_branch
          %182 = sbr.rel (%p180) target = $region16
        $region15: #{patch_discriminator_forward.6} parent=11 // pred_region
          %p183 = scmp.lt.s32.totalorder %s21, 0
          %s184 = scalar_select %p183, %s21, 0
          %s185 = scalar_lea.vmem %s2, %s184
        $region16: #{patch_discriminator_forward.6} parent=11 // pred_fallthru
          _
        // Predicated region
        $region17: #{patch_discriminator_forward.6} parent=11 // pred_check
          %p186 = pneg %p137
        $region18: #{patch_discriminator_forward.6} parent=11 // pred_check_branch
          %188 = sbr.rel (%p186) target = $region20
        $region19: #{patch_discriminator_forward.6} parent=11 // pred_region
          %p189 = scmp.lt.s32.totalorder %s21, 0
          %s190 = scalar_select %p189, %s21, 0
          %s191 = scalar_lea.vmem %s3, %s190
        $region20: #{patch_discriminator_forward.6} parent=11 // pred_fallthru
          _
      $region12: #{patch_discriminator_forward.6} parent=5 // pred_fallthru
        _
      %p192 = scmp.lt.s32.totalorder %s10, 3
      // Predicated region
      $region21: #{patch_discriminator_forward.6} parent=5 // pred_check
        %p193 = pneg %p192
      $region22: #{patch_discriminator_forward.6} parent=5 // pred_check_branch
        %195 = sbr.rel (%p193) target = $region24
      $region23: #{patch_discriminator_forward.6} parent=5 // pred_region
        // Predicated region
        $region25: #{patch_discriminator_forward.6} parent=23 // pred_check
          %p196 = pneg %p51
        $region26: #{patch_discriminator_forward.6} parent=23 // pred_check_branch
          %198 = sbr.rel (%p196) target = $region28
        $region27: #{patch_discriminator_forward.6} parent=23 // pred_region
          %s199 = sand.u32 %s41, 1
          %s200 = sand.u32 %s41, 1
          %s201 = smul.addr %s200, 64
          %s202 = scalar_lea.vmem [#allocation3], %s201
          %s203 = smul.u32 4, %s17
          %s204 = smul.u32 4, %s19
          %s205 = smul.addr %s203, 12
          %s206 = sadd.s32 %s204, %s205
          %s207 = smul.addr %s206, 4
          %s208 = scalar_lea.vmem %s0, %s207
          // Predicated region
          $region29: #{patch_discriminator_forward.6} parent=27 // pred_check
            _
          $region30: #{patch_discriminator_forward.6} parent=27 // pred_check_branch
            %210 = sbr.rel (0) target = $region32
          $region31: #{patch_discriminator_forward.6} parent=27 // pred_region
            // Predicated region
            $region33: #{patch_discriminator_forward.6} parent=31 // pred_check
              _
            $region34: #{patch_discriminator_forward.6} parent=31 // pred_check_branch
              %212 = sbr.rel (0) target = $region36
            $region35: #{patch_discriminator_forward.6} parent=31 // pred_region
              loop: start=0, step=1, limit=1
              $region37: #{patch_discriminator_forward.6} parent=35 // loop_pre_header
                _
              $region38: #{patch_discriminator_forward.6} parent=35 // loop_header
                %s214 = sphi 0, %s218
                %p215 = scmp.ge.s32.totalorder %s214, 1
                %s219 = sphi %s208, %s208
                %s220 = sphi %s202, %s202
              $region39: #{patch_discriminator_forward.6} parent=35 // loop_header_branch
                %217 = sbr.rel (%p215) target = $region43
              $region40: #{patch_discriminator_forward.6} parent=35 // loop_body
                %v221 = vld [vmem:[%s219] sm:$0xff]
                %222 = vst [vmem:[%s220] sm:$0xff] %v221
                %v223 = vld [vmem:[%s219 + $0x8] sm:$0xff]
                %224 = vst [vmem:[%s220 + $0x8] sm:$0xff] %v223
                %v225 = vld [vmem:[%s219 + $0x30] sm:$0xff]
                %226 = vst [vmem:[%s220 + $0x10] sm:$0xff] %v225
                %v227 = vld [vmem:[%s219 + $0x38] sm:$0xff]
                %228 = vst [vmem:[%s220 + $0x18] sm:$0xff] %v227
                %v229 = vld [vmem:[%s219 + $0x60] sm:$0xff]
                %230 = vst [vmem:[%s220 + $0x20] sm:$0xff] %v229
                %v231 = vld [vmem:[%s219 + $0x68] sm:$0xff]
                %232 = vst [vmem:[%s220 + $0x28] sm:$0xff] %v231
                %v233 = vld [vmem:[%s219 + $0x90] sm:$0xff]
                %234 = vst [vmem:[%s220 + $0x30] sm:$0xff] %v233
                %v235 = vld [vmem:[%s219 + $0x98] sm:$0xff]
                %236 = vst [vmem:[%s220 + $0x38] sm:$0xff] %v235
              $region41: #{patch_discriminator_forward.6} parent=35 // loop_footer
                %s218 = sadd.s32 1, %s214
              $region42: #{patch_discriminator_forward.6} parent=35 // loop_footer_branch
                %213 = sbr.rel target = $region38
              $region43: #{patch_discriminator_forward.6} parent=35 // loop_exit
                _
            $region36: #{patch_discriminator_forward.6} parent=31 // pred_fallthru
              _
            // Predicated region
            $region44: #{patch_discriminator_forward.6} parent=31 // pred_check
              _
            $region45: #{patch_discriminator_forward.6} parent=31 // pred_check_branch
              %238 = sbr.rel target = $region47
            $region46: #{patch_discriminator_forward.6} parent=31 // pred_region
              _
            $region47: #{patch_discriminator_forward.6} parent=31 // pred_fallthru
              _
          $region32: #{patch_discriminator_forward.6} parent=27 // pred_fallthru
            _
          %239 = vnop
        $region28: #{patch_discriminator_forward.6} parent=23 // pred_fallthru
          _
        // Predicated region
        $region48: #{patch_discriminator_forward.6} parent=23 // pred_check
          %p240 = pneg %p79
        $region49: #{patch_discriminator_forward.6} parent=23 // pred_check_branch
          %242 = sbr.rel (%p240) target = $region51
        $region50: #{patch_discriminator_forward.6} parent=23 // pred_region
          %s243 = smul.u32 64, %s19
          %p244 = scmp.lt.s32.totalorder %s243, 191
          %s245 = scalar_select %p244, %s243, 191
          %p246 = scmp.lt.s32.totalorder %s18, 0
          %s247 = scalar_select %p246, %s18, 0
          %s248 = sadd.s32 %s247, %s245
          %s249 = smul.addr %s248, 4
          %s250 = scalar_lea.vmem %s1, %s249
          %s251 = smul.u32 64, %s19
        $region51: #{patch_discriminator_forward.6} parent=23 // pred_fallthru
          _
      $region24: #{patch_discriminator_forward.6} parent=5 // pred_fallthru
        _
      %p252 = scmp.le.s32.totalorder 1, %s10
      %p253 = scmp.lt.s32.totalorder %s10, 4
      %p254 = pnand %p252, %p253
      %p255 = pneg %p254
      // Predicated region
      $region52: #{patch_discriminator_forward.6} parent=5 // pred_check
        _
      $region53: #{patch_discriminator_forward.6} parent=5 // pred_check_branch
        %257 = sbr.rel (%p254) target = $region55
      $region54: #{patch_discriminator_forward.6} parent=5 // pred_region
        %s258 = ssub.s32 %s10, 1
        %s259 = sand.u32 %s44, 1
        %s260 = sand.u32 %s44, 1
        %s261 = smul.addr %s260, 64
        %s262 = scalar_lea.vmem [#allocation3], %s261
        // Predicated region
        $region56: #{patch_discriminator_forward.6} parent=54 // pred_check
          %p263 = pneg %p57
        $region57: #{patch_discriminator_forward.6} parent=54 // pred_check_branch
          %265 = sbr.rel (%p263) target = $region59
        $region58: #{patch_discriminator_forward.6} parent=54 // pred_region
          _
        $region59: #{patch_discriminator_forward.6} parent=54 // pred_fallthru
          _
        %s266 = sand.u32 %s44, 1
        %s267 = sand.u32 %s44, 1
        %s268 = smul.addr %s267, 64
        %s269 = scalar_lea.vmem [#allocation3], %s268
        %p270 = pneg %p57
        %p271 = pneg %p54
        %s272 = smul.u32 64, %s22
        %p273 = scmp.lt.s32.totalorder %s272, 191
        %s274 = scalar_select %p273, %s272, 191
        %p275 = scmp.lt.s32.totalorder %s21, 0
        %s276 = scalar_select %p275, %s21, 0
        %s277 = sadd.s32 %s276, %s274
        %s278 = smul.addr %s277, 4
        %s279 = scalar_lea.vmem %s1, %s278
        %p280 = pneg %p85
        %p281 = pneg %p82
        %p282 = scmp.lt.s32.totalorder %s21, 0
        %s283 = scalar_select %p282, %s21, 0
        %s284 = scalar_lea.vmem %s2, %s283
        %p285 = pneg %p111
        %p286 = pneg %p108
        %p287 = scmp.lt.s32.totalorder %s21, 0
        %s288 = scalar_select %p287, %s21, 0
        %s289 = scalar_lea.vmem %s3, %s288
        %p290 = pneg %p137
        %p291 = pneg %p134
        %p292 = pneg %p165
        %p293 = pneg %p162
        %s294 = smul.u32 4, %s20
        %p295 = scmp.lt.s32.totalorder %s294, 3
        %s296 = scalar_select %p295, %s294, 3
        %p297 = scmp.lt.s32.totalorder %s21, 0
        %s298 = scalar_select %p297, %s21, 0
        %s299 = sadd.s32 %s298, %s296
        %s300 = smul.addr %s299, 8
        %s301 = scalar_lea.vmem %s4, %s300
        %s302 = smul.u32 4, %s20
        %s303 = smul.u32 4, %s22
        %s304 = smul.u32 64, %s22
        %p305 = scmp.lt.s32.totalorder %s304, 191
        %s306 = scalar_select %p305, %s304, 191
        %p307 = scmp.lt.s32.totalorder %s21, 0
        %s308 = scalar_select %p307, %s21, 0
        %s309 = sadd.s32 %s308, %s306
        %s310 = smul.addr %s309, 4
        %s311 = scalar_lea.vmem %s1, %s310
        %s312 = smul.u32 64, %s22
        %p313 = scmp.lt.s32.totalorder %s21, 0
        %s314 = scalar_select %p313, %s21, 0
        %s315 = scalar_lea.vmem %s2, %s314
        %p316 = scmp.lt.s32.totalorder %s21, 0
        %s317 = scalar_select %p316, %s21, 0
        %s318 = scalar_lea.vmem %s3, %s317
        %s319 = smul.u32 4, %s20
        %p320 = scmp.lt.s32.totalorder %s319, 3
        %s321 = scalar_select %p320, %s319, 3
        %p322 = scmp.lt.s32.totalorder %s21, 0
        %s323 = scalar_select %p322, %s21, 0
        %s324 = sadd.s32 %s323, %s321
        %s325 = smul.addr %s324, 8
        %s326 = scalar_lea.vmem %s4, %s325
        %s327 = smul.u32 4, %s20
        %p329 = scmp.eq.s32.totalorder %s22, 0
        // Predicated region
        $region60: #{patch_discriminator_forward.6} parent=54 // pred_check
          %p330 = pneg %p329
        $region61: #{patch_discriminator_forward.6} parent=54 // pred_check_branch
          %332 = sbr.rel (%p330) target = $region63
        $region62: #{patch_discriminator_forward.6} parent=54 // pred_region
          %333 = vst [vmem:[#allocation2] sm:$0xff] 0.0
          %334 = vst [vmem:[#allocation2 + $0x8] sm:$0xff] 0.0
          %335 = vst [vmem:[#allocation2 + $0x10] sm:$0xff] 0.0
          %336 = vst [vmem:[#allocation2 + $0x18] sm:$0xff] 0.0
        $region63: #{patch_discriminator_forward.6} parent=54 // pred_fallthru
          _
        %v337 = vld [vmem:[#allocation2] sm:$0xff]
        %v338 = vld [vmem:[#allocation2 + $0x8] sm:$0xff]
        %v339 = vld [vmem:[#allocation2 + $0x10] sm:$0xff]
        %v340 = vld [vmem:[#allocation2 + $0x18] sm:$0xff]
        %v341 = vld [vmem:[%s262] sm:$0xff]
        %v342 = vld [vmem:[%s262 + $0x8] sm:$0xff]
        %v343 = vld [vmem:[%s262 + $0x10] sm:$0xff]
        %v344 = vld [vmem:[%s262 + $0x18] sm:$0xff]
        %v345 = vld [vmem:[%s262 + $0x20] sm:$0xff]
        %v346 = vld [vmem:[%s262 + $0x28] sm:$0xff]
        %v347 = vld [vmem:[%s262 + $0x30] sm:$0xff]
        %v348 = vld [vmem:[%s262 + $0x38] sm:$0xff]
        %v349 = vld [vmem:[%s311] sm:$0xf]
        %v350 = vld [vmem:[%s311 + $0x4] sm:$0xf]
        %v351 = vld [vmem:[%s311 + $0x8] sm:$0xf]
        %v352 = vld [vmem:[%s311 + $0xc] sm:$0xf]
        %v353 = vld [vmem:[%s311 + $0x10] sm:$0xf]
        %v354 = vld [vmem:[%s311 + $0x14] sm:$0xf]
        %v355 = vld [vmem:[%s311 + $0x18] sm:$0xf]
        %v356 = vld [vmem:[%s311 + $0x1c] sm:$0xf]
        %v357 = vld [vmem:[%s311 + $0x20] sm:$0xf]
        %v358 = vld [vmem:[%s311 + $0x24] sm:$0xf]
        %v359 = vld [vmem:[%s311 + $0x28] sm:$0xf]
        %v360 = vld [vmem:[%s311 + $0x2c] sm:$0xf]
        %v361 = vld [vmem:[%s311 + $0x30] sm:$0xf]
        %v362 = vld [vmem:[%s311 + $0x34] sm:$0xf]
        %v363 = vld [vmem:[%s311 + $0x38] sm:$0xf]
        %v364 = vld [vmem:[%s311 + $0x3c] sm:$0xf]
        %v365 = vld [vmem:[%s311 + $0x40] sm:$0xf]
        %v366 = vld [vmem:[%s311 + $0x44] sm:$0xf]
        %v367 = vld [vmem:[%s311 + $0x48] sm:$0xf]
        %v368 = vld [vmem:[%s311 + $0x4c] sm:$0xf]
        %v369 = vld [vmem:[%s311 + $0x50] sm:$0xf]
        %v370 = vld [vmem:[%s311 + $0x54] sm:$0xf]
        %v371 = vld [vmem:[%s311 + $0x58] sm:$0xf]
        %v372 = vld [vmem:[%s311 + $0x5c] sm:$0xf]
        %v373 = vld [vmem:[%s311 + $0x60] sm:$0xf]
        %v374 = vld [vmem:[%s311 + $0x64] sm:$0xf]
        %v375 = vld [vmem:[%s311 + $0x68] sm:$0xf]
        %v376 = vld [vmem:[%s311 + $0x6c] sm:$0xf]
        %v377 = vld [vmem:[%s311 + $0x70] sm:$0xf]
        %v378 = vld [vmem:[%s311 + $0x74] sm:$0xf]
        %v379 = vld [vmem:[%s311 + $0x78] sm:$0xf]
        %v380 = vld [vmem:[%s311 + $0x7c] sm:$0xf]
        %v381 = vld [vmem:[%s311 + $0x80] sm:$0xf]
        %v382 = vld [vmem:[%s311 + $0x84] sm:$0xf]
        %v383 = vld [vmem:[%s311 + $0x88] sm:$0xf]
        %v384 = vld [vmem:[%s311 + $0x8c] sm:$0xf]
        %v385 = vld [vmem:[%s311 + $0x90] sm:$0xf]
        %v386 = vld [vmem:[%s311 + $0x94] sm:$0xf]
        %v387 = vld [vmem:[%s311 + $0x98] sm:$0xf]
        %v388 = vld [vmem:[%s311 + $0x9c] sm:$0xf]
        %v389 = vld [vmem:[%s311 + $0xa0] sm:$0xf]
        %v390 = vld [vmem:[%s311 + $0xa4] sm:$0xf]
        %v391 = vld [vmem:[%s311 + $0xa8] sm:$0xf]
        %v392 = vld [vmem:[%s311 + $0xac] sm:$0xf]
        %v393 = vld [vmem:[%s311 + $0xb0] sm:$0xf]
        %v394 = vld [vmem:[%s311 + $0xb4] sm:$0xf]
        %v395 = vld [vmem:[%s311 + $0xb8] sm:$0xf]
        %v396 = vld [vmem:[%s311 + $0xbc] sm:$0xf]
        %v397 = vld [vmem:[%s311 + $0xc0] sm:$0xf]
        %v398 = vld [vmem:[%s311 + $0xc4] sm:$0xf]
        %v399 = vld [vmem:[%s311 + $0xc8] sm:$0xf]
        %v400 = vld [vmem:[%s311 + $0xcc] sm:$0xf]
        %v401 = vld [vmem:[%s311 + $0xd0] sm:$0xf]
        %v402 = vld [vmem:[%s311 + $0xd4] sm:$0xf]
        %v403 = vld [vmem:[%s311 + $0xd8] sm:$0xf]
        %v404 = vld [vmem:[%s311 + $0xdc] sm:$0xf]
        %v405 = vld [vmem:[%s311 + $0xe0] sm:$0xf]
        %v406 = vld [vmem:[%s311 + $0xe4] sm:$0xf]
        %v407 = vld [vmem:[%s311 + $0xe8] sm:$0xf]
        %v408 = vld [vmem:[%s311 + $0xec] sm:$0xf]
        %v409 = vld [vmem:[%s311 + $0xf0] sm:$0xf]
        %v410 = vld [vmem:[%s311 + $0xf4] sm:$0xf]
        %v411 = vld [vmem:[%s311 + $0xf8] sm:$0xf]
        %v412 = vld [vmem:[%s311 + $0xfc] sm:$0xf]
        %v421 = vunpack.c.l.b16 %v341
        %v422 = vunpack.c.h.b16 %v341
        %v423 = vunpack.c.l.b16 %v342
        %v424 = vunpack.c.h.b16 %v342
        %v425 = vunpack.c.l.b16 %v343
        %v426 = vunpack.c.h.b16 %v343
        %v427 = vunpack.c.l.b16 %v344
        %v428 = vunpack.c.h.b16 %v344
        %v429 = vunpack.c.l.b16 %v345
        %v430 = vunpack.c.h.b16 %v345
        %v431 = vunpack.c.l.b16 %v346
        %v432 = vunpack.c.h.b16 %v346
        %v433 = vunpack.c.l.b16 %v347
        %v434 = vunpack.c.h.b16 %v347
        %v435 = vunpack.c.l.b16 %v348
        %v436 = vunpack.c.h.b16 %v348
        %v437 = vpack.c.b16 %v425, %v421
        %v438 = vpack.c.b16 %v426, %v422
        %v439 = vpack.c.b16 %v427, %v423
        %v440 = vpack.c.b16 %v428, %v424
        %v441 = vpack.c.b16 %v433, %v429
        %v442 = vpack.c.b16 %v434, %v430
        %v443 = vpack.c.b16 %v435, %v431
        %v444 = vpack.c.b16 %v436, %v432
        %v517 = vunpack.c.l.b16 %v349
        %v518 = vunpack.c.l.b16 %v350
        %v519 = vunpack.c.l.b16 %v351
        %v520 = vunpack.c.l.b16 %v352
        %v521 = vunpack.c.l.b16 %v353
        %v522 = vunpack.c.l.b16 %v354
        %v523 = vunpack.c.l.b16 %v355
        %v524 = vunpack.c.l.b16 %v356
        %v525 = vunpack.c.l.b16 %v357
        %v526 = vunpack.c.l.b16 %v358
        %v527 = vunpack.c.l.b16 %v359
        %v528 = vunpack.c.l.b16 %v360
        %v529 = vunpack.c.l.b16 %v361
        %v530 = vunpack.c.l.b16 %v362
        %v531 = vunpack.c.l.b16 %v363
        %v532 = vunpack.c.l.b16 %v364
        %v533 = vunpack.c.l.b16 %v365
        %v534 = vunpack.c.l.b16 %v366
        %v535 = vunpack.c.l.b16 %v367
        %v536 = vunpack.c.l.b16 %v368
        %v537 = vunpack.c.l.b16 %v369
        %v538 = vunpack.c.l.b16 %v370
        %v539 = vunpack.c.l.b16 %v371
        %v540 = vunpack.c.l.b16 %v372
        %v541 = vunpack.c.l.b16 %v373
        %v542 = vunpack.c.l.b16 %v374
        %v543 = vunpack.c.l.b16 %v375
        %v544 = vunpack.c.l.b16 %v376
        %v545 = vunpack.c.l.b16 %v377
        %v546 = vunpack.c.l.b16 %v378
        %v547 = vunpack.c.l.b16 %v379
        %v548 = vunpack.c.l.b16 %v380
        %v549 = vunpack.c.l.b16 %v381
        %v550 = vunpack.c.l.b16 %v382
        %v551 = vunpack.c.l.b16 %v383
        %v552 = vunpack.c.l.b16 %v384
        %v553 = vunpack.c.l.b16 %v385
        %v554 = vunpack.c.l.b16 %v386
        %v555 = vunpack.c.l.b16 %v387
        %v556 = vunpack.c.l.b16 %v388
        %v557 = vunpack.c.l.b16 %v389
        %v558 = vunpack.c.l.b16 %v390
        %v559 = vunpack.c.l.b16 %v391
        %v560 = vunpack.c.l.b16 %v392
        %v561 = vunpack.c.l.b16 %v393
        %v562 = vunpack.c.l.b16 %v394
        %v563 = vunpack.c.l.b16 %v395
        %v564 = vunpack.c.l.b16 %v396
        %v565 = vunpack.c.l.b16 %v397
        %v566 = vunpack.c.l.b16 %v398
        %v567 = vunpack.c.l.b16 %v399
        %v568 = vunpack.c.l.b16 %v400
        %v569 = vunpack.c.l.b16 %v401
        %v570 = vunpack.c.l.b16 %v402
        %v571 = vunpack.c.l.b16 %v403
        %v572 = vunpack.c.l.b16 %v404
        %v573 = vunpack.c.l.b16 %v405
        %v574 = vunpack.c.l.b16 %v406
        %v575 = vunpack.c.l.b16 %v407
        %v576 = vunpack.c.l.b16 %v408
        %v577 = vunpack.c.l.b16 %v409
        %v578 = vunpack.c.l.b16 %v410
        %v579 = vunpack.c.l.b16 %v411
        %v580 = vunpack.c.l.b16 %v412
        %v581 = vpack.c.b16 %v518, %v517
        %v582 = vpack.c.b16 %v520, %v519
        %v583 = vpack.c.b16 %v522, %v521
        %v584 = vpack.c.b16 %v524, %v523
        %v585 = vpack.c.b16 %v526, %v525
        %v586 = vpack.c.b16 %v528, %v527
        %v587 = vpack.c.b16 %v530, %v529
        %v588 = vpack.c.b16 %v532, %v531
        %v589 = vpack.c.b16 %v534, %v533
        %v590 = vpack.c.b16 %v536, %v535
        %v591 = vpack.c.b16 %v538, %v537
        %v592 = vpack.c.b16 %v540, %v539
        %v593 = vpack.c.b16 %v542, %v541
        %v594 = vpack.c.b16 %v544, %v543
        %v595 = vpack.c.b16 %v546, %v545
        %v596 = vpack.c.b16 %v548, %v547
        %v597 = vpack.c.b16 %v550, %v549
        %v598 = vpack.c.b16 %v552, %v551
        %v599 = vpack.c.b16 %v554, %v553
        %v600 = vpack.c.b16 %v556, %v555
        %v601 = vpack.c.b16 %v558, %v557
        %v602 = vpack.c.b16 %v560, %v559
        %v603 = vpack.c.b16 %v562, %v561
        %v604 = vpack.c.b16 %v564, %v563
        %v605 = vpack.c.b16 %v566, %v565
        %v606 = vpack.c.b16 %v568, %v567
        %v607 = vpack.c.b16 %v570, %v569
        %v608 = vpack.c.b16 %v572, %v571
        %v609 = vpack.c.b16 %v574, %v573
        %v610 = vpack.c.b16 %v576, %v575
        %v611 = vpack.c.b16 %v578, %v577
        %v612 = vpack.c.b16 %v580, %v579
        %645 = vmatprep.subr.bf16.mxu0 0
        %646 = vmatpush1.bf16.msra.mxu0 %v581
        %647 = vmatprep.subr.bf16.mxu0 0
        %648 = vmatpush1.bf16.msra.mxu0 %v582
        %649 = vmatprep.subr.bf16.mxu0 0
        %650 = vmatpush1.bf16.msra.mxu0 %v583
        %651 = vmatprep.subr.bf16.mxu0 0
        %652 = vmatpush1.bf16.msra.mxu0 %v584
        %653 = vmatprep.subr.bf16.mxu0 0
        %654 = vmatpush1.bf16.msra.mxu0 %v585
        %655 = vmatprep.subr.bf16.mxu0 0
        %656 = vmatpush1.bf16.msra.mxu0 %v586
        %657 = vmatprep.subr.bf16.mxu0 0
        %658 = vmatpush1.bf16.msra.mxu0 %v587
        %659 = vmatprep.subr.bf16.mxu0 0
        %660 = vmatpush1.bf16.msra.mxu0 %v588
        %661 = vmatprep.subr.bf16.mxu0 0
        %662 = vmatpush1.bf16.msra.mxu0 %v589
        %663 = vmatprep.subr.bf16.mxu0 0
        %664 = vmatpush1.bf16.msra.mxu0 %v590
        %665 = vmatprep.subr.bf16.mxu0 0
        %666 = vmatpush1.bf16.msra.mxu0 %v591
        %667 = vmatprep.subr.bf16.mxu0 0
        %668 = vmatpush1.bf16.msra.mxu0 %v592
        %669 = vmatprep.subr.bf16.mxu0 0
        %670 = vmatpush1.bf16.msra.mxu0 %v593
        %671 = vmatprep.subr.bf16.mxu0 0
        %672 = vmatpush1.bf16.msra.mxu0 %v594
        %673 = vmatprep.subr.bf16.mxu0 0
        %674 = vmatpush1.bf16.msra.mxu0 %v595
        %675 = vmatprep.subr.bf16.mxu0 0
        %676 = vmatpush1.bf16.msra.mxu0 %v596
        %677 = vmatprep.mubr.bf16.mxu0 %v438
        %678 = vmatmul.mubr.bf16.gmra.mrb[0].mxu0 %v437
        %v679 = vpop.f32.mrb[0].mxu0
        %v680 = vadd.f32 0.0, %v679
        %v681 = vpop.f32.mrb[0].mxu0
        %v682 = vpop.f32.mrb[0].mxu0
        %v683 = vadd.f32 0.0, %v682
        %v684 = vpop.f32.mrb[0].mxu0
        %685 = vmatprep.mubr.bf16.mxu0 %v442
        %686 = vmatmul.mubr.bf16.gmra.mrb[0].mxu0 %v441
        %v687 = vpop.f32.mrb[0].mxu0
        %v688 = vadd.f32 0.0, %v687
        %v689 = vpop.f32.mrb[0].mxu0
        %v690 = vpop.f32.mrb[0].mxu0
        %v691 = vadd.f32 0.0, %v690
        %v692 = vpop.f32.mrb[0].mxu0
        %693 = vdwg.mxu0
        %694 = vmatprep.subr.bf16.mxu0 0
        %695 = vmatpush1.bf16.msra.mxu0 %v597
        %696 = vmatprep.subr.bf16.mxu0 0
        %697 = vmatpush1.bf16.msra.mxu0 %v598
        %698 = vmatprep.subr.bf16.mxu0 0
        %699 = vmatpush1.bf16.msra.mxu0 %v599
        %700 = vmatprep.subr.bf16.mxu0 0
        %701 = vmatpush1.bf16.msra.mxu0 %v600
        %702 = vmatprep.subr.bf16.mxu0 0
        %703 = vmatpush1.bf16.msra.mxu0 %v601
        %704 = vmatprep.subr.bf16.mxu0 0
        %705 = vmatpush1.bf16.msra.mxu0 %v602
        %706 = vmatprep.subr.bf16.mxu0 0
        %707 = vmatpush1.bf16.msra.mxu0 %v603
        %708 = vmatprep.subr.bf16.mxu0 0
        %709 = vmatpush1.bf16.msra.mxu0 %v604
        %710 = vmatprep.subr.bf16.mxu0 0
        %711 = vmatpush1.bf16.msra.mxu0 %v605
        %712 = vmatprep.subr.bf16.mxu0 0
        %713 = vmatpush1.bf16.msra.mxu0 %v606
        %714 = vmatprep.subr.bf16.mxu0 0
        %715 = vmatpush1.bf16.msra.mxu0 %v607
        %716 = vmatprep.subr.bf16.mxu0 0
        %717 = vmatpush1.bf16.msra.mxu0 %v608
        %718 = vmatprep.subr.bf16.mxu0 0
        %719 = vmatpush1.bf16.msra.mxu0 %v609
        %720 = vmatprep.subr.bf16.mxu0 0
        %721 = vmatpush1.bf16.msra.mxu0 %v610
        %722 = vmatprep.subr.bf16.mxu0 0
        %723 = vmatpush1.bf16.msra.mxu0 %v611
        %724 = vmatprep.subr.bf16.mxu0 0
        %725 = vmatpush1.bf16.msra.mxu0 %v612
        %726 = vmatprep.mubr.bf16.mxu0 %v440
        %727 = vmatmul.mubr.bf16.gmra.mrb[0].mxu0 %v439
        %v728 = vpop.f32.mrb[0].mxu0
        %v729 = vadd.f32 %v680, %v728
        %v730 = vpop.f32.mrb[0].mxu0
        %v731 = vpop.f32.mrb[0].mxu0
        %v732 = vadd.f32 %v683, %v731
        %v733 = vpop.f32.mrb[0].mxu0
        %734 = vmatprep.mubr.bf16.mxu0 %v444
        %735 = vmatmul.mubr.bf16.gmra.mrb[0].mxu0 %v443
        %v736 = vpop.f32.mrb[0].mxu0
        %v737 = vadd.f32 %v688, %v736
        %v738 = vpop.f32.mrb[0].mxu0
        %v739 = vpop.f32.mrb[0].mxu0
        %v740 = vadd.f32 %v691, %v739
        %v741 = vpop.f32.mrb[0].mxu0
        %742 = vdwg.mxu0
        %v743 = vadd.f32 %v337, %v729
        %v744 = vadd.f32 %v338, %v732
        %v745 = vadd.f32 %v339, %v737
        %v746 = vadd.f32 %v340, %v740
        %747 = vst [vmem:[#allocation2] sm:$0xff] %v743
        %748 = vst [vmem:[#allocation2 + $0x8] sm:$0xff] %v744
        %749 = vst [vmem:[#allocation2 + $0x10] sm:$0xff] %v745
        %750 = vst [vmem:[#allocation2 + $0x18] sm:$0xff] %v746
        %p751 = scmp.eq.s32.totalorder %s22, 2
        // Predicated region
        $region64: #{patch_discriminator_forward.6} parent=54 // pred_check
          %p752 = pneg %p751
        $region65: #{patch_discriminator_forward.6} parent=54 // pred_check_branch
          %754 = sbr.rel (%p752) target = $region67
        $region66: #{patch_discriminator_forward.6} parent=54 // pred_region
          %v755 = vld [vmem:[#allocation2] sm:$0xff]
          %v756 = vld [vmem:[#allocation2 + $0x8] sm:$0xff]
          %v757 = vld [vmem:[#allocation2 + $0x10] sm:$0xff]
          %v758 = vld [vmem:[#allocation2 + $0x18] sm:$0xff]
          %v759 = vld [vmem:[%s315] sm:$0x1]
          %v761 = vlaneseq
          %v762 = vshrl.u32 %v761, 7
          %v763 = vsub.s32 0, %v762
          %v764 = vrot.slane %v759, %v763
          %v766 = vmul.f32 %v755, %v764
          %v767 = vmul.f32 %v756, %v764
          %v768 = vmul.f32 %v757, %v764
          %v769 = vmul.f32 %v758, %v764
          %v770 = vld [vmem:[%s318] sm:$0x1]
          %v772 = vlaneseq
          %v773 = vshrl.u32 %v772, 7
          %v774 = vsub.s32 0, %v773
          %v775 = vrot.slane %v770, %v774
          %v777 = vadd.f32 %v766, %v775
          %v778 = vadd.f32 %v767, %v775
          %v779 = vadd.f32 %v768, %v775
          %v780 = vadd.f32 %v769, %v775
          %vm781 = vcmp.ge.f32.partialorder %v777, 0.0
          %vm782 = vcmp.ge.f32.partialorder %v778, 0.0
          %vm783 = vcmp.ge.f32.partialorder %v779, 0.0
          %vm784 = vcmp.ge.f32.partialorder %v780, 0.0
          %v785 = vmul.f32 %v777, 0.2
          %v786 = vmul.f32 %v778, 0.2
          %v787 = vmul.f32 %v779, 0.2
          %v788 = vmul.f32 %v780, 0.2
          %v789 = vsel %vm781, %v777, %v785
          %v790 = vsel %vm782, %v778, %v786
          %v791 = vsel %vm783, %v779, %v787
          %v792 = vsel %vm784, %v780, %v788
          %793 = vst [vmem:[%s326] sm:$0xff] %v789
          %794 = vst [vmem:[%s326 + $0x8] sm:$0xff] %v790
          %795 = vst [vmem:[%s326 + $0x10] sm:$0xff] %v791
          %796 = vst [vmem:[%s326 + $0x18] sm:$0xff] %v792
        $region67: #{patch_discriminator_forward.6} parent=54 // pred_fallthru
          _
        %s797 = smul.u32 4, %s20
        %p798 = scmp.lt.s32.totalorder %s797, 3
        %s799 = scalar_select %p798, %s797, 3
        %p800 = scmp.lt.s32.totalorder %s21, 0
        %s801 = scalar_select %p800, %s21, 0
        %s802 = sadd.s32 %s801, %s799
        %s803 = smul.addr %s802, 8
        %s804 = scalar_lea.vmem %s4, %s803
        // Predicated region
        $region68: #{patch_discriminator_forward.6} parent=54 // pred_check
          %p805 = pneg %p162
        $region69: #{patch_discriminator_forward.6} parent=54 // pred_check_branch
          %807 = sbr.rel (%p805) target = $region71
        $region70: #{patch_discriminator_forward.6} parent=54 // pred_region
          %s808 = smul.u32 4, %s20
        $region71: #{patch_discriminator_forward.6} parent=54 // pred_fallthru
          _
        // Predicated region
        $region72: #{patch_discriminator_forward.6} parent=54 // pred_check
          %p809 = pneg %p162
        $region73: #{patch_discriminator_forward.6} parent=54 // pred_check_branch
          %811 = sbr.rel (%p809) target = $region75
        $region74: #{patch_discriminator_forward.6} parent=54 // pred_region
          %s812 = smul.u32 4, %s20
          %p813 = scmp.lt.s32.totalorder %s812, 3
          %s814 = scalar_select %p813, %s812, 3
          %p815 = scmp.lt.s32.totalorder %s21, 0
          %s816 = scalar_select %p815, %s21, 0
          %s817 = sadd.s32 %s816, %s814
          %s818 = smul.addr %s817, 8
          %s819 = scalar_lea.vmem %s4, %s818
        $region75: #{patch_discriminator_forward.6} parent=54 // pred_fallthru
          _
      $region55: #{patch_discriminator_forward.6} parent=5 // pred_fallthru
        _
      %p820 = scmp.le.s32.totalorder 2, %s10
      // Predicated region
      $region76: #{patch_discriminator_forward.6} parent=5 // pred_check
        %p821 = pneg %p820
      $region77: #{patch_discriminator_forward.6} parent=5 // pred_check_branch
        %823 = sbr.rel (%p821) target = $region79
      $region78: #{patch_discriminator_forward.6} parent=5 // pred_region
        %s824 = ssub.s32 %s10, 2
      $region79: #{patch_discriminator_forward.6} parent=5 // pred_fallthru
        _
    $region6: #{patch_discriminator_forward.6} parent=1 // loop_footer
      %s14 = sadd.s32 1, %s10
    $region7: #{patch_discriminator_forward.6} parent=1 // loop_footer_branch
      %9 = sbr.rel target = $region3
    $region8: #{patch_discriminator_forward.6} parent=1 // loop_exit
      _

// kernel: patch_discriminator_forward.7
$region0: #{patch_discriminator_forward.7}
  #allocation0 [shape = 'u32[]', space=smem, size = 0x4, offset = 0x4, fixed_abs, tag = 'smem constant byte address 0x4 - core index']
  #allocation1 [shape = 'u32[144,128]{1,0:T(1,128)}', space=vmem, size = 0x12000, scoped, tag = 'internal scratch']
  #allocation2 [shape = 'f32[16,256]{1,0:T(8,128)}', space=vmem, size = 0x4000, scoped, tag = 'scratch operand']
  %s0 = inlined_call_operand.vmem [shape: bf16[16,2048], index: 0, kind: input, shape index: {}]
  %s1 = inlined_call_operand.vmem [shape: bf16[2048,256], index: 1, kind: input, shape index: {}]
  %s2 = inlined_call_operand.vmem [shape: f32[1,256], index: 2, kind: input, shape index: {}]
  %s3 = inlined_call_operand.vmem [shape: f32[1,256], index: 3, kind: input, shape index: {}]
  %s4 = inlined_call_operand.vmem [shape: f32[16,256], index: 4, kind: output, shape index: {}]
  %s5 = sld [smem:[#allocation0]]
  $region80: #{patch_discriminator_forward.7} parent=0
    _
  %s7 = ssub.s32 1, %s5
  %s8 = scalar_select 0, %s7, %s5
  $region1: #{patch_discriminator_forward.7} parent=0
    #allocation3 [shape = 'u8[32768]{0}', space=vmem, size = 0x8000, scoped, tag = 'input window, operand 0']
    loop: start=0, step=1, limit=6
    $region2: #{patch_discriminator_forward.7} parent=1 // loop_pre_header
      _
    $region3: #{patch_discriminator_forward.7} parent=1 // loop_header
      %s10 = sphi 0, %s14
      %p11 = scmp.ge.s32.totalorder %s10, 6
      %s17 = sphi 0, %s36
      %s18 = sphi 0, %s32
      %s19 = sphi 0, %s28
      %s20 = sphi 0, %s17
      %s21 = sphi 0, %s18
      %s22 = sphi 0, %s19
      %s23 = sphi 0, %s20
      %s24 = sphi 0, %s21
      %s25 = sphi 0, %s22
      %s41 = sphi 0, %s43
      %s44 = sphi 0, %s41
      %s45 = sphi 0, %s44
      %s61 = sphi 0, %s45
      %s69 = sphi 0, %s71
      %s72 = sphi 0, %s69
      %s73 = sphi 0, %s72
      %s89 = sphi 0, %s73
      %s95 = sphi 0, %s97
      %s98 = sphi 0, %s95
      %s99 = sphi 0, %s98
      %s115 = sphi 0, %s99
      %s121 = sphi 0, %s123
      %s124 = sphi 0, %s121
      %s125 = sphi 0, %s124
      %s141 = sphi 0, %s125
      %s149 = sphi 0, %s151
      %s152 = sphi 0, %s149
      %s153 = sphi 0, %s152
      %s169 = sphi 0, %s153
    $region4: #{patch_discriminator_forward.7} parent=1 // loop_header_branch
      %13 = sbr.rel (%p11) target = $region8
    $region5: #{patch_discriminator_forward.7} parent=1 // loop_body
      %s15 = ssub.s32 %s10, 1
      %s16 = ssub.s32 %s10, 2
      %s26 = sadd.s32 1, %s19
      %p27 = scmp.ge.s32.totalorder %s26, 4
      %s28 = scalar_select %p27, 0, %s26
      %s29 = sadd.s32 1, %s18
      %s30 = scalar_select %p27, %s29, %s18
      %p31 = scmp.ge.s32.totalorder %s30, 1
      %s32 = scalar_select %p31, 0, %s30
      %s33 = sadd.s32 1, %s17
      %s34 = scalar_select %p31, %s33, %s17
      %p35 = scmp.ge.s32.totalorder %s34, 1
      %s36 = scalar_select %p35, 0, %s34
      %s37 = ssub.s32 %s17, %s36
      %s38 = ssub.s32 %s19, %s28
      %s39 = sor.u32 %s37, %s38
      %p40 = scmp.eq.s32.totalorder %s39, 0
      %s42 = sadd.s32 %s41, 1
      %s43 = scalar_select %p40, %s41, %s42
      %p46 = pneg %p40
      %p47 = scmp.eq.s32.totalorder %s10, 3
      %p48 = por %p46, %p47
      %p49 = scmp.ne.s32.totalorder %s41, %s44
      %p50 = scmp.eq.s32.totalorder %s10, 0
      %p51 = por %p49, %p50
      %p52 = scmp.ne.s32.totalorder %s41, %s44
      %p53 = scmp.eq.s32.totalorder %s15, 3
      %p54 = por %p52, %p53
      %p55 = scmp.ne.s32.totalorder %s44, %s45
      %p56 = scmp.eq.s32.totalorder %s15, 0
      %p57 = por %p55, %p56
      %p58 = scmp.ne.s32.totalorder %s44, %s45
      %p59 = scmp.eq.s32.totalorder %s16, 3
      %p60 = por %p58, %p59
      %p62 = scmp.ne.s32.totalorder %s45, %s61
      %p63 = scmp.eq.s32.totalorder %s16, 0
      %p64 = por %p62, %p63
      %s65 = ssub.s32 %s19, %s28
      %s66 = ssub.s32 %s18, %s32
      %s67 = sor.u32 %s65, %s66
      %p68 = scmp.eq.s32.totalorder %s67, 0
      %s70 = sadd.s32 %s69, 1
      %s71 = scalar_select %p68, %s69, %s70
      %p74 = pneg %p68
      %p75 = scmp.eq.s32.totalorder %s10, 3
      %p76 = por %p74, %p75
      %p77 = scmp.ne.s32.totalorder %s69, %s72
      %p78 = scmp.eq.s32.totalorder %s10, 0
      %p79 = por %p77, %p78
      %p80 = scmp.ne.s32.totalorder %s69, %s72
      %p81 = scmp.eq.s32.totalorder %s15, 3
      %p82 = por %p80, %p81
      %p83 = scmp.ne.s32.totalorder %s72, %s73
      %p84 = scmp.eq.s32.totalorder %s15, 0
      %p85 = por %p83, %p84
      %p86 = scmp.ne.s32.totalorder %s72, %s73
      %p87 = scmp.eq.s32.totalorder %s16, 3
      %p88 = por %p86, %p87
      %p90 = scmp.ne.s32.totalorder %s73, %s89
      %p91 = scmp.eq.s32.totalorder %s16, 0
      %p92 = por %p90, %p91
      %s93 = ssub.s32 %s18, %s32
      %p94 = scmp.eq.s32.totalorder %s93, 0
      %s96 = sadd.s32 %s95, 1
      %s97 = scalar_select %p94, %s95, %s96
      %p100 = pneg %p94
      %p101 = scmp.eq.s32.totalorder %s10, 3
      %p102 = por %p100, %p101
      %p103 = scmp.ne.s32.totalorder %s95, %s98
      %p104 = scmp.eq.s32.totalorder %s10, 0
      %p105 = por %p103, %p104
      %p106 = scmp.ne.s32.totalorder %s95, %s98
      %p107 = scmp.eq.s32.totalorder %s15, 3
      %p108 = por %p106, %p107
      %p109 = scmp.ne.s32.totalorder %s98, %s99
      %p110 = scmp.eq.s32.totalorder %s15, 0
      %p111 = por %p109, %p110
      %p112 = scmp.ne.s32.totalorder %s98, %s99
      %p113 = scmp.eq.s32.totalorder %s16, 3
      %p114 = por %p112, %p113
      %p116 = scmp.ne.s32.totalorder %s99, %s115
      %p117 = scmp.eq.s32.totalorder %s16, 0
      %p118 = por %p116, %p117
      %s119 = ssub.s32 %s18, %s32
      %p120 = scmp.eq.s32.totalorder %s119, 0
      %s122 = sadd.s32 %s121, 1
      %s123 = scalar_select %p120, %s121, %s122
      %p126 = pneg %p120
      %p127 = scmp.eq.s32.totalorder %s10, 3
      %p128 = por %p126, %p127
      %p129 = scmp.ne.s32.totalorder %s121, %s124
      %p130 = scmp.eq.s32.totalorder %s10, 0
      %p131 = por %p129, %p130
      %p132 = scmp.ne.s32.totalorder %s121, %s124
      %p133 = scmp.eq.s32.totalorder %s15, 3
      %p134 = por %p132, %p133
      %p135 = scmp.ne.s32.totalorder %s124, %s125
      %p136 = scmp.eq.s32.totalorder %s15, 0
      %p137 = por %p135, %p136
      %p138 = scmp.ne.s32.totalorder %s124, %s125
      %p139 = scmp.eq.s32.totalorder %s16, 3
      %p140 = por %p138, %p139
      %p142 = scmp.ne.s32.totalorder %s125, %s141
      %p143 = scmp.eq.s32.totalorder %s16, 0
      %p144 = por %p142, %p143
      %s145 = ssub.s32 %s17, %s36
      %s146 = ssub.s32 %s18, %s32
      %s147 = sor.u32 %s145, %s146
      %p148 = scmp.eq.s32.totalorder %s147, 0
      %s150 = sadd.s32 %s149, 1
      %s151 = scalar_select %p148, %s149, %s150
      %p154 = pneg %p148
      %p155 = scmp.eq.s32.totalorder %s10, 3
      %p156 = por %p154, %p155
      %p157 = scmp.ne.s32.totalorder %s149, %s152
      %p158 = scmp.eq.s32.totalorder %s10, 0
      %p159 = por %p157, %p158
      %p160 = scmp.ne.s32.totalorder %s149, %s152
      %p161 = scmp.eq.s32.totalorder %s15, 3
      %p162 = por %p160, %p161
      %p163 = scmp.ne.s32.totalorder %s152, %s153
      %p164 = scmp.eq.s32.totalorder %s15, 0
      %p165 = por %p163, %p164
      %p166 = scmp.ne.s32.totalorder %s152, %s153
      %p167 = scmp.eq.s32.totalorder %s16, 3
      %p168 = por %p166, %p167
      %p170 = scmp.ne.s32.totalorder %s153, %s169
      %p171 = scmp.eq.s32.totalorder %s16, 0
      %p172 = por %p170, %p171
      %p173 = scmp.le.s32.totalorder 1, %s10
      %p174 = scmp.lt.s32.totalorder %s10, 5
      %p175 = pnand %p173, %p174
      %p176 = pneg %p175
      // Predicated region
      $region9: #{patch_discriminator_forward.7} parent=5 // pred_check
        _
      $region10: #{patch_discriminator_forward.7} parent=5 // pred_check_branch
        %178 = sbr.rel (%p175) target = $region12
      $region11: #{patch_discriminator_forward.7} parent=5 // pred_region
        %s179 = ssub.s32 %s10, 1
        // Predicated region
        $region13: #{patch_discriminator_forward.7} parent=11 // pred_check
          %p180 = pneg %p111
        $region14: #{patch_discriminator_forward.7} parent=11 // pred_check_branch
          %182 = sbr.rel (%p180) target = $region16
        $region15: #{patch_discriminator_forward.7} parent=11 // pred_region
          %s183 = smul.u32 2, %s21
          %p184 = scmp.lt.s32.totalorder %s183, 1
          %s185 = scalar_select %p184, %s183, 1
          %s186 = scalar_lea.vmem %s2, %s185
          %s187 = smul.u32 2, %s21
        $region16: #{patch_discriminator_forward.7} parent=11 // pred_fallthru
          _
        // Predicated region
        $region17: #{patch_discriminator_forward.7} parent=11 // pred_check
          %p188 = pneg %p137
        $region18: #{patch_discriminator_forward.7} parent=11 // pred_check_branch
          %190 = sbr.rel (%p188) target = $region20
        $region19: #{patch_discriminator_forward.7} parent=11 // pred_region
          %s191 = smul.u32 2, %s21
          %p192 = scmp.lt.s32.totalorder %s191, 1
          %s193 = scalar_select %p192, %s191, 1
          %s194 = scalar_lea.vmem %s3, %s193
          %s195 = smul.u32 2, %s21
        $region20: #{patch_discriminator_forward.7} parent=11 // pred_fallthru
          _
      $region12: #{patch_discriminator_forward.7} parent=5 // pred_fallthru
        _
      %p196 = scmp.lt.s32.totalorder %s10, 4
      // Predicated region
      $region21: #{patch_discriminator_forward.7} parent=5 // pred_check
        %p197 = pneg %p196
      $region22: #{patch_discriminator_forward.7} parent=5 // pred_check_branch
        %199 = sbr.rel (%p197) target = $region24
      $region23: #{patch_discriminator_forward.7} parent=5 // pred_region
        // Predicated region
        $region25: #{patch_discriminator_forward.7} parent=23 // pred_check
          %p200 = pneg %p51
        $region26: #{patch_discriminator_forward.7} parent=23 // pred_check_branch
          %202 = sbr.rel (%p200) target = $region28
        $region27: #{patch_discriminator_forward.7} parent=23 // pred_region
          %s203 = sand.u32 %s41, 1
          %s204 = sand.u32 %s41, 1
          %s205 = smul.addr %s204, 32
          %s206 = scalar_lea.vmem [#allocation3], %s205
          %s207 = smul.u32 2, %s17
          %s208 = smul.u32 4, %s19
          %s209 = smul.addr %s207, 16
          %s210 = sadd.s32 %s208, %s209
          %s211 = smul.addr %s210, 4
          %s212 = scalar_lea.vmem %s0, %s211
          // Predicated region
          $region29: #{patch_discriminator_forward.7} parent=27 // pred_check
            _
          $region30: #{patch_discriminator_forward.7} parent=27 // pred_check_branch
            %214 = sbr.rel (0) target = $region32
          $region31: #{patch_discriminator_forward.7} parent=27 // pred_region
            // Predicated region
            $region33: #{patch_discriminator_forward.7} parent=31 // pred_check
              _
            $region34: #{patch_discriminator_forward.7} parent=31 // pred_check_branch
              %216 = sbr.rel (0) target = $region36
            $region35: #{patch_discriminator_forward.7} parent=31 // pred_region
              loop: start=0, step=1, limit=1
              $region37: #{patch_discriminator_forward.7} parent=35 // loop_pre_header
                _
              $region38: #{patch_discriminator_forward.7} parent=35 // loop_header
                %s218 = sphi 0, %s222
                %p219 = scmp.ge.s32.totalorder %s218, 1
                %s223 = sphi %s212, %s212
                %s224 = sphi %s206, %s206
              $region39: #{patch_discriminator_forward.7} parent=35 // loop_header_branch
                %221 = sbr.rel (%p219) target = $region43
              $region40: #{patch_discriminator_forward.7} parent=35 // loop_body
                %v225 = vld [vmem:[%s223] sm:$0xff]
                %226 = vst [vmem:[%s224] sm:$0xff] %v225
                %v227 = vld [vmem:[%s223 + $0x8] sm:$0xff]
                %228 = vst [vmem:[%s224 + $0x8] sm:$0xff] %v227
                %v229 = vld [vmem:[%s223 + $0x40] sm:$0xff]
                %230 = vst [vmem:[%s224 + $0x10] sm:$0xff] %v229
                %v231 = vld [vmem:[%s223 + $0x48] sm:$0xff]
                %232 = vst [vmem:[%s224 + $0x18] sm:$0xff] %v231
              $region41: #{patch_discriminator_forward.7} parent=35 // loop_footer
                %s222 = sadd.s32 1, %s218
              $region42: #{patch_discriminator_forward.7} parent=35 // loop_footer_branch
                %217 = sbr.rel target = $region38
              $region43: #{patch_discriminator_forward.7} parent=35 // loop_exit
                _
            $region36: #{patch_discriminator_forward.7} parent=31 // pred_fallthru
              _
            // Predicated region
            $region44: #{patch_discriminator_forward.7} parent=31 // pred_check
              _
            $region45: #{patch_discriminator_forward.7} parent=31 // pred_check_branch
              %234 = sbr.rel target = $region47
            $region46: #{patch_discriminator_forward.7} parent=31 // pred_region
              _
            $region47: #{patch_discriminator_forward.7} parent=31 // pred_fallthru
              _
          $region32: #{patch_discriminator_forward.7} parent=27 // pred_fallthru
            _
          %235 = vnop
        $region28: #{patch_discriminator_forward.7} parent=23 // pred_fallthru
          _
        // Predicated region
        $region48: #{patch_discriminator_forward.7} parent=23 // pred_check
          %p236 = pneg %p79
        $region49: #{patch_discriminator_forward.7} parent=23 // pred_check_branch
          %238 = sbr.rel (%p236) target = $region51
        $region50: #{patch_discriminator_forward.7} parent=23 // pred_region
          %s239 = smul.u32 64, %s19
          %s240 = smul.u32 2, %s18
          %p241 = scmp.lt.s32.totalorder %s239, 255
          %s242 = scalar_select %p241, %s239, 255
          %p243 = scmp.lt.s32.totalorder %s240, 1
          %s244 = scalar_select %p243, %s240, 1
          %s245 = smul.addr %s242, 2
          %s246 = sadd.s32 %s244, %s245
          %s247 = smul.addr %s246, 4
          %s248 = scalar_lea.vmem %s1, %s247
          %s249 = smul.u32 64, %s19
          %s250 = smul.u32 2, %s18
        $region51: #{patch_discriminator_forward.7} parent=23 // pred_fallthru
          _
      $region24: #{patch_discriminator_forward.7} parent=5 // pred_fallthru
        _
      %p251 = scmp.le.s32.totalorder 1, %s10
      %p252 = scmp.lt.s32.totalorder %s10, 5
      %p253 = pnand %p251, %p252
      %p254 = pneg %p253
      // Predicated region
      $region52: #{patch_discriminator_forward.7} parent=5 // pred_check
        _
      $region53: #{patch_discriminator_forward.7} parent=5 // pred_check_branch
        %256 = sbr.rel (%p253) target = $region55
      $region54: #{patch_discriminator_forward.7} parent=5 // pred_region
        %s257 = ssub.s32 %s10, 1
        %s258 = sand.u32 %s44, 1
        %s259 = sand.u32 %s44, 1
        %s260 = smul.addr %s259, 32
        %s261 = scalar_lea.vmem [#allocation3], %s260
        // Predicated region
        $region56: #{patch_discriminator_forward.7} parent=54 // pred_check
          %p262 = pneg %p57
        $region57: #{patch_discriminator_forward.7} parent=54 // pred_check_branch
          %264 = sbr.rel (%p262) target = $region59
        $region58: #{patch_discriminator_forward.7} parent=54 // pred_region
          _
        $region59: #{patch_discriminator_forward.7} parent=54 // pred_fallthru
          _
        %s265 = sand.u32 %s44, 1
        %s266 = sand.u32 %s44, 1
        %s267 = smul.addr %s266, 32
        %s268 = scalar_lea.vmem [#allocation3], %s267
        %p269 = pneg %p57
        %p270 = pneg %p54
        %s271 = smul.u32 64, %s22
        %s272 = smul.u32 2, %s21
        %p273 = scmp.lt.s32.totalorder %s271, 255
        %s274 = scalar_select %p273, %s271, 255
        %p275 = scmp.lt.s32.totalorder %s272, 1
        %s276 = scalar_select %p275, %s272, 1
        %s277 = smul.addr %s274, 2
        %s278 = sadd.s32 %s276, %s277
        %s279 = smul.addr %s278, 4
        %s280 = scalar_lea.vmem %s1, %s279
        %p281 = pneg %p85
        %p282 = pneg %p82
        %s283 = smul.u32 2, %s21
        %p284 = scmp.lt.s32.totalorder %s283, 1
        %s285 = scalar_select %p284, %s283, 1
        %s286 = scalar_lea.vmem %s2, %s285
        %p287 = pneg %p111
        %p288 = pneg %p108
        %s289 = smul.u32 2, %s21
        %p290 = scmp.lt.s32.totalorder %s289, 1
        %s291 = scalar_select %p290, %s289, 1
        %s292 = scalar_lea.vmem %s3, %s291
        %p293 = pneg %p137
        %p294 = pneg %p134
        %p295 = pneg %p165
        %p296 = pneg %p162
        %s297 = smul.u32 2, %s20
        %s298 = smul.u32 2, %s21
        %p299 = scmp.lt.s32.totalorder %s297, 1
        %s300 = scalar_select %p299, %s297, 1
        %p301 = scmp.lt.s32.totalorder %s298, 1
        %s302 = scalar_select %p301, %s298, 1
        %s303 = smul.addr %s300, 2
        %s304 = sadd.s32 %s302, %s303
        %s305 = smul.addr %s304, 8
        %s306 = scalar_lea.vmem %s4, %s305
        %s307 = smul.u32 2, %s20
        %s308 = smul.u32 4, %s22
        %s309 = smul.u32 64, %s22
        %s310 = smul.u32 2, %s21
        %p311 = scmp.lt.s32.totalorder %s309, 255
        %s312 = scalar_select %p311, %s309, 255
        %p313 = scmp.lt.s32.totalorder %s310, 1
        %s314 = scalar_select %p313, %s310, 1
        %s315 = smul.addr %s312, 2
        %s316 = sadd.s32 %s314, %s315
        %s317 = smul.addr %s316, 4
        %s318 = scalar_lea.vmem %s1, %s317
        %s319 = smul.u32 64, %s22
        %s320 = smul.u32 2, %s21
        %s321 = smul.u32 2, %s21
        %p322 = scmp.lt.s32.totalorder %s321, 1
        %s323 = scalar_select %p322, %s321, 1
        %s324 = scalar_lea.vmem %s2, %s323
        %s325 = smul.u32 2, %s21
        %s326 = smul.u32 2, %s21
        %p327 = scmp.lt.s32.totalorder %s326, 1
        %s328 = scalar_select %p327, %s326, 1
        %s329 = scalar_lea.vmem %s3, %s328
        %s330 = smul.u32 2, %s21
        %s331 = smul.u32 2, %s20
        %s332 = smul.u32 2, %s21
        %p333 = scmp.lt.s32.totalorder %s331, 1
        %s334 = scalar_select %p333, %s331, 1
        %p335 = scmp.lt.s32.totalorder %s332, 1
        %s336 = scalar_select %p335, %s332, 1
        %s337 = smul.addr %s334, 2
        %s338 = sadd.s32 %s336, %s337
        %s339 = smul.addr %s338, 8
        %s340 = scalar_lea.vmem %s4, %s339
        %s341 = smul.u32 2, %s20
        %s342 = smul.u32 2, %s21
        %p343 = scmp.eq.s32.totalorder %s22, 0
        // Predicated region
        $region60: #{patch_discriminator_forward.7} parent=54 // pred_check
          %p344 = pneg %p343
        $region61: #{patch_discriminator_forward.7} parent=54 // pred_check_branch
          %346 = sbr.rel (%p344) target = $region63
        $region62: #{patch_discriminator_forward.7} parent=54 // pred_region
          %347 = vst [vmem:[#allocation2] sm:$0xff] 0.0
          %348 = vst [vmem:[#allocation2 + $0x8] sm:$0xff] 0.0
          %349 = vst [vmem:[#allocation2 + $0x10] sm:$0xff] 0.0
          %350 = vst [vmem:[#allocation2 + $0x18] sm:$0xff] 0.0
        $region63: #{patch_discriminator_forward.7} parent=54 // pred_fallthru
          _
        %v351 = vld [vmem:[#allocation2] sm:$0xff]
        %v352 = vld [vmem:[#allocation2 + $0x8] sm:$0xff]
        %v353 = vld [vmem:[#allocation2 + $0x10] sm:$0xff]
        %v354 = vld [vmem:[#allocation2 + $0x18] sm:$0xff]
        %v355 = vld [vmem:[%s261] sm:$0xff]
        %v356 = vld [vmem:[%s261 + $0x8] sm:$0xff]
        %v357 = vld [vmem:[%s261 + $0x10] sm:$0xff]
        %v358 = vld [vmem:[%s261 + $0x18] sm:$0xff]
        %v359 = vld [vmem:[%s318] sm:$0xff]
        %v360 = vld [vmem:[%s318 + $0x8] sm:$0xff]
        %v361 = vld [vmem:[%s318 + $0x10] sm:$0xff]
        %v362 = vld [vmem:[%s318 + $0x18] sm:$0xff]
        %v363 = vld [vmem:[%s318 + $0x20] sm:$0xff]
        %v364 = vld [vmem:[%s318 + $0x28] sm:$0xff]
        %v365 = vld [vmem:[%s318 + $0x30] sm:$0xff]
        %v366 = vld [vmem:[%s318 + $0x38] sm:$0xff]
        %v367 = vld [vmem:[%s318 + $0x40] sm:$0xff]
        %v368 = vld [vmem:[%s318 + $0x48] sm:$0xff]
        %v369 = vld [vmem:[%s318 + $0x50] sm:$0xff]
        %v370 = vld [vmem:[%s318 + $0x58] sm:$0xff]
        %v371 = vld [vmem:[%s318 + $0x60] sm:$0xff]
        %v372 = vld [vmem:[%s318 + $0x68] sm:$0xff]
        %v373 = vld [vmem:[%s318 + $0x70] sm:$0xff]
        %v374 = vld [vmem:[%s318 + $0x78] sm:$0xff]
        %v375 = vld [vmem:[%s318 + $0x80] sm:$0xff]
        %v376 = vld [vmem:[%s318 + $0x88] sm:$0xff]
        %v377 = vld [vmem:[%s318 + $0x90] sm:$0xff]
        %v378 = vld [vmem:[%s318 + $0x98] sm:$0xff]
        %v379 = vld [vmem:[%s318 + $0xa0] sm:$0xff]
        %v380 = vld [vmem:[%s318 + $0xa8] sm:$0xff]
        %v381 = vld [vmem:[%s318 + $0xb0] sm:$0xff]
        %v382 = vld [vmem:[%s318 + $0xb8] sm:$0xff]
        %v383 = vld [vmem:[%s318 + $0xc0] sm:$0xff]
        %v384 = vld [vmem:[%s318 + $0xc8] sm:$0xff]
        %v385 = vld [vmem:[%s318 + $0xd0] sm:$0xff]
        %v386 = vld [vmem:[%s318 + $0xd8] sm:$0xff]
        %v387 = vld [vmem:[%s318 + $0xe0] sm:$0xff]
        %v388 = vld [vmem:[%s318 + $0xe8] sm:$0xff]
        %v389 = vld [vmem:[%s318 + $0xf0] sm:$0xff]
        %v390 = vld [vmem:[%s318 + $0xf8] sm:$0xff]
        %v391 = vld [vmem:[%s318 + $0x100] sm:$0xff]
        %v392 = vld [vmem:[%s318 + $0x108] sm:$0xff]
        %v393 = vld [vmem:[%s318 + $0x110] sm:$0xff]
        %v394 = vld [vmem:[%s318 + $0x118] sm:$0xff]
        %v395 = vld [vmem:[%s318 + $0x120] sm:$0xff]
        %v396 = vld [vmem:[%s318 + $0x128] sm:$0xff]
        %v397 = vld [vmem:[%s318 + $0x130] sm:$0xff]
        %v398 = vld [vmem:[%s318 + $0x138] sm:$0xff]
        %v399 = vld [vmem:[%s318 + $0x140] sm:$0xff]
        %v400 = vld [vmem:[%s318 + $0x148] sm:$0xff]
        %v401 = vld [vmem:[%s318 + $0x150] sm:$0xff]
        %v402 = vld [vmem:[%s318 + $0x158] sm:$0xff]
        %v403 = vld [vmem:[%s318 + $0x160] sm:$0xff]
        %v404 = vld [vmem:[%s318 + $0x168] sm:$0xff]
        %v405 = vld [vmem:[%s318 + $0x170] sm:$0xff]
        %v406 = vld [vmem:[%s318 + $0x178] sm:$0xff]
        %v407 = vld [vmem:[%s318 + $0x180] sm:$0xff]
        %v408 = vld [vmem:[%s318 + $0x188] sm:$0xff]
        %v409 = vld [vmem:[%s318 + $0x190] sm:$0xff]
        %v410 = vld [vmem:[%s318 + $0x198] sm:$0xff]
        %v411 = vld [vmem:[%s318 + $0x1a0] sm:$0xff]
        %v412 = vld [vmem:[%s318 + $0x1a8] sm:$0xff]
        %v413 = vld [vmem:[%s318 + $0x1b0] sm:$0xff]
        %v414 = vld [vmem:[%s318 + $0x1b8] sm:$0xff]
        %v415 = vld [vmem:[%s318 + $0x1c0] sm:$0xff]
        %v416 = vld [vmem:[%s318 + $0x1c8] sm:$0xff]
        %v417 = vld [vmem:[%s318 + $0x1d0] sm:$0xff]
        %v418 = vld [vmem:[%s318 + $0x1d8] sm:$0xff]
        %v419 = vld [vmem:[%s318 + $0x1e0] sm:$0xff]
        %v420 = vld [vmem:[%s318 + $0x1e8] sm:$0xff]
        %v421 = vld [vmem:[%s318 + $0x1f0] sm:$0xff]
        %v422 = vld [vmem:[%s318 + $0x1f8] sm:$0xff]
        %v427 = vunpack.c.l.b16 %v355
        %v428 = vunpack.c.h.b16 %v355
        %v429 = vunpack.c.l.b16 %v356
        %v430 = vunpack.c.h.b16 %v356
        %v431 = vunpack.c.l.b16 %v357
        %v432 = vunpack.c.h.b16 %v357
        %v433 = vunpack.c.l.b16 %v358
        %v434 = vunpack.c.h.b16 %v358
        %v435 = vpack.c.b16 %v431, %v427
        %v436 = vpack.c.b16 %v432, %v428
        %v437 = vpack.c.b16 %v433, %v429
        %v438 = vpack.c.b16 %v434, %v430
        %v507 = vunpack.c.l.b16 %v359
        %v508 = vunpack.c.h.b16 %v359
        %v509 = vunpack.c.l.b16 %v360
        %v510 = vunpack.c.h.b16 %v360
        %v511 = vunpack.c.l.b16 %v361
        %v512 = vunpack.c.h.b16 %v361
        %v513 = vunpack.c.l.b16 %v362
        %v514 = vunpack.c.h.b16 %v362
        %v515 = vunpack.c.l.b16 %v363
        %v516 = vunpack.c.h.b16 %v363
        %v517 = vunpack.c.l.b16 %v364
        %v518 = vunpack.c.h.b16 %v364
        %v519 = vunpack.c.l.b16 %v365
        %v520 = vunpack.c.h.b16 %v365
        %v521 = vunpack.c.l.b16 %v366
        %v522 = vunpack.c.h.b16 %v366
        %v523 = vunpack.c.l.b16 %v367
        %v524 = vunpack.c.h.b16 %v367
        %v525 = vunpack.c.l.b16 %v368
        %v526 = vunpack.c.h.b16 %v368
        %v527 = vunpack.c.l.b16 %v369
        %v528 = vunpack.c.h.b16 %v369
        %v529 = vunpack.c.l.b16 %v370
        %v530 = vunpack.c.h.b16 %v370
        %v531 = vunpack.c.l.b16 %v371
        %v532 = vunpack.c.h.b16 %v371
        %v533 = vunpack.c.l.b16 %v372
        %v534 = vunpack.c.h.b16 %v372
        %v535 = vunpack.c.l.b16 %v373
        %v536 = vunpack.c.h.b16 %v373
        %v537 = vunpack.c.l.b16 %v374
        %v538 = vunpack.c.h.b16 %v374
        %v539 = vunpack.c.l.b16 %v375
        %v540 = vunpack.c.h.b16 %v375
        %v541 = vunpack.c.l.b16 %v376
        %v542 = vunpack.c.h.b16 %v376
        %v543 = vunpack.c.l.b16 %v377
        %v544 = vunpack.c.h.b16 %v377
        %v545 = vunpack.c.l.b16 %v378
        %v546 = vunpack.c.h.b16 %v378
        %v547 = vunpack.c.l.b16 %v379
        %v548 = vunpack.c.h.b16 %v379
        %v549 = vunpack.c.l.b16 %v380
        %v550 = vunpack.c.h.b16 %v380
        %v551 = vunpack.c.l.b16 %v381
        %v552 = vunpack.c.h.b16 %v381
        %v553 = vunpack.c.l.b16 %v382
        %v554 = vunpack.c.h.b16 %v382
        %v555 = vunpack.c.l.b16 %v383
        %v556 = vunpack.c.h.b16 %v383
        %v557 = vunpack.c.l.b16 %v384
        %v558 = vunpack.c.h.b16 %v384
        %v559 = vunpack.c.l.b16 %v385
        %v560 = vunpack.c.h.b16 %v385
        %v561 = vunpack.c.l.b16 %v386
        %v562 = vunpack.c.h.b16 %v386
        %v563 = vunpack.c.l.b16 %v387
        %v564 = vunpack.c.h.b16 %v387
        %v565 = vunpack.c.l.b16 %v388
        %v566 = vunpack.c.h.b16 %v388
        %v567 = vunpack.c.l.b16 %v389
        %v568 = vunpack.c.h.b16 %v389
        %v569 = vunpack.c.l.b16 %v390
        %v570 = vunpack.c.h.b16 %v390
        %v571 = vunpack.c.l.b16 %v391
        %v572 = vunpack.c.h.b16 %v391
        %v573 = vunpack.c.l.b16 %v392
        %v574 = vunpack.c.h.b16 %v392
        %v575 = vunpack.c.l.b16 %v393
        %v576 = vunpack.c.h.b16 %v393
        %v577 = vunpack.c.l.b16 %v394
        %v578 = vunpack.c.h.b16 %v394
        %v579 = vunpack.c.l.b16 %v395
        %v580 = vunpack.c.h.b16 %v395
        %v581 = vunpack.c.l.b16 %v396
        %v582 = vunpack.c.h.b16 %v396
        %v583 = vunpack.c.l.b16 %v397
        %v584 = vunpack.c.h.b16 %v397
        %v585 = vunpack.c.l.b16 %v398
        %v586 = vunpack.c.h.b16 %v398
        %v587 = vunpack.c.l.b16 %v399
        %v588 = vunpack.c.h.b16 %v399
        %v589 = vunpack.c.l.b16 %v400
        %v590 = vunpack.c.h.b16 %v400
        %v591 = vunpack.c.l.b16 %v401
        %v592 = vunpack.c.h.b16 %v401
        %v593 = vunpack.c.l.b16 %v402
        %v594 = vunpack.c.h.b16 %v402
        %v595 = vunpack.c.l.b16 %v403
        %v596 = vunpack.c.h.b16 %v403
        %v597 = vunpack.c.l.b16 %v404
        %v598 = vunpack.c.h.b16 %v404
        %v599 = vunpack.c.l.b16 %v405
        %v600 = vunpack.c.h.b16 %v405
        %v601 = vunpack.c.l.b16 %v406
        %v602 = vunpack.c.h.b16 %v406
        %v603 = vunpack.c.l.b16 %v407
        %v604 = vunpack.c.h.b16 %v407
        %v605 = vunpack.c.l.b16 %v408
        %v606 = vunpack.c.h.b16 %v408
        %v607 = vunpack.c.l.b16 %v409
        %v608 = vunpack.c.h.b16 %v409
        %v609 = vunpack.c.l.b16 %v410
        %v610 = vunpack.c.h.b16 %v410
        %v611 = vunpack.c.l.b16 %v411
        %v612 = vunpack.c.h.b16 %v411
        %v613 = vunpack.c.l.b16 %v412
        %v614 = vunpack.c.h.b16 %v412
        %v615 = vunpack.c.l.b16 %v413
        %v616 = vunpack.c.h.b16 %v413
        %v617 = vunpack.c.l.b16 %v414
        %v618 = vunpack.c.h.b16 %v414
        %v619 = vunpack.c.l.b16 %v415
        %v620 = vunpack.c.h.b16 %v415
        %v621 = vunpack.c.l.b16 %v416
        %v622 = vunpack.c.h.b16 %v416
        %v623 = vunpack.c.l.b16 %v417
        %v624 = vunpack.c.h.b16 %v417
        %v625 = vunpack.c.l.b16 %v418
        %v626 = vunpack.c.h.b16 %v418
        %v627 = vunpack.c.l.b16 %v419
        %v628 = vunpack.c.h.b16 %v419
        %v629 = vunpack.c.l.b16 %v420
        %v630 = vunpack.c.h.b16 %v420
        %v631 = vunpack.c.l.b16 %v421
        %v632 = vunpack.c.h.b16 %v421
        %v633 = vunpack.c.l.b16 %v422
        %v634 = vunpack.c.h.b16 %v422
        %v635 = vpack.c.b16 %v509, %v507
        %v636 = vpack.c.b16 %v510, %v508
        %v637 = vpack.c.b16 %v513, %v511
        %v638 = vpack.c.b16 %v514, %v512
        %v639 = vpack.c.b16 %v517, %v515
        %v640 = vpack.c.b16 %v518, %v516
        %v641 = vpack.c.b16 %v521, %v519
        %v642 = vpack.c.b16 %v522, %v520
        %v643 = vpack.c.b16 %v525, %v523
        %v644 = vpack.c.b16 %v526, %v524
        %v645 = vpack.c.b16 %v529, %v527
        %v646 = vpack.c.b16 %v530, %v528
        %v647 = vpack.c.b16 %v533, %v531
        %v648 = vpack.c.b16 %v534, %v532
        %v649 = vpack.c.b16 %v537, %v535
        %v650 = vpack.c.b16 %v538, %v536
        %v651 = vpack.c.b16 %v541, %v539
        %v652 = vpack.c.b16 %v542, %v540
        %v653 = vpack.c.b16 %v545, %v543
        %v654 = vpack.c.b16 %v546, %v544
        %v655 = vpack.c.b16 %v549, %v547
        %v656 = vpack.c.b16 %v550, %v548
        %v657 = vpack.c.b16 %v553, %v551
        %v658 = vpack.c.b16 %v554, %v552
        %v659 = vpack.c.b16 %v557, %v555
        %v660 = vpack.c.b16 %v558, %v556
        %v661 = vpack.c.b16 %v561, %v559
        %v662 = vpack.c.b16 %v562, %v560
        %v663 = vpack.c.b16 %v565, %v563
        %v664 = vpack.c.b16 %v566, %v564
        %v665 = vpack.c.b16 %v569, %v567
        %v666 = vpack.c.b16 %v570, %v568
        %v667 = vpack.c.b16 %v573, %v571
        %v668 = vpack.c.b16 %v574, %v572
        %v669 = vpack.c.b16 %v577, %v575
        %v670 = vpack.c.b16 %v578, %v576
        %v671 = vpack.c.b16 %v581, %v579
        %v672 = vpack.c.b16 %v582, %v580
        %v673 = vpack.c.b16 %v585, %v583
        %v674 = vpack.c.b16 %v586, %v584
        %v675 = vpack.c.b16 %v589, %v587
        %v676 = vpack.c.b16 %v590, %v588
        %v677 = vpack.c.b16 %v593, %v591
        %v678 = vpack.c.b16 %v594, %v592
        %v679 = vpack.c.b16 %v597, %v595
        %v680 = vpack.c.b16 %v598, %v596
        %v681 = vpack.c.b16 %v601, %v599
        %v682 = vpack.c.b16 %v602, %v600
        %v683 = vpack.c.b16 %v605, %v603
        %v684 = vpack.c.b16 %v606, %v604
        %v685 = vpack.c.b16 %v609, %v607
        %v686 = vpack.c.b16 %v610, %v608
        %v687 = vpack.c.b16 %v613, %v611
        %v688 = vpack.c.b16 %v614, %v612
        %v689 = vpack.c.b16 %v617, %v615
        %v690 = vpack.c.b16 %v618, %v616
        %v691 = vpack.c.b16 %v621, %v619
        %v692 = vpack.c.b16 %v622, %v620
        %v693 = vpack.c.b16 %v625, %v623
        %v694 = vpack.c.b16 %v626, %v624
        %v695 = vpack.c.b16 %v629, %v627
        %v696 = vpack.c.b16 %v630, %v628
        %v697 = vpack.c.b16 %v633, %v631
        %v698 = vpack.c.b16 %v634, %v632
        %763 = vmatprep.subr.bf16.mxu0 %v636
        %764 = vmatpush1.bf16.msra.mxu0 %v635
        %765 = vmatprep.subr.bf16.mxu0 %v638
        %766 = vmatpush1.bf16.msra.mxu0 %v637
        %767 = vmatprep.subr.bf16.mxu0 %v640
        %768 = vmatpush1.bf16.msra.mxu0 %v639
        %769 = vmatprep.subr.bf16.mxu0 %v642
        %770 = vmatpush1.bf16.msra.mxu0 %v641
        %771 = vmatprep.subr.bf16.mxu0 %v644
        %772 = vmatpush1.bf16.msra.mxu0 %v643
        %773 = vmatprep.subr.bf16.mxu0 %v646
        %774 = vmatpush1.bf16.msra.mxu0 %v645
        %775 = vmatprep.subr.bf16.mxu0 %v648
        %776 = vmatpush1.bf16.msra.mxu0 %v647
        %777 = vmatprep.subr.bf16.mxu0 %v650
        %778 = vmatpush1.bf16.msra.mxu0 %v649
        %779 = vmatprep.subr.bf16.mxu0 %v652
        %780 = vmatpush1.bf16.msra.mxu0 %v651
        %781 = vmatprep.subr.bf16.mxu0 %v654
        %782 = vmatpush1.bf16.msra.mxu0 %v653
        %783 = vmatprep.subr.bf16.mxu0 %v656
        %784 = vmatpush1.bf16.msra.mxu0 %v655
        %785 = vmatprep.subr.bf16.mxu0 %v658
        %786 = vmatpush1.bf16.msra.mxu0 %v657
        %787 = vmatprep.subr.bf16.mxu0 %v660
        %788 = vmatpush1.bf16.msra.mxu0 %v659
        %789 = vmatprep.subr.bf16.mxu0 %v662
        %790 = vmatpush1.bf16.msra.mxu0 %v661
        %791 = vmatprep.subr.bf16.mxu0 %v664
        %792 = vmatpush1.bf16.msra.mxu0 %v663
        %793 = vmatprep.subr.bf16.mxu0 %v666
        %794 = vmatpush1.bf16.msra.mxu0 %v665
        %795 = vmatprep.mubr.bf16.mxu0 %v436
        %796 = vmatmul.mubr.bf16.gmra.mrb[0].mxu0 %v435
        %v797 = vpop.f32.mrb[0].mxu0
        %v798 = vadd.f32 0.0, %v797
        %v799 = vpop.f32.mrb[0].mxu0
        %v800 = vadd.f32 0.0, %v799
        %v801 = vpop.f32.mrb[0].mxu0
        %v802 = vadd.f32 0.0, %v801
        %v803 = vpop.f32.mrb[0].mxu0
        %v804 = vadd.f32 0.0, %v803
        %805 = vdwg.mxu0
        %806 = vmatprep.subr.bf16.mxu0 %v668
        %807 = vmatpush1.bf16.msra.mxu0 %v667
        %808 = vmatprep.subr.bf16.mxu0 %v670
        %809 = vmatpush1.bf16.msra.mxu0 %v669
        %810 = vmatprep.subr.bf16.mxu0 %v672
        %811 = vmatpush1.bf16.msra.mxu0 %v671
        %812 = vmatprep.subr.bf16.mxu0 %v674
        %813 = vmatpush1.bf16.msra.mxu0 %v673
        %814 = vmatprep.subr.bf16.mxu0 %v676
        %815 = vmatpush1.bf16.msra.mxu0 %v675
        %816 = vmatprep.subr.bf16.mxu0 %v678
        %817 = vmatpush1.bf16.msra.mxu0 %v677
        %818 = vmatprep.subr.bf16.mxu0 %v680
        %819 = vmatpush1.bf16.msra.mxu0 %v679
        %820 = vmatprep.subr.bf16.mxu0 %v682
        %821 = vmatpush1.bf16.msra.mxu0 %v681
        %822 = vmatprep.subr.bf16.mxu0 %v684
        %823 = vmatpush1.bf16.msra.mxu0 %v683
        %824 = vmatprep.subr.bf16.mxu0 %v686
        %825 = vmatpush1.bf16.msra.mxu0 %v685
        %826 = vmatprep.subr.bf16.mxu0 %v688
        %827 = vmatpush1.bf16.msra.mxu0 %v687
        %828 = vmatprep.subr.bf16.mxu0 %v690
        %829 = vmatpush1.bf16.msra.mxu0 %v689
        %830 = vmatprep.subr.bf16.mxu0 %v692
        %831 = vmatpush1.bf16.msra.mxu0 %v691
        %832 = vmatprep.subr.bf16.mxu0 %v694
        %833 = vmatpush1.bf16.msra.mxu0 %v693
        %834 = vmatprep.subr.bf16.mxu0 %v696
        %835 = vmatpush1.bf16.msra.mxu0 %v695
        %836 = vmatprep.subr.bf16.mxu0 %v698
        %837 = vmatpush1.bf16.msra.mxu0 %v697
        %838 = vmatprep.mubr.bf16.mxu0 %v438
        %839 = vmatmul.mubr.bf16.gmra.mrb[0].mxu0 %v437
        %v840 = vpop.f32.mrb[0].mxu0
        %v841 = vadd.f32 %v798, %v840
        %v842 = vpop.f32.mrb[0].mxu0
        %v843 = vadd.f32 %v800, %v842
        %v844 = vpop.f32.mrb[0].mxu0
        %v845 = vadd.f32 %v802, %v844
        %v846 = vpop.f32.mrb[0].mxu0
        %v847 = vadd.f32 %v804, %v846
        %848 = vdwg.mxu0
        %v849 = vadd.f32 %v351, %v841
        %v850 = vadd.f32 %v352, %v843
        %v851 = vadd.f32 %v353, %v845
        %v852 = vadd.f32 %v354, %v847
        %853 = vst [vmem:[#allocation2] sm:$0xff] %v849
        %854 = vst [vmem:[#allocation2 + $0x8] sm:$0xff] %v850
        %855 = vst [vmem:[#allocation2 + $0x10] sm:$0xff] %v851
        %856 = vst [vmem:[#allocation2 + $0x18] sm:$0xff] %v852
        %p857 = scmp.eq.s32.totalorder %s22, 3
        // Predicated region
        $region64: #{patch_discriminator_forward.7} parent=54 // pred_check
          %p858 = pneg %p857
        $region65: #{patch_discriminator_forward.7} parent=54 // pred_check_branch
          %860 = sbr.rel (%p858) target = $region67
        $region66: #{patch_discriminator_forward.7} parent=54 // pred_region
          %v861 = vld [vmem:[#allocation2] sm:$0xff]
          %v862 = vld [vmem:[#allocation2 + $0x8] sm:$0xff]
          %v863 = vld [vmem:[#allocation2 + $0x10] sm:$0xff]
          %v864 = vld [vmem:[#allocation2 + $0x18] sm:$0xff]
          %v865 = vld [vmem:[%s324] sm:$0x3]
          %v867 = vlaneseq
          %v868 = vshrl.u32 %v867, 7
          %v869 = vsub.s32 0, %v868
          %v870 = vrot.slane %v865, %v869
          %v871 = vlaneseq
          %v872 = vshrl.u32 %v871, 7
          %v873 = vsub.s32 1, %v872
          %v874 = vrot.slane %v865, %v873
          %v877 = vmul.f32 %v861, %v870
          %v878 = vmul.f32 %v862, %v874
          %v879 = vmul.f32 %v863, %v870
          %v880 = vmul.f32 %v864, %v874
          %v881 = vld [vmem:[%s329] sm:$0x3]
          %v883 = vlaneseq
          %v884 = vshrl.u32 %v883, 7
          %v885 = vsub.s32 0, %v884
          %v886 = vrot.slane %v881, %v885
          %v887 = vlaneseq
          %v888 = vshrl.u32 %v887, 7
          %v889 = vsub.s32 1, %v888
          %v890 = vrot.slane %v881, %v889
          %v893 = vadd.f32 %v877, %v886
          %v894 = vadd.f32 %v878, %v890
          %v895 = vadd.f32 %v879, %v886
          %v896 = vadd.f32 %v880, %v890
          %vm897 = vcmp.ge.f32.partialorder %v893, 0.0
          %vm898 = vcmp.ge.f32.partialorder %v894, 0.0
          %vm899 = vcmp.ge.f32.partialorder %v895, 0.0
          %vm900 = vcmp.ge.f32.partialorder %v896, 0.0
          %v901 = vmul.f32 %v893, 0.2
          %v902 = vmul.f32 %v894, 0.2
          %v903 = vmul.f32 %v895, 0.2
          %v904 = vmul.f32 %v896, 0.2
          %v905 = vsel %vm897, %v893, %v901
          %v906 = vsel %vm898, %v894, %v902
          %v907 = vsel %vm899, %v895, %v903
          %v908 = vsel %vm900, %v896, %v904
          %909 = vst [vmem:[%s340] sm:$0xff] %v905
          %910 = vst [vmem:[%s340 + $0x8] sm:$0xff] %v906
          %911 = vst [vmem:[%s340 + $0x10] sm:$0xff] %v907
          %912 = vst [vmem:[%s340 + $0x18] sm:$0xff] %v908
        $region67: #{patch_discriminator_forward.7} parent=54 // pred_fallthru
          _
        %s913 = smul.u32 2, %s20
        %s914 = smul.u32 2, %s21
        %p915 = scmp.lt.s32.totalorder %s913, 1
        %s916 = scalar_select %p915, %s913, 1
        %p917 = scmp.lt.s32.totalorder %s914, 1
        %s918 = scalar_select %p917, %s914, 1
        %s919 = smul.addr %s916, 2
        %s920 = sadd.s32 %s918, %s919
        %s921 = smul.addr %s920, 8
        %s922 = scalar_lea.vmem %s4, %s921
        // Predicated region
        $region68: #{patch_discriminator_forward.7} parent=54 // pred_check
          %p923 = pneg %p162
        $region69: #{patch_discriminator_forward.7} parent=54 // pred_check_branch
          %925 = sbr.rel (%p923) target = $region71
        $region70: #{patch_discriminator_forward.7} parent=54 // pred_region
          %s926 = smul.u32 2, %s20
          %s927 = smul.u32 2, %s21
        $region71: #{patch_discriminator_forward.7} parent=54 // pred_fallthru
          _
        // Predicated region
        $region72: #{patch_discriminator_forward.7} parent=54 // pred_check
          %p928 = pneg %p162
        $region73: #{patch_discriminator_forward.7} parent=54 // pred_check_branch
          %930 = sbr.rel (%p928) target = $region75
        $region74: #{patch_discriminator_forward.7} parent=54 // pred_region
          %s931 = smul.u32 2, %s20
          %s932 = smul.u32 2, %s21
          %p933 = scmp.lt.s32.totalorder %s931, 1
          %s934 = scalar_select %p933, %s931, 1
          %p935 = scmp.lt.s32.totalorder %s932, 1
          %s936 = scalar_select %p935, %s932, 1
          %s937 = smul.addr %s934, 2
          %s938 = sadd.s32 %s936, %s937
          %s939 = smul.addr %s938, 8
          %s940 = scalar_lea.vmem %s4, %s939
        $region75: #{patch_discriminator_forward.7} parent=54 // pred_fallthru
          _
      $region55: #{patch_discriminator_forward.7} parent=5 // pred_fallthru
        _
      %p941 = scmp.le.s32.totalorder 2, %s10
      // Predicated region
      $region76: #{patch_discriminator_forward.7} parent=5 // pred_check
        %p942 = pneg %p941
      $region77: #{patch_discriminator_forward.7} parent=5 // pred_check_branch
        %944 = sbr.rel (%p942) target = $region79
      $region78: #{patch_discriminator_forward.7} parent=5 // pred_region
        %s945 = ssub.s32 %s10, 2
      $region79: #{patch_discriminator_forward.7} parent=5 // pred_fallthru
        _
    $region6: #{patch_discriminator_forward.7} parent=1 // loop_footer
      %s14 = sadd.s32 1, %s10
    $region7: #{patch_discriminator_forward.7} parent=1 // loop_footer_branch
      %9 = sbr.rel target = $region3
    $region8: #{patch_discriminator_forward.7} parent=1 // loop_exit
      _

// kernel: patch_discriminator_forward.8
$region0: #{patch_discriminator_forward.8}
  #allocation0 [shape = 'u32[]', space=smem, size = 0x4, offset = 0x4, fixed_abs, tag = 'smem constant byte address 0x4 - core index']
  #allocation1 [shape = 'u32[144,128]{1,0:T(1,128)}', space=vmem, size = 0x12000, scoped, tag = 'internal scratch']
  #allocation2 [shape = 'f32[16,256]{1,0:T(8,128)}', space=vmem, size = 0x4000, scoped, tag = 'scratch operand']
  %s0 = inlined_call_operand.vmem [shape: bf16[16,4096], index: 0, kind: input, shape index: {}]
  %s1 = inlined_call_operand.vmem [shape: bf16[4096,512], index: 1, kind: input, shape index: {}]
  %s2 = inlined_call_operand.vmem [shape: f32[1,512], index: 2, kind: input, shape index: {}]
  %s3 = inlined_call_operand.vmem [shape: f32[1,512], index: 3, kind: input, shape index: {}]
  %s4 = inlined_call_operand.vmem [shape: f32[16,512], index: 4, kind: output, shape index: {}]
  %s5 = sld [smem:[#allocation0]]
  $region137: #{patch_discriminator_forward.8} parent=0
    _
  %s7 = ssub.s32 1, %s5
  %s8 = scalar_select 0, %s7, %s5
  $region1: #{patch_discriminator_forward.8} parent=0
    #allocation3 [shape = 'u8[32768]{0}', space=vmem, size = 0x8000, scoped, tag = 'input window, operand 0']
    #allocation4 [shape = 'u8[524288]{0}', space=vmem, size = 0x80000, scoped, tag = 'input window, operand 1']
    #allocation5 [shape = 'u8[32768]{0}', space=vmem, size = 0x8000, scoped, tag = 'output window, operand 0']
    loop: start=0, step=1, limit=18
    $region2: #{patch_discriminator_forward.8} parent=1 // loop_pre_header
      _
    $region3: #{patch_discriminator_forward.8} parent=1 // loop_header
      %s10 = sphi 0, %s14
      %p11 = scmp.ge.s32.totalorder %s10, 18
      %s17 = sphi 0, %s36
      %s18 = sphi 0, %s32
      %s19 = sphi 0, %s28
      %s20 = sphi 0, %s17
      %s21 = sphi 0, %s18
      %s22 = sphi 0, %s19
      %s23 = sphi 0, %s20
      %s24 = sphi 0, %s21
      %s25 = sphi 0, %s22
      %s41 = sphi 0, %s43
      %s44 = sphi 0, %s41
      %s45 = sphi 0, %s44
      %s61 = sphi 0, %s45
      %s69 = sphi 0, %s71
      %s72 = sphi 0, %s69
      %s73 = sphi 0, %s72
      %s89 = sphi 0, %s73
      %s95 = sphi 0, %s97
      %s98 = sphi 0, %s95
      %s99 = sphi 0, %s98
      %s115 = sphi 0, %s99
      %s121 = sphi 0, %s123
      %s124 = sphi 0, %s121
      %s125 = sphi 0, %s124
      %s141 = sphi 0, %s125
      %s149 = sphi 0, %s151
      %s152 = sphi 0, %s149
      %s153 = sphi 0, %s152
      %s169 = sphi 0, %s153
    $region4: #{patch_discriminator_forward.8} parent=1 // loop_header_branch
      %13 = sbr.rel (%p11) target = $region8
    $region5: #{patch_discriminator_forward.8} parent=1 // loop_body
      %s15 = ssub.s32 %s10, 1
      %s16 = ssub.s32 %s10, 2
      %s26 = sadd.s32 1, %s19
      %p27 = scmp.ge.s32.totalorder %s26, 8
      %s28 = scalar_select %p27, 0, %s26
      %s29 = sadd.s32 1, %s18
      %s30 = scalar_select %p27, %s29, %s18
      %p31 = scmp.ge.s32.totalorder %s30, 2
      %s32 = scalar_select %p31, 0, %s30
      %s33 = sadd.s32 1, %s17
      %s34 = scalar_select %p31, %s33, %s17
      %p35 = scmp.ge.s32.totalorder %s34, 1
      %s36 = scalar_select %p35, 0, %s34
      %s37 = ssub.s32 %s17, %s36
      %s38 = ssub.s32 %s19, %s28
      %s39 = sor.u32 %s37, %s38
      %p40 = scmp.eq.s32.totalorder %s39, 0
      %s42 = sadd.s32 %s41, 1
      %s43 = scalar_select %p40, %s41, %s42
      %p46 = pneg %p40
      %p47 = scmp.eq.s32.totalorder %s10, 15
      %p48 = por %p46, %p47
      %p49 = scmp.ne.s32.totalorder %s41, %s44
      %p50 = scmp.eq.s32.totalorder %s10, 0
      %p51 = por %p49, %p50
      %p52 = scmp.ne.s32.totalorder %s41, %s44
      %p53 = scmp.eq.s32.totalorder %s15, 15
      %p54 = por %p52, %p53
      %p55 = scmp.ne.s32.totalorder %s44, %s45
      %p56 = scmp.eq.s32.totalorder %s15, 0
      %p57 = por %p55, %p56
      %p58 = scmp.ne.s32.totalorder %s44, %s45
      %p59 = scmp.eq.s32.totalorder %s16, 15
      %p60 = por %p58, %p59
      %p62 = scmp.ne.s32.totalorder %s45, %s61
      %p63 = scmp.eq.s32.totalorder %s16, 0
      %p64 = por %p62, %p63
      %s65 = ssub.s32 %s19, %s28
      %s66 = ssub.s32 %s18, %s32
      %s67 = sor.u32 %s65, %s66
      %p68 = scmp.eq.s32.totalorder %s67, 0
      %s70 = sadd.s32 %s69, 1
      %s71 = scalar_select %p68, %s69, %s70
      %p74 = pneg %p68
      %p75 = scmp.eq.s32.totalorder %s10, 15
      %p76 = por %p74, %p75
      %p77 = scmp.ne.s32.totalorder %s69, %s72
      %p78 = scmp.eq.s32.totalorder %s10, 0
      %p79 = por %p77, %p78
      %p80 = scmp.ne.s32.totalorder %s69, %s72
      %p81 = scmp.eq.s32.totalorder %s15, 15
      %p82 = por %p80, %p81
      %p83 = scmp.ne.s32.totalorder %s72, %s73
      %p84 = scmp.eq.s32.totalorder %s15, 0
      %p85 = por %p83, %p84
      %p86 = scmp.ne.s32.totalorder %s72, %s73
      %p87 = scmp.eq.s32.totalorder %s16, 15
      %p88 = por %p86, %p87
      %p90 = scmp.ne.s32.totalorder %s73, %s89
      %p91 = scmp.eq.s32.totalorder %s16, 0
      %p92 = por %p90, %p91
      %s93 = ssub.s32 %s18, %s32
      %p94 = scmp.eq.s32.totalorder %s93, 0
      %s96 = sadd.s32 %s95, 1
      %s97 = scalar_select %p94, %s95, %s96
      %p100 = pneg %p94
      %p101 = scmp.eq.s32.totalorder %s10, 15
      %p102 = por %p100, %p101
      %p103 = scmp.ne.s32.totalorder %s95, %s98
      %p104 = scmp.eq.s32.totalorder %s10, 0
      %p105 = por %p103, %p104
      %p106 = scmp.ne.s32.totalorder %s95, %s98
      %p107 = scmp.eq.s32.totalorder %s15, 15
      %p108 = por %p106, %p107
      %p109 = scmp.ne.s32.totalorder %s98, %s99
      %p110 = scmp.eq.s32.totalorder %s15, 0
      %p111 = por %p109, %p110
      %p112 = scmp.ne.s32.totalorder %s98, %s99
      %p113 = scmp.eq.s32.totalorder %s16, 15
      %p114 = por %p112, %p113
      %p116 = scmp.ne.s32.totalorder %s99, %s115
      %p117 = scmp.eq.s32.totalorder %s16, 0
      %p118 = por %p116, %p117
      %s119 = ssub.s32 %s18, %s32
      %p120 = scmp.eq.s32.totalorder %s119, 0
      %s122 = sadd.s32 %s121, 1
      %s123 = scalar_select %p120, %s121, %s122
      %p126 = pneg %p120
      %p127 = scmp.eq.s32.totalorder %s10, 15
      %p128 = por %p126, %p127
      %p129 = scmp.ne.s32.totalorder %s121, %s124
      %p130 = scmp.eq.s32.totalorder %s10, 0
      %p131 = por %p129, %p130
      %p132 = scmp.ne.s32.totalorder %s121, %s124
      %p133 = scmp.eq.s32.totalorder %s15, 15
      %p134 = por %p132, %p133
      %p135 = scmp.ne.s32.totalorder %s124, %s125
      %p136 = scmp.eq.s32.totalorder %s15, 0
      %p137 = por %p135, %p136
      %p138 = scmp.ne.s32.totalorder %s124, %s125
      %p139 = scmp.eq.s32.totalorder %s16, 15
      %p140 = por %p138, %p139
      %p142 = scmp.ne.s32.totalorder %s125, %s141
      %p143 = scmp.eq.s32.totalorder %s16, 0
      %p144 = por %p142, %p143
      %s145 = ssub.s32 %s17, %s36
      %s146 = ssub.s32 %s18, %s32
      %s147 = sor.u32 %s145, %s146
      %p148 = scmp.eq.s32.totalorder %s147, 0
      %s150 = sadd.s32 %s149, 1
      %s151 = scalar_select %p148, %s149, %s150
      %p154 = pneg %p148
      %p155 = scmp.eq.s32.totalorder %s10, 15
      %p156 = por %p154, %p155
      %p157 = scmp.ne.s32.totalorder %s149, %s152
      %p158 = scmp.eq.s32.totalorder %s10, 0
      %p159 = por %p157, %p158
      %p160 = scmp.ne.s32.totalorder %s149, %s152
      %p161 = scmp.eq.s32.totalorder %s15, 15
      %p162 = por %p160, %p161
      %p163 = scmp.ne.s32.totalorder %s152, %s153
      %p164 = scmp.eq.s32.totalorder %s15, 0
      %p165 = por %p163, %p164
      %p166 = scmp.ne.s32.totalorder %s152, %s153
      %p167 = scmp.eq.s32.totalorder %s16, 15
      %p168 = por %p166, %p167
      %p170 = scmp.ne.s32.totalorder %s153, %s169
      %p171 = scmp.eq.s32.totalorder %s16, 0
      %p172 = por %p170, %p171
      %p173 = scmp.le.s32.totalorder 1, %s10
      %p174 = scmp.lt.s32.totalorder %s10, 17
      %p175 = pnand %p173, %p174
      %p176 = pneg %p175
      // Predicated region
      $region9: #{patch_discriminator_forward.8} parent=5 // pred_check
        _
      $region10: #{patch_discriminator_forward.8} parent=5 // pred_check_branch
        %178 = sbr.rel (%p175) target = $region12
      $region11: #{patch_discriminator_forward.8} parent=5 // pred_region
        %s179 = ssub.s32 %s10, 1
      $region12: #{patch_discriminator_forward.8} parent=5 // pred_fallthru
        _
      %p180 = scmp.lt.s32.totalorder %s10, 16
      // Predicated region
      $region13: #{patch_discriminator_forward.8} parent=5 // pred_check
        %p181 = pneg %p180
      $region14: #{patch_discriminator_forward.8} parent=5 // pred_check_branch
        %183 = sbr.rel (%p181) target = $region16
      $region15: #{patch_discriminator_forward.8} parent=5 // pred_region
        // Predicated region
        $region17: #{patch_discriminator_forward.8} parent=15 // pred_check
          %p184 = pneg %p51
        $region18: #{patch_discriminator_forward.8} parent=15 // pred_check_branch
          %186 = sbr.rel (%p184) target = $region20
        $region19: #{patch_discriminator_forward.8} parent=15 // pred_region
          %s187 = sand.u32 %s41, 1
          %s188 = sand.u32 %s41, 1
          %s189 = smul.addr %s188, 32
          %s190 = scalar_lea.vmem [#allocation3], %s189
          %s191 = smul.u32 2, %s17
          %s192 = smul.u32 4, %s19
          %s193 = smul.addr %s191, 32
          %s194 = sadd.s32 %s192, %s193
          %s195 = smul.addr %s194, 4
          %s196 = scalar_lea.vmem %s0, %s195
          // Predicated region
          $region21: #{patch_discriminator_forward.8} parent=19 // pred_check
            _
          $region22: #{patch_discriminator_forward.8} parent=19 // pred_check_branch
            %198 = sbr.rel (0) target = $region24
          $region23: #{patch_discriminator_forward.8} parent=19 // pred_region
            // Predicated region
            $region25: #{patch_discriminator_forward.8} parent=23 // pred_check
              _
            $region26: #{patch_discriminator_forward.8} parent=23 // pred_check_branch
              %200 = sbr.rel (0) target = $region28
            $region27: #{patch_discriminator_forward.8} parent=23 // pred_region
              loop: start=0, step=1, limit=1
              $region29: #{patch_discriminator_forward.8} parent=27 // loop_pre_header
                _
              $region30: #{patch_discriminator_forward.8} parent=27 // loop_header
                %s202 = sphi 0, %s206
                %p203 = scmp.ge.s32.totalorder %s202, 1
                %s207 = sphi %s196, %s196
                %s208 = sphi %s190, %s190
              $region31: #{patch_discriminator_forward.8} parent=27 // loop_header_branch
                %205 = sbr.rel (%p203) target = $region35
              $region32: #{patch_discriminator_forward.8} parent=27 // loop_body
                %v209 = vld [vmem:[%s207] sm:$0xff]
                %210 = vst [vmem:[%s208] sm:$0xff] %v209
                %v211 = vld [vmem:[%s207 + $0x8] sm:$0xff]
                %212 = vst [vmem:[%s208 + $0x8] sm:$0xff] %v211
                %v213 = vld [vmem:[%s207 + $0x80] sm:$0xff]
                %214 = vst [vmem:[%s208 + $0x10] sm:$0xff] %v213
                %v215 = vld [vmem:[%s207 + $0x88] sm:$0xff]
                %216 = vst [vmem:[%s208 + $0x18] sm:$0xff] %v215
              $region33: #{patch_discriminator_forward.8} parent=27 // loop_footer
                %s206 = sadd.s32 1, %s202
              $region34: #{patch_discriminator_forward.8} parent=27 // loop_footer_branch
                %201 = sbr.rel target = $region30
              $region35: #{patch_discriminator_forward.8} parent=27 // loop_exit
                _
            $region28: #{patch_discriminator_forward.8} parent=23 // pred_fallthru
              _
            // Predicated region
            $region36: #{patch_discriminator_forward.8} parent=23 // pred_check
              _
            $region37: #{patch_discriminator_forward.8} parent=23 // pred_check_branch
              %218 = sbr.rel target = $region39
            $region38: #{patch_discriminator_forward.8} parent=23 // pred_region
              _
            $region39: #{patch_discriminator_forward.8} parent=23 // pred_fallthru
              _
          $region24: #{patch_discriminator_forward.8} parent=19 // pred_fallthru
            _
          %219 = vnop
        $region20: #{patch_discriminator_forward.8} parent=15 // pred_fallthru
          _
        // Predicated region
        $region40: #{patch_discriminator_forward.8} parent=15 // pred_check
          %p220 = pneg %p79
        $region41: #{patch_discriminator_forward.8} parent=15 // pred_check_branch
          %222 = sbr.rel (%p220) target = $region43
        $region42: #{patch_discriminator_forward.8} parent=15 // pred_region
          %s223 = sand.u32 %s69, 1
          %s224 = sand.u32 %s69, 1
          %s225 = smul.addr %s224, 512
          %s226 = scalar_lea.vmem [#allocation4], %s225
          %s227 = smul.u32 64, %s19
          %s228 = smul.u32 2, %s18
          %s229 = smul.addr %s227, 4
          %s230 = sadd.s32 %s228, %s229
          %s231 = smul.addr %s230, 4
          %s232 = scalar_lea.vmem %s1, %s231
          // Predicated region
          $region44: #{patch_discriminator_forward.8} parent=42 // pred_check
            _
          $region45: #{patch_discriminator_forward.8} parent=42 // pred_check_branch
            %234 = sbr.rel (0) target = $region47
          $region46: #{patch_discriminator_forward.8} parent=42 // pred_region
            // Predicated region
            $region48: #{patch_discriminator_forward.8} parent=46 // pred_check
              _
            $region49: #{patch_discriminator_forward.8} parent=46 // pred_check_branch
              %236 = sbr.rel (0) target = $region51
            $region50: #{patch_discriminator_forward.8} parent=46 // pred_region
              // Predicated region
              $region63: #{patch_discriminator_forward.8} parent=50 // pred_check
                _
              $region64: #{patch_discriminator_forward.8} parent=50 // pred_check_branch
                %377 = sbr.rel (0) target = $region66
              $region65: #{patch_discriminator_forward.8} parent=50 // pred_region
                loop: start=0, step=1, limit=1
                $region67: #{patch_discriminator_forward.8} parent=65 // loop_pre_header
                  _
                $region68: #{patch_discriminator_forward.8} parent=65 // loop_header
                  %s379 = sphi 0, %s383
                  %p380 = scmp.ge.s32.totalorder %s379, 1
                  %s384 = sphi %s232, %s232
                  %s385 = sphi %s226, %s226
                $region69: #{patch_discriminator_forward.8} parent=65 // loop_header_branch
                  %382 = sbr.rel (%p380) target = $region73
                $region70: #{patch_discriminator_forward.8} parent=65 // loop_body
                  %v386 = vld [vmem:[%s384] sm:$0xff]
                  %387 = vst [vmem:[%s385] sm:$0xff] %v386
                  %v388 = vld [vmem:[%s384 + $0x10] sm:$0xff]
                  %389 = vst [vmem:[%s385 + $0x8] sm:$0xff] %v388
                  %v390 = vld [vmem:[%s384 + $0x20] sm:$0xff]
                  %391 = vst [vmem:[%s385 + $0x10] sm:$0xff] %v390
                  %v392 = vld [vmem:[%s384 + $0x30] sm:$0xff]
                  %393 = vst [vmem:[%s385 + $0x18] sm:$0xff] %v392
                  %v394 = vld [vmem:[%s384 + $0x40] sm:$0xff]
                  %395 = vst [vmem:[%s385 + $0x20] sm:$0xff] %v394
                  %v396 = vld [vmem:[%s384 + $0x50] sm:$0xff]
                  %397 = vst [vmem:[%s385 + $0x28] sm:$0xff] %v396
                  %v398 = vld [vmem:[%s384 + $0x60] sm:$0xff]
                  %399 = vst [vmem:[%s385 + $0x30] sm:$0xff] %v398
                  %v400 = vld [vmem:[%s384 + $0x70] sm:$0xff]
                  %401 = vst [vmem:[%s385 + $0x38] sm:$0xff] %v400
                  %v402 = vld [vmem:[%s384 + $0x80] sm:$0xff]
                  %403 = vst [vmem:[%s385 + $0x40] sm:$0xff] %v402
                  %v404 = vld [vmem:[%s384 + $0x90] sm:$0xff]
                  %405 = vst [vmem:[%s385 + $0x48] sm:$0xff] %v404
                  %v406 = vld [vmem:[%s384 + $0xa0] sm:$0xff]
                  %407 = vst [vmem:[%s385 + $0x50] sm:$0xff] %v406
                  %v408 = vld [vmem:[%s384 + $0xb0] sm:$0xff]
                  %409 = vst [vmem:[%s385 + $0x58] sm:$0xff] %v408
                  %v410 = vld [vmem:[%s384 + $0xc0] sm:$0xff]
                  %411 = vst [vmem:[%s385 + $0x60] sm:$0xff] %v410
                  %v412 = vld [vmem:[%s384 + $0xd0] sm:$0xff]
                  %413 = vst [vmem:[%s385 + $0x68] sm:$0xff] %v412
                  %v414 = vld [vmem:[%s384 + $0xe0] sm:$0xff]
                  %415 = vst [vmem:[%s385 + $0x70] sm:$0xff] %v414
                  %v416 = vld [vmem:[%s384 + $0xf0] sm:$0xff]
                  %417 = vst [vmem:[%s385 + $0x78] sm:$0xff] %v416
                  %v418 = vld [vmem:[%s384 + $0x100] sm:$0xff]
                  %419 = vst [vmem:[%s385 + $0x80] sm:$0xff] %v418
                  %v420 = vld [vmem:[%s384 + $0x110] sm:$0xff]
                  %421 = vst [vmem:[%s385 + $0x88] sm:$0xff] %v420
                  %v422 = vld [vmem:[%s384 + $0x120] sm:$0xff]
                  %423 = vst [vmem:[%s385 + $0x90] sm:$0xff] %v422
                  %v424 = vld [vmem:[%s384 + $0x130] sm:$0xff]
                  %425 = vst [vmem:[%s385 + $0x98] sm:$0xff] %v424
                  %v426 = vld [vmem:[%s384 + $0x140] sm:$0xff]
                  %427 = vst [vmem:[%s385 + $0xa0] sm:$0xff] %v426
                  %v428 = vld [vmem:[%s384 + $0x150] sm:$0xff]
                  %429 = vst [vmem:[%s385 + $0xa8] sm:$0xff] %v428
                  %v430 = vld [vmem:[%s384 + $0x160] sm:$0xff]
                  %431 = vst [vmem:[%s385 + $0xb0] sm:$0xff] %v430
                  %v432 = vld [vmem:[%s384 + $0x170] sm:$0xff]
                  %433 = vst [vmem:[%s385 + $0xb8] sm:$0xff] %v432
                  %v434 = vld [vmem:[%s384 + $0x180] sm:$0xff]
                  %435 = vst [vmem:[%s385 + $0xc0] sm:$0xff] %v434
                  %v436 = vld [vmem:[%s384 + $0x190] sm:$0xff]
                  %437 = vst [vmem:[%s385 + $0xc8] sm:$0xff] %v436
                  %v438 = vld [vmem:[%s384 + $0x1a0] sm:$0xff]
                  %439 = vst [vmem:[%s385 + $0xd0] sm:$0xff] %v438
                  %v440 = vld [vmem:[%s384 + $0x1b0] sm:$0xff]
                  %441 = vst [vmem:[%s385 + $0xd8] sm:$0xff] %v440
                  %v442 = vld [vmem:[%s384 + $0x1c0] sm:$0xff]
                  %443 = vst [vmem:[%s385 + $0xe0] sm:$0xff] %v442
                  %v444 = vld [vmem:[%s384 + $0x1d0] sm:$0xff]
                  %445 = vst [vmem:[%s385 + $0xe8] sm:$0xff] %v444
                  %v446 = vld [vmem:[%s384 + $0x1e0] sm:$0xff]
                  %447 = vst [vmem:[%s385 + $0xf0] sm:$0xff] %v446
                  %v448 = vld [vmem:[%s384 + $0x1f0] sm:$0xff]
                  %449 = vst [vmem:[%s385 + $0xf8] sm:$0xff] %v448
                  %v450 = vld [vmem:[%s384 + $0x200] sm:$0xff]
                  %451 = vst [vmem:[%s385 + $0x100] sm:$0xff] %v450
                  %v452 = vld [vmem:[%s384 + $0x210] sm:$0xff]
                  %453 = vst [vmem:[%s385 + $0x108] sm:$0xff] %v452
                  %v454 = vld [vmem:[%s384 + $0x220] sm:$0xff]
                  %455 = vst [vmem:[%s385 + $0x110] sm:$0xff] %v454
                  %v456 = vld [vmem:[%s384 + $0x230] sm:$0xff]
                  %457 = vst [vmem:[%s385 + $0x118] sm:$0xff] %v456
                  %v458 = vld [vmem:[%s384 + $0x240] sm:$0xff]
                  %459 = vst [vmem:[%s385 + $0x120] sm:$0xff] %v458
                  %v460 = vld [vmem:[%s384 + $0x250] sm:$0xff]
                  %461 = vst [vmem:[%s385 + $0x128] sm:$0xff] %v460
                  %v462 = vld [vmem:[%s384 + $0x260] sm:$0xff]
                  %463 = vst [vmem:[%s385 + $0x130] sm:$0xff] %v462
                  %v464 = vld [vmem:[%s384 + $0x270] sm:$0xff]
                  %465 = vst [vmem:[%s385 + $0x138] sm:$0xff] %v464
                  %v466 = vld [vmem:[%s384 + $0x280] sm:$0xff]
                  %467 = vst [vmem:[%s385 + $0x140] sm:$0xff] %v466
                  %v468 = vld [vmem:[%s384 + $0x290] sm:$0xff]
                  %469 = vst [vmem:[%s385 + $0x148] sm:$0xff] %v468
                  %v470 = vld [vmem:[%s384 + $0x2a0] sm:$0xff]
                  %471 = vst [vmem:[%s385 + $0x150] sm:$0xff] %v470
                  %v472 = vld [vmem:[%s384 + $0x2b0] sm:$0xff]
                  %473 = vst [vmem:[%s385 + $0x158] sm:$0xff] %v472
                  %v474 = vld [vmem:[%s384 + $0x2c0] sm:$0xff]
                  %475 = vst [vmem:[%s385 + $0x160] sm:$0xff] %v474
                  %v476 = vld [vmem:[%s384 + $0x2d0] sm:$0xff]
                  %477 = vst [vmem:[%s385 + $0x168] sm:$0xff] %v476
                  %v478 = vld [vmem:[%s384 + $0x2e0] sm:$0xff]
                  %479 = vst [vmem:[%s385 + $0x170] sm:$0xff] %v478
                  %v480 = vld [vmem:[%s384 + $0x2f0] sm:$0xff]
                  %481 = vst [vmem:[%s385 + $0x178] sm:$0xff] %v480
                  %v482 = vld [vmem:[%s384 + $0x300] sm:$0xff]
                  %483 = vst [vmem:[%s385 + $0x180] sm:$0xff] %v482
                  %v484 = vld [vmem:[%s384 + $0x310] sm:$0xff]
                  %485 = vst [vmem:[%s385 + $0x188] sm:$0xff] %v484
                  %v486 = vld [vmem:[%s384 + $0x320] sm:$0xff]
                  %487 = vst [vmem:[%s385 + $0x190] sm:$0xff] %v486
                  %v488 = vld [vmem:[%s384 + $0x330] sm:$0xff]
                  %489 = vst [vmem:[%s385 + $0x198] sm:$0xff] %v488
                  %v490 = vld [vmem:[%s384 + $0x340] sm:$0xff]
                  %491 = vst [vmem:[%s385 + $0x1a0] sm:$0xff] %v490
                  %v492 = vld [vmem:[%s384 + $0x350] sm:$0xff]
                  %493 = vst [vmem:[%s385 + $0x1a8] sm:$0xff] %v492
                  %v494 = vld [vmem:[%s384 + $0x360] sm:$0xff]
                  %495 = vst [vmem:[%s385 + $0x1b0] sm:$0xff] %v494
                  %v496 = vld [vmem:[%s384 + $0x370] sm:$0xff]
                  %497 = vst [vmem:[%s385 + $0x1b8] sm:$0xff] %v496
                  %v498 = vld [vmem:[%s384 + $0x380] sm:$0xff]
                  %499 = vst [vmem:[%s385 + $0x1c0] sm:$0xff] %v498
                  %v500 = vld [vmem:[%s384 + $0x390] sm:$0xff]
                  %501 = vst [vmem:[%s385 + $0x1c8] sm:$0xff] %v500
                  %v502 = vld [vmem:[%s384 + $0x3a0] sm:$0xff]
                  %503 = vst [vmem:[%s385 + $0x1d0] sm:$0xff] %v502
                  %v504 = vld [vmem:[%s384 + $0x3b0] sm:$0xff]
                  %505 = vst [vmem:[%s385 + $0x1d8] sm:$0xff] %v504
                  %v506 = vld [vmem:[%s384 + $0x3c0] sm:$0xff]
                  %507 = vst [vmem:[%s385 + $0x1e0] sm:$0xff] %v506
                  %v508 = vld [vmem:[%s384 + $0x3d0] sm:$0xff]
                  %509 = vst [vmem:[%s385 + $0x1e8] sm:$0xff] %v508
                  %v510 = vld [vmem:[%s384 + $0x3e0] sm:$0xff]
                  %511 = vst [vmem:[%s385 + $0x1f0] sm:$0xff] %v510
                  %v512 = vld [vmem:[%s384 + $0x3f0] sm:$0xff]
                  %513 = vst [vmem:[%s385 + $0x1f8] sm:$0xff] %v512
                $region71: #{patch_discriminator_forward.8} parent=65 // loop_footer
                  %s383 = sadd.s32 1, %s379
                $region72: #{patch_discriminator_forward.8} parent=65 // loop_footer_branch
                  %378 = sbr.rel target = $region68
                $region73: #{patch_discriminator_forward.8} parent=65 // loop_exit
                  _
              $region66: #{patch_discriminator_forward.8} parent=50 // pred_fallthru
                _
              // Predicated region
              $region74: #{patch_discriminator_forward.8} parent=50 // pred_check
                _
              $region75: #{patch_discriminator_forward.8} parent=50 // pred_check_branch
                %515 = sbr.rel target = $region77
              $region76: #{patch_discriminator_forward.8} parent=50 // pred_region
                _
              $region77: #{patch_discriminator_forward.8} parent=50 // pred_fallthru
                _
            $region51: #{patch_discriminator_forward.8} parent=46 // pred_fallthru
              _
            // Predicated region
            $region52: #{patch_discriminator_forward.8} parent=46 // pred_check
              _
            $region53: #{patch_discriminator_forward.8} parent=46 // pred_check_branch
              %238 = sbr.rel target = $region55
            $region54: #{patch_discriminator_forward.8} parent=46 // pred_region
              loop: start=0, step=1, limit=1
              $region56: #{patch_discriminator_forward.8} parent=54 // loop_pre_header
                _
              $region57: #{patch_discriminator_forward.8} parent=54 // loop_header
                %s241 = sphi 0, %s245
                %p242 = scmp.ge.s32.totalorder %s241, 1
                %s246 = sphi %s232, %s232
                %s247 = sphi %s226, %s226
              $region58: #{patch_discriminator_forward.8} parent=54 // loop_header_branch
                %244 = sbr.rel (%p242) target = $region62
              $region59: #{patch_discriminator_forward.8} parent=54 // loop_body
                %v248 = vld [vmem:[%s246] sm:$0xff]
                %249 = vst [vmem:[%s247] sm:$0xff] %v248
                %v250 = vld [vmem:[%s246 + $0x10] sm:$0xff]
                %251 = vst [vmem:[%s247 + $0x8] sm:$0xff] %v250
                %v252 = vld [vmem:[%s246 + $0x20] sm:$0xff]
                %253 = vst [vmem:[%s247 + $0x10] sm:$0xff] %v252
                %v254 = vld [vmem:[%s246 + $0x30] sm:$0xff]
                %255 = vst [vmem:[%s247 + $0x18] sm:$0xff] %v254
                %v256 = vld [vmem:[%s246 + $0x40] sm:$0xff]
                %257 = vst [vmem:[%s247 + $0x20] sm:$0xff] %v256
                %v258 = vld [vmem:[%s246 + $0x50] sm:$0xff]
                %259 = vst [vmem:[%s247 + $0x28] sm:$0xff] %v258
                %v260 = vld [vmem:[%s246 + $0x60] sm:$0xff]
                %261 = vst [vmem:[%s247 + $0x30] sm:$0xff] %v260
                %v262 = vld [vmem:[%s246 + $0x70] sm:$0xff]
                %263 = vst [vmem:[%s247 + $0x38] sm:$0xff] %v262
                %v264 = vld [vmem:[%s246 + $0x80] sm:$0xff]
                %265 = vst [vmem:[%s247 + $0x40] sm:$0xff] %v264
                %v266 = vld [vmem:[%s246 + $0x90] sm:$0xff]
                %267 = vst [vmem:[%s247 + $0x48] sm:$0xff] %v266
                %v268 = vld [vmem:[%s246 + $0xa0] sm:$0xff]
                %269 = vst [vmem:[%s247 + $0x50] sm:$0xff] %v268
                %v270 = vld [vmem:[%s246 + $0xb0] sm:$0xff]
                %271 = vst [vmem:[%s247 + $0x58] sm:$0xff] %v270
                %v272 = vld [vmem:[%s246 + $0xc0] sm:$0xff]
                %273 = vst [vmem:[%s247 + $0x60] sm:$0xff] %v272
                %v274 = vld [vmem:[%s246 + $0xd0] sm:$0xff]
                %275 = vst [vmem:[%s247 + $0x68] sm:$0xff] %v274
                %v276 = vld [vmem:[%s246 + $0xe0] sm:$0xff]
                %277 = vst [vmem:[%s247 + $0x70] sm:$0xff] %v276
                %v278 = vld [vmem:[%s246 + $0xf0] sm:$0xff]
                %279 = vst [vmem:[%s247 + $0x78] sm:$0xff] %v278
                %v280 = vld [vmem:[%s246 + $0x100] sm:$0xff]
                %281 = vst [vmem:[%s247 + $0x80] sm:$0xff] %v280
                %v282 = vld [vmem:[%s246 + $0x110] sm:$0xff]
                %283 = vst [vmem:[%s247 + $0x88] sm:$0xff] %v282
                %v284 = vld [vmem:[%s246 + $0x120] sm:$0xff]
                %285 = vst [vmem:[%s247 + $0x90] sm:$0xff] %v284
                %v286 = vld [vmem:[%s246 + $0x130] sm:$0xff]
                %287 = vst [vmem:[%s247 + $0x98] sm:$0xff] %v286
                %v288 = vld [vmem:[%s246 + $0x140] sm:$0xff]
                %289 = vst [vmem:[%s247 + $0xa0] sm:$0xff] %v288
                %v290 = vld [vmem:[%s246 + $0x150] sm:$0xff]
                %291 = vst [vmem:[%s247 + $0xa8] sm:$0xff] %v290
                %v292 = vld [vmem:[%s246 + $0x160] sm:$0xff]
                %293 = vst [vmem:[%s247 + $0xb0] sm:$0xff] %v292
                %v294 = vld [vmem:[%s246 + $0x170] sm:$0xff]
                %295 = vst [vmem:[%s247 + $0xb8] sm:$0xff] %v294
                %v296 = vld [vmem:[%s246 + $0x180] sm:$0xff]
                %297 = vst [vmem:[%s247 + $0xc0] sm:$0xff] %v296
                %v298 = vld [vmem:[%s246 + $0x190] sm:$0xff]
                %299 = vst [vmem:[%s247 + $0xc8] sm:$0xff] %v298
                %v300 = vld [vmem:[%s246 + $0x1a0] sm:$0xff]
                %301 = vst [vmem:[%s247 + $0xd0] sm:$0xff] %v300
                %v302 = vld [vmem:[%s246 + $0x1b0] sm:$0xff]
                %303 = vst [vmem:[%s247 + $0xd8] sm:$0xff] %v302
                %v304 = vld [vmem:[%s246 + $0x1c0] sm:$0xff]
                %305 = vst [vmem:[%s247 + $0xe0] sm:$0xff] %v304
                %v306 = vld [vmem:[%s246 + $0x1d0] sm:$0xff]
                %307 = vst [vmem:[%s247 + $0xe8] sm:$0xff] %v306
                %v308 = vld [vmem:[%s246 + $0x1e0] sm:$0xff]
                %309 = vst [vmem:[%s247 + $0xf0] sm:$0xff] %v308
                %v310 = vld [vmem:[%s246 + $0x1f0] sm:$0xff]
                %311 = vst [vmem:[%s247 + $0xf8] sm:$0xff] %v310
                %v312 = vld [vmem:[%s246 + $0x200] sm:$0xff]
                %313 = vst [vmem:[%s247 + $0x100] sm:$0xff] %v312
                %v314 = vld [vmem:[%s246 + $0x210] sm:$0xff]
                %315 = vst [vmem:[%s247 + $0x108] sm:$0xff] %v314
                %v316 = vld [vmem:[%s246 + $0x220] sm:$0xff]
                %317 = vst [vmem:[%s247 + $0x110] sm:$0xff] %v316
                %v318 = vld [vmem:[%s246 + $0x230] sm:$0xff]
                %319 = vst [vmem:[%s247 + $0x118] sm:$0xff] %v318
                %v320 = vld [vmem:[%s246 + $0x240] sm:$0xff]
                %321 = vst [vmem:[%s247 + $0x120] sm:$0xff] %v320
                %v322 = vld [vmem:[%s246 + $0x250] sm:$0xff]
                %323 = vst [vmem:[%s247 + $0x128] sm:$0xff] %v322
                %v324 = vld [vmem:[%s246 + $0x260] sm:$0xff]
                %325 = vst [vmem:[%s247 + $0x130] sm:$0xff] %v324
                %v326 = vld [vmem:[%s246 + $0x270] sm:$0xff]
                %327 = vst [vmem:[%s247 + $0x138] sm:$0xff] %v326
                %v328 = vld [vmem:[%s246 + $0x280] sm:$0xff]
                %329 = vst [vmem:[%s247 + $0x140] sm:$0xff] %v328
                %v330 = vld [vmem:[%s246 + $0x290] sm:$0xff]
                %331 = vst [vmem:[%s247 + $0x148] sm:$0xff] %v330
                %v332 = vld [vmem:[%s246 + $0x2a0] sm:$0xff]
                %333 = vst [vmem:[%s247 + $0x150] sm:$0xff] %v332
                %v334 = vld [vmem:[%s246 + $0x2b0] sm:$0xff]
                %335 = vst [vmem:[%s247 + $0x158] sm:$0xff] %v334
                %v336 = vld [vmem:[%s246 + $0x2c0] sm:$0xff]
                %337 = vst [vmem:[%s247 + $0x160] sm:$0xff] %v336
                %v338 = vld [vmem:[%s246 + $0x2d0] sm:$0xff]
                %339 = vst [vmem:[%s247 + $0x168] sm:$0xff] %v338
                %v340 = vld [vmem:[%s246 + $0x2e0] sm:$0xff]
                %341 = vst [vmem:[%s247 + $0x170] sm:$0xff] %v340
                %v342 = vld [vmem:[%s246 + $0x2f0] sm:$0xff]
                %343 = vst [vmem:[%s247 + $0x178] sm:$0xff] %v342
                %v344 = vld [vmem:[%s246 + $0x300] sm:$0xff]
                %345 = vst [vmem:[%s247 + $0x180] sm:$0xff] %v344
                %v346 = vld [vmem:[%s246 + $0x310] sm:$0xff]
                %347 = vst [vmem:[%s247 + $0x188] sm:$0xff] %v346
                %v348 = vld [vmem:[%s246 + $0x320] sm:$0xff]
                %349 = vst [vmem:[%s247 + $0x190] sm:$0xff] %v348
                %v350 = vld [vmem:[%s246 + $0x330] sm:$0xff]
                %351 = vst [vmem:[%s247 + $0x198] sm:$0xff] %v350
                %v352 = vld [vmem:[%s246 + $0x340] sm:$0xff]
                %353 = vst [vmem:[%s247 + $0x1a0] sm:$0xff] %v352
                %v354 = vld [vmem:[%s246 + $0x350] sm:$0xff]
                %355 = vst [vmem:[%s247 + $0x1a8] sm:$0xff] %v354
                %v356 = vld [vmem:[%s246 + $0x360] sm:$0xff]
                %357 = vst [vmem:[%s247 + $0x1b0] sm:$0xff] %v356
                %v358 = vld [vmem:[%s246 + $0x370] sm:$0xff]
                %359 = vst [vmem:[%s247 + $0x1b8] sm:$0xff] %v358
                %v360 = vld [vmem:[%s246 + $0x380] sm:$0xff]
                %361 = vst [vmem:[%s247 + $0x1c0] sm:$0xff] %v360
                %v362 = vld [vmem:[%s246 + $0x390] sm:$0xff]
                %363 = vst [vmem:[%s247 + $0x1c8] sm:$0xff] %v362
                %v364 = vld [vmem:[%s246 + $0x3a0] sm:$0xff]
                %365 = vst [vmem:[%s247 + $0x1d0] sm:$0xff] %v364
                %v366 = vld [vmem:[%s246 + $0x3b0] sm:$0xff]
                %367 = vst [vmem:[%s247 + $0x1d8] sm:$0xff] %v366
                %v368 = vld [vmem:[%s246 + $0x3c0] sm:$0xff]
                %369 = vst [vmem:[%s247 + $0x1e0] sm:$0xff] %v368
                %v370 = vld [vmem:[%s246 + $0x3d0] sm:$0xff]
                %371 = vst [vmem:[%s247 + $0x1e8] sm:$0xff] %v370
                %v372 = vld [vmem:[%s246 + $0x3e0] sm:$0xff]
                %373 = vst [vmem:[%s247 + $0x1f0] sm:$0xff] %v372
                %v374 = vld [vmem:[%s246 + $0x3f0] sm:$0xff]
                %375 = vst [vmem:[%s247 + $0x1f8] sm:$0xff] %v374
              $region60: #{patch_discriminator_forward.8} parent=54 // loop_footer
                %s245 = sadd.s32 1, %s241
              $region61: #{patch_discriminator_forward.8} parent=54 // loop_footer_branch
                %240 = sbr.rel target = $region57
              $region62: #{patch_discriminator_forward.8} parent=54 // loop_exit
                _
            $region55: #{patch_discriminator_forward.8} parent=46 // pred_fallthru
              _
          $region47: #{patch_discriminator_forward.8} parent=42 // pred_fallthru
            _
          %516 = vnop
        $region43: #{patch_discriminator_forward.8} parent=15 // pred_fallthru
          _
        // Predicated region
        $region78: #{patch_discriminator_forward.8} parent=15 // pred_check
          %p517 = pneg %p105
        $region79: #{patch_discriminator_forward.8} parent=15 // pred_check_branch
          %519 = sbr.rel (%p517) target = $region81
        $region80: #{patch_discriminator_forward.8} parent=15 // pred_region
          %s520 = smul.u32 2, %s18
          %p521 = scmp.lt.s32.totalorder %s520, 3
          %s522 = scalar_select %p521, %s520, 3
          %s523 = scalar_lea.vmem %s2, %s522
          %s524 = smul.u32 2, %s18
        $region81: #{patch_discriminator_forward.8} parent=15 // pred_fallthru
          _
        // Predicated region
        $region82: #{patch_discriminator_forward.8} parent=15 // pred_check
          %p525 = pneg %p131
        $region83: #{patch_discriminator_forward.8} parent=15 // pred_check_branch
          %527 = sbr.rel (%p525) target = $region85
        $region84: #{patch_discriminator_forward.8} parent=15 // pred_region
          %s528 = smul.u32 2, %s18
          %p529 = scmp.lt.s32.totalorder %s528, 3
          %s530 = scalar_select %p529, %s528, 3
          %s531 = scalar_lea.vmem %s3, %s530
          %s532 = smul.u32 2, %s18
        $region85: #{patch_discriminator_forward.8} parent=15 // pred_fallthru
          _
      $region16: #{patch_discriminator_forward.8} parent=5 // pred_fallthru
        _
      %p533 = scmp.le.s32.totalorder 1, %s10
      %p534 = scmp.lt.s32.totalorder %s10, 17
      %p535 = pnand %p533, %p534
      %p536 = pneg %p535
      // Predicated region
      $region86: #{patch_discriminator_forward.8} parent=5 // pred_check
        _
      $region87: #{patch_discriminator_forward.8} parent=5 // pred_check_branch
        %538 = sbr.rel (%p535) target = $region89
      $region88: #{patch_discriminator_forward.8} parent=5 // pred_region
        %s539 = ssub.s32 %s10, 1
        %s540 = sand.u32 %s44, 1
        %s541 = sand.u32 %s44, 1
        %s542 = smul.addr %s541, 32
        %s543 = scalar_lea.vmem [#allocation3], %s542
        // Predicated region
        $region90: #{patch_discriminator_forward.8} parent=88 // pred_check
          %p544 = pneg %p57
        $region91: #{patch_discriminator_forward.8} parent=88 // pred_check_branch
          %546 = sbr.rel (%p544) target = $region93
        $region92: #{patch_discriminator_forward.8} parent=88 // pred_region
          _
        $region93: #{patch_discriminator_forward.8} parent=88 // pred_fallthru
          _
        %s547 = sand.u32 %s72, 1
        %s548 = sand.u32 %s72, 1
        %s549 = smul.addr %s548, 512
        %s550 = scalar_lea.vmem [#allocation4], %s549
        // Predicated region
        $region94: #{patch_discriminator_forward.8} parent=88 // pred_check
          %p551 = pneg %p85
        $region95: #{patch_discriminator_forward.8} parent=88 // pred_check_branch
          %553 = sbr.rel (%p551) target = $region97
        $region96: #{patch_discriminator_forward.8} parent=88 // pred_region
          _
        $region97: #{patch_discriminator_forward.8} parent=88 // pred_fallthru
          _
        %s554 = sand.u32 %s44, 1
        %s555 = sand.u32 %s44, 1
        %s556 = smul.addr %s555, 32
        %s557 = scalar_lea.vmem [#allocation3], %s556
        %p558 = pneg %p57
        %p559 = pneg %p54
        %s560 = sand.u32 %s72, 1
        %s561 = sand.u32 %s72, 1
        %s562 = smul.addr %s561, 512
        %s563 = scalar_lea.vmem [#allocation4], %s562
        %p564 = pneg %p85
        %p565 = pneg %p82
        %s566 = smul.u32 2, %s21
        %p567 = scmp.lt.s32.totalorder %s566, 3
        %s568 = scalar_select %p567, %s566, 3
        %s569 = scalar_lea.vmem %s2, %s568
        %p570 = pneg %p111
        %p571 = pneg %p108
        %s572 = smul.u32 2, %s21
        %p573 = scmp.lt.s32.totalorder %s572, 3
        %s574 = scalar_select %p573, %s572, 3
        %s575 = scalar_lea.vmem %s3, %s574
        %p576 = pneg %p137
        %p577 = pneg %p134
        %p578 = pneg %p165
        %p579 = pneg %p162
        %s580 = sand.u32 %s152, 1
        %s581 = sand.u32 %s152, 1
        %s582 = smul.addr %s581, 32
        %s583 = scalar_lea.vmem [#allocation5], %s582
        %s584 = smul.u32 2, %s20
        %s585 = smul.u32 4, %s22
        %s586 = smul.u32 64, %s22
        %s587 = smul.u32 2, %s21
        %s588 = smul.u32 2, %s21
        %p589 = scmp.lt.s32.totalorder %s588, 3
        %s590 = scalar_select %p589, %s588, 3
        %s591 = scalar_lea.vmem %s2, %s590
        %s592 = smul.u32 2, %s21
        %s593 = smul.u32 2, %s21
        %p594 = scmp.lt.s32.totalorder %s593, 3
        %s595 = scalar_select %p594, %s593, 3
        %s596 = scalar_lea.vmem %s3, %s595
        %s597 = smul.u32 2, %s21
        %s598 = smul.u32 2, %s20
        %s599 = smul.u32 2, %s21
        %p600 = scmp.eq.s32.totalorder %s22, 0
        // Predicated region
        $region98: #{patch_discriminator_forward.8} parent=88 // pred_check
          %p601 = pneg %p600
        $region99: #{patch_discriminator_forward.8} parent=88 // pred_check_branch
          %603 = sbr.rel (%p601) target = $region101
        $region100: #{patch_discriminator_forward.8} parent=88 // pred_region
          %604 = vst [vmem:[#allocation2] sm:$0xff] 0.0
          %605 = vst [vmem:[#allocation2 + $0x8] sm:$0xff] 0.0
          %606 = vst [vmem:[#allocation2 + $0x10] sm:$0xff] 0.0
          %607 = vst [vmem:[#allocation2 + $0x18] sm:$0xff] 0.0
        $region101: #{patch_discriminator_forward.8} parent=88 // pred_fallthru
          _
        %v608 = vld [vmem:[#allocation2] sm:$0xff]
        %v609 = vld [vmem:[#allocation2 + $0x8] sm:$0xff]
        %v610 = vld [vmem:[#allocation2 + $0x10] sm:$0xff]
        %v611 = vld [vmem:[#allocation2 + $0x18] sm:$0xff]
        %v612 = vld [vmem:[%s543] sm:$0xff]
        %v613 = vld [vmem:[%s543 + $0x8] sm:$0xff]
        %v614 = vld [vmem:[%s543 + $0x10] sm:$0xff]
        %v615 = vld [vmem:[%s543 + $0x18] sm:$0xff]
        %v616 = vld [vmem:[%s550] sm:$0xff]
        %v617 = vld [vmem:[%s550 + $0x8] sm:$0xff]
        %v618 = vld [vmem:[%s550 + $0x10] sm:$0xff]
        %v619 = vld [vmem:[%s550 + $0x18] sm:$0xff]
        %v620 = vld [vmem:[%s550 + $0x20] sm:$0xff]
        %v621 = vld [vmem:[%s550 + $0x28] sm:$0xff]
        %v622 = vld [vmem:[%s550 + $0x30] sm:$0xff]
        %v623 = vld [vmem:[%s550 + $0x38] sm:$0xff]
        %v624 = vld [vmem:[%s550 + $0x40] sm:$0xff]
        %v625 = vld [vmem:[%s550 + $0x48] sm:$0xff]
        %v626 = vld [vmem:[%s550 + $0x50] sm:$0xff]
        %v627 = vld [vmem:[%s550 + $0x58] sm:$0xff]
        %v628 = vld [vmem:[%s550 + $0x60] sm:$0xff]
        %v629 = vld [vmem:[%s550 + $0x68] sm:$0xff]
        %v630 = vld [vmem:[%s550 + $0x70] sm:$0xff]
        %v631 = vld [vmem:[%s550 + $0x78] sm:$0xff]
        %v632 = vld [vmem:[%s550 + $0x80] sm:$0xff]
        %v633 = vld [vmem:[%s550 + $0x88] sm:$0xff]
        %v634 = vld [vmem:[%s550 + $0x90] sm:$0xff]
        %v635 = vld [vmem:[%s550 + $0x98] sm:$0xff]
        %v636 = vld [vmem:[%s550 + $0xa0] sm:$0xff]
        %v637 = vld [vmem:[%s550 + $0xa8] sm:$0xff]
        %v638 = vld [vmem:[%s550 + $0xb0] sm:$0xff]
        %v639 = vld [vmem:[%s550 + $0xb8] sm:$0xff]
        %v640 = vld [vmem:[%s550 + $0xc0] sm:$0xff]
        %v641 = vld [vmem:[%s550 + $0xc8] sm:$0xff]
        %v642 = vld [vmem:[%s550 + $0xd0] sm:$0xff]
        %v643 = vld [vmem:[%s550 + $0xd8] sm:$0xff]
        %v644 = vld [vmem:[%s550 + $0xe0] sm:$0xff]
        %v645 = vld [vmem:[%s550 + $0xe8] sm:$0xff]
        %v646 = vld [vmem:[%s550 + $0xf0] sm:$0xff]
        %v647 = vld [vmem:[%s550 + $0xf8] sm:$0xff]
        %v648 = vld [vmem:[%s550 + $0x100] sm:$0xff]
        %v649 = vld [vmem:[%s550 + $0x108] sm:$0xff]
        %v650 = vld [vmem:[%s550 + $0x110] sm:$0xff]
        %v651 = vld [vmem:[%s550 + $0x118] sm:$0xff]
        %v652 = vld [vmem:[%s550 + $0x120] sm:$0xff]
        %v653 = vld [vmem:[%s550 + $0x128] sm:$0xff]
        %v654 = vld [vmem:[%s550 + $0x130] sm:$0xff]
        %v655 = vld [vmem:[%s550 + $0x138] sm:$0xff]
        %v656 = vld [vmem:[%s550 + $0x140] sm:$0xff]
        %v657 = vld [vmem:[%s550 + $0x148] sm:$0xff]
        %v658 = vld [vmem:[%s550 + $0x150] sm:$0xff]
        %v659 = vld [vmem:[%s550 + $0x158] sm:$0xff]
        %v660 = vld [vmem:[%s550 + $0x160] sm:$0xff]
        %v661 = vld [vmem:[%s550 + $0x168] sm:$0xff]
        %v662 = vld [vmem:[%s550 + $0x170] sm:$0xff]
        %v663 = vld [vmem:[%s550 + $0x178] sm:$0xff]
        %v664 = vld [vmem:[%s550 + $0x180] sm:$0xff]
        %v665 = vld [vmem:[%s550 + $0x188] sm:$0xff]
        %v666 = vld [vmem:[%s550 + $0x190] sm:$0xff]
        %v667 = vld [vmem:[%s550 + $0x198] sm:$0xff]
        %v668 = vld [vmem:[%s550 + $0x1a0] sm:$0xff]
        %v669 = vld [vmem:[%s550 + $0x1a8] sm:$0xff]
        %v670 = vld [vmem:[%s550 + $0x1b0] sm:$0xff]
        %v671 = vld [vmem:[%s550 + $0x1b8] sm:$0xff]
        %v672 = vld [vmem:[%s550 + $0x1c0] sm:$0xff]
        %v673 = vld [vmem:[%s550 + $0x1c8] sm:$0xff]
        %v674 = vld [vmem:[%s550 + $0x1d0] sm:$0xff]
        %v675 = vld [vmem:[%s550 + $0x1d8] sm:$0xff]
        %v676 = vld [vmem:[%s550 + $0x1e0] sm:$0xff]
        %v677 = vld [vmem:[%s550 + $0x1e8] sm:$0xff]
        %v678 = vld [vmem:[%s550 + $0x1f0] sm:$0xff]
        %v679 = vld [vmem:[%s550 + $0x1f8] sm:$0xff]
        %v684 = vunpack.c.l.b16 %v612
        %v685 = vunpack.c.h.b16 %v612
        %v686 = vunpack.c.l.b16 %v613
        %v687 = vunpack.c.h.b16 %v613
        %v688 = vunpack.c.l.b16 %v614
        %v689 = vunpack.c.h.b16 %v614
        %v690 = vunpack.c.l.b16 %v615
        %v691 = vunpack.c.h.b16 %v615
        %v692 = vpack.c.b16 %v688, %v684
        %v693 = vpack.c.b16 %v689, %v685
        %v694 = vpack.c.b16 %v690, %v686
        %v695 = vpack.c.b16 %v691, %v687
        %v764 = vunpack.c.l.b16 %v616
        %v765 = vunpack.c.h.b16 %v616
        %v766 = vunpack.c.l.b16 %v617
        %v767 = vunpack.c.h.b16 %v617
        %v768 = vunpack.c.l.b16 %v618
        %v769 = vunpack.c.h.b16 %v618
        %v770 = vunpack.c.l.b16 %v619
        %v771 = vunpack.c.h.b16 %v619
        %v772 = vunpack.c.l.b16 %v620
        %v773 = vunpack.c.h.b16 %v620
        %v774 = vunpack.c.l.b16 %v621
        %v775 = vunpack.c.h.b16 %v621
        %v776 = vunpack.c.l.b16 %v622
        %v777 = vunpack.c.h.b16 %v622
        %v778 = vunpack.c.l.b16 %v623
        %v779 = vunpack.c.h.b16 %v623
        %v780 = vunpack.c.l.b16 %v624
        %v781 = vunpack.c.h.b16 %v624
        %v782 = vunpack.c.l.b16 %v625
        %v783 = vunpack.c.h.b16 %v625
        %v784 = vunpack.c.l.b16 %v626
        %v785 = vunpack.c.h.b16 %v626
        %v786 = vunpack.c.l.b16 %v627
        %v787 = vunpack.c.h.b16 %v627
        %v788 = vunpack.c.l.b16 %v628
        %v789 = vunpack.c.h.b16 %v628
        %v790 = vunpack.c.l.b16 %v629
        %v791 = vunpack.c.h.b16 %v629
        %v792 = vunpack.c.l.b16 %v630
        %v793 = vunpack.c.h.b16 %v630
        %v794 = vunpack.c.l.b16 %v631
        %v795 = vunpack.c.h.b16 %v631
        %v796 = vunpack.c.l.b16 %v632
        %v797 = vunpack.c.h.b16 %v632
        %v798 = vunpack.c.l.b16 %v633
        %v799 = vunpack.c.h.b16 %v633
        %v800 = vunpack.c.l.b16 %v634
        %v801 = vunpack.c.h.b16 %v634
        %v802 = vunpack.c.l.b16 %v635
        %v803 = vunpack.c.h.b16 %v635
        %v804 = vunpack.c.l.b16 %v636
        %v805 = vunpack.c.h.b16 %v636
        %v806 = vunpack.c.l.b16 %v637
        %v807 = vunpack.c.h.b16 %v637
        %v808 = vunpack.c.l.b16 %v638
        %v809 = vunpack.c.h.b16 %v638
        %v810 = vunpack.c.l.b16 %v639
        %v811 = vunpack.c.h.b16 %v639
        %v812 = vunpack.c.l.b16 %v640
        %v813 = vunpack.c.h.b16 %v640
        %v814 = vunpack.c.l.b16 %v641
        %v815 = vunpack.c.h.b16 %v641
        %v816 = vunpack.c.l.b16 %v642
        %v817 = vunpack.c.h.b16 %v642
        %v818 = vunpack.c.l.b16 %v643
        %v819 = vunpack.c.h.b16 %v643
        %v820 = vunpack.c.l.b16 %v644
        %v821 = vunpack.c.h.b16 %v644
        %v822 = vunpack.c.l.b16 %v645
        %v823 = vunpack.c.h.b16 %v645
        %v824 = vunpack.c.l.b16 %v646
        %v825 = vunpack.c.h.b16 %v646
        %v826 = vunpack.c.l.b16 %v647
        %v827 = vunpack.c.h.b16 %v647
        %v828 = vunpack.c.l.b16 %v648
        %v829 = vunpack.c.h.b16 %v648
        %v830 = vunpack.c.l.b16 %v649
        %v831 = vunpack.c.h.b16 %v649
        %v832 = vunpack.c.l.b16 %v650
        %v833 = vunpack.c.h.b16 %v650
        %v834 = vunpack.c.l.b16 %v651
        %v835 = vunpack.c.h.b16 %v651
        %v836 = vunpack.c.l.b16 %v652
        %v837 = vunpack.c.h.b16 %v652
        %v838 = vunpack.c.l.b16 %v653
        %v839 = vunpack.c.h.b16 %v653
        %v840 = vunpack.c.l.b16 %v654
        %v841 = vunpack.c.h.b16 %v654
        %v842 = vunpack.c.l.b16 %v655
        %v843 = vunpack.c.h.b16 %v655
        %v844 = vunpack.c.l.b16 %v656
        %v845 = vunpack.c.h.b16 %v656
        %v846 = vunpack.c.l.b16 %v657
        %v847 = vunpack.c.h.b16 %v657
        %v848 = vunpack.c.l.b16 %v658
        %v849 = vunpack.c.h.b16 %v658
        %v850 = vunpack.c.l.b16 %v659
        %v851 = vunpack.c.h.b16 %v659
        %v852 = vunpack.c.l.b16 %v660
        %v853 = vunpack.c.h.b16 %v660
        %v854 = vunpack.c.l.b16 %v661
        %v855 = vunpack.c.h.b16 %v661
        %v856 = vunpack.c.l.b16 %v662
        %v857 = vunpack.c.h.b16 %v662
        %v858 = vunpack.c.l.b16 %v663
        %v859 = vunpack.c.h.b16 %v663
        %v860 = vunpack.c.l.b16 %v664
        %v861 = vunpack.c.h.b16 %v664
        %v862 = vunpack.c.l.b16 %v665
        %v863 = vunpack.c.h.b16 %v665
        %v864 = vunpack.c.l.b16 %v666
        %v865 = vunpack.c.h.b16 %v666
        %v866 = vunpack.c.l.b16 %v667
        %v867 = vunpack.c.h.b16 %v667
        %v868 = vunpack.c.l.b16 %v668
        %v869 = vunpack.c.h.b16 %v668
        %v870 = vunpack.c.l.b16 %v669
        %v871 = vunpack.c.h.b16 %v669
        %v872 = vunpack.c.l.b16 %v670
        %v873 = vunpack.c.h.b16 %v670
        %v874 = vunpack.c.l.b16 %v671
        %v875 = vunpack.c.h.b16 %v671
        %v876 = vunpack.c.l.b16 %v672
        %v877 = vunpack.c.h.b16 %v672
        %v878 = vunpack.c.l.b16 %v673
        %v879 = vunpack.c.h.b16 %v673
        %v880 = vunpack.c.l.b16 %v674
        %v881 = vunpack.c.h.b16 %v674
        %v882 = vunpack.c.l.b16 %v675
        %v883 = vunpack.c.h.b16 %v675
        %v884 = vunpack.c.l.b16 %v676
        %v885 = vunpack.c.h.b16 %v676
        %v886 = vunpack.c.l.b16 %v677
        %v887 = vunpack.c.h.b16 %v677
        %v888 = vunpack.c.l.b16 %v678
        %v889 = vunpack.c.h.b16 %v678
        %v890 = vunpack.c.l.b16 %v679
        %v891 = vunpack.c.h.b16 %v679
        %v892 = vpack.c.b16 %v766, %v764
        %v893 = vpack.c.b16 %v767, %v765
        %v894 = vpack.c.b16 %v770, %v768
        %v895 = vpack.c.b16 %v771, %v769
        %v896 = vpack.c.b16 %v774, %v772
        %v897 = vpack.c.b16 %v775, %v773
        %v898 = vpack.c.b16 %v778, %v776
        %v899 = vpack.c.b16 %v779, %v777
        %v900 = vpack.c.b16 %v782, %v780
        %v901 = vpack.c.b16 %v783, %v781
        %v902 = vpack.c.b16 %v786, %v784
        %v903 = vpack.c.b16 %v787, %v785
        %v904 = vpack.c.b16 %v790, %v788
        %v905 = vpack.c.b16 %v791, %v789
        %v906 = vpack.c.b16 %v794, %v792
        %v907 = vpack.c.b16 %v795, %v793
        %v908 = vpack.c.b16 %v798, %v796
        %v909 = vpack.c.b16 %v799, %v797
        %v910 = vpack.c.b16 %v802, %v800
        %v911 = vpack.c.b16 %v803, %v801
        %v912 = vpack.c.b16 %v806, %v804
        %v913 = vpack.c.b16 %v807, %v805
        %v914 = vpack.c.b16 %v810, %v808
        %v915 = vpack.c.b16 %v811, %v809
        %v916 = vpack.c.b16 %v814, %v812
        %v917 = vpack.c.b16 %v815, %v813
        %v918 = vpack.c.b16 %v818, %v816
        %v919 = vpack.c.b16 %v819, %v817
        %v920 = vpack.c.b16 %v822, %v820
        %v921 = vpack.c.b16 %v823, %v821
        %v922 = vpack.c.b16 %v826, %v824
        %v923 = vpack.c.b16 %v827, %v825
        %v924 = vpack.c.b16 %v830, %v828
        %v925 = vpack.c.b16 %v831, %v829
        %v926 = vpack.c.b16 %v834, %v832
        %v927 = vpack.c.b16 %v835, %v833
        %v928 = vpack.c.b16 %v838, %v836
        %v929 = vpack.c.b16 %v839, %v837
        %v930 = vpack.c.b16 %v842, %v840
        %v931 = vpack.c.b16 %v843, %v841
        %v932 = vpack.c.b16 %v846, %v844
        %v933 = vpack.c.b16 %v847, %v845
        %v934 = vpack.c.b16 %v850, %v848
        %v935 = vpack.c.b16 %v851, %v849
        %v936 = vpack.c.b16 %v854, %v852
        %v937 = vpack.c.b16 %v855, %v853
        %v938 = vpack.c.b16 %v858, %v856
        %v939 = vpack.c.b16 %v859, %v857
        %v940 = vpack.c.b16 %v862, %v860
        %v941 = vpack.c.b16 %v863, %v861
        %v942 = vpack.c.b16 %v866, %v864
        %v943 = vpack.c.b16 %v867, %v865
        %v944 = vpack.c.b16 %v870, %v868
        %v945 = vpack.c.b16 %v871, %v869
        %v946 = vpack.c.b16 %v874, %v872
        %v947 = vpack.c.b16 %v875, %v873
        %v948 = vpack.c.b16 %v878, %v876
        %v949 = vpack.c.b16 %v879, %v877
        %v950 = vpack.c.b16 %v882, %v880
        %v951 = vpack.c.b16 %v883, %v881
        %v952 = vpack.c.b16 %v886, %v884
        %v953 = vpack.c.b16 %v887, %v885
        %v954 = vpack.c.b16 %v890, %v888
        %v955 = vpack.c.b16 %v891, %v889
        %1020 = vmatprep.subr.bf16.mxu0 %v893
        %1021 = vmatpush1.bf16.msra.mxu0 %v892
        %1022 = vmatprep.subr.bf16.mxu0 %v895
        %1023 = vmatpush1.bf16.msra.mxu0 %v894
        %1024 = vmatprep.subr.bf16.mxu0 %v897
        %1025 = vmatpush1.bf16.msra.mxu0 %v896
        %1026 = vmatprep.subr.bf16.mxu0 %v899
        %1027 = vmatpush1.bf16.msra.mxu0 %v898
        %1028 = vmatprep.subr.bf16.mxu0 %v901
        %1029 = vmatpush1.bf16.msra.mxu0 %v900
        %1030 = vmatprep.subr.bf16.mxu0 %v903
        %1031 = vmatpush1.bf16.msra.mxu0 %v902
        %1032 = vmatprep.subr.bf16.mxu0 %v905
        %1033 = vmatpush1.bf16.msra.mxu0 %v904
        %1034 = vmatprep.subr.bf16.mxu0 %v907
        %1035 = vmatpush1.bf16.msra.mxu0 %v906
        %1036 = vmatprep.subr.bf16.mxu0 %v909
        %1037 = vmatpush1.bf16.msra.mxu0 %v908
        %1038 = vmatprep.subr.bf16.mxu0 %v911
        %1039 = vmatpush1.bf16.msra.mxu0 %v910
        %1040 = vmatprep.subr.bf16.mxu0 %v913
        %1041 = vmatpush1.bf16.msra.mxu0 %v912
        %1042 = vmatprep.subr.bf16.mxu0 %v915
        %1043 = vmatpush1.bf16.msra.mxu0 %v914
        %1044 = vmatprep.subr.bf16.mxu0 %v917
        %1045 = vmatpush1.bf16.msra.mxu0 %v916
        %1046 = vmatprep.subr.bf16.mxu0 %v919
        %1047 = vmatpush1.bf16.msra.mxu0 %v918
        %1048 = vmatprep.subr.bf16.mxu0 %v921
        %1049 = vmatpush1.bf16.msra.mxu0 %v920
        %1050 = vmatprep.subr.bf16.mxu0 %v923
        %1051 = vmatpush1.bf16.msra.mxu0 %v922
        %1052 = vmatprep.mubr.bf16.mxu0 %v693
        %1053 = vmatmul.mubr.bf16.gmra.mrb[0].mxu0 %v692
        %v1054 = vpop.f32.mrb[0].mxu0
        %v1055 = vadd.f32 0.0, %v1054
        %v1056 = vpop.f32.mrb[0].mxu0
        %v1057 = vadd.f32 0.0, %v1056
        %v1058 = vpop.f32.mrb[0].mxu0
        %v1059 = vadd.f32 0.0, %v1058
        %v1060 = vpop.f32.mrb[0].mxu0
        %v1061 = vadd.f32 0.0, %v1060
        %1062 = vdwg.mxu0
        %1063 = vmatprep.subr.bf16.mxu0 %v925
        %1064 = vmatpush1.bf16.msra.mxu0 %v924
        %1065 = vmatprep.subr.bf16.mxu0 %v927
        %1066 = vmatpush1.bf16.msra.mxu0 %v926
        %1067 = vmatprep.subr.bf16.mxu0 %v929
        %1068 = vmatpush1.bf16.msra.mxu0 %v928
        %1069 = vmatprep.subr.bf16.mxu0 %v931
        %1070 = vmatpush1.bf16.msra.mxu0 %v930
        %1071 = vmatprep.subr.bf16.mxu0 %v933
        %1072 = vmatpush1.bf16.msra.mxu0 %v932
        %1073 = vmatprep.subr.bf16.mxu0 %v935
        %1074 = vmatpush1.bf16.msra.mxu0 %v934
        %1075 = vmatprep.subr.bf16.mxu0 %v937
        %1076 = vmatpush1.bf16.msra.mxu0 %v936
        %1077 = vmatprep.subr.bf16.mxu0 %v939
        %1078 = vmatpush1.bf16.msra.mxu0 %v938
        %1079 = vmatprep.subr.bf16.mxu0 %v941
        %1080 = vmatpush1.bf16.msra.mxu0 %v940
        %1081 = vmatprep.subr.bf16.mxu0 %v943
        %1082 = vmatpush1.bf16.msra.mxu0 %v942
        %1083 = vmatprep.subr.bf16.mxu0 %v945
        %1084 = vmatpush1.bf16.msra.mxu0 %v944
        %1085 = vmatprep.subr.bf16.mxu0 %v947
        %1086 = vmatpush1.bf16.msra.mxu0 %v946
        %1087 = vmatprep.subr.bf16.mxu0 %v949
        %1088 = vmatpush1.bf16.msra.mxu0 %v948
        %1089 = vmatprep.subr.bf16.mxu0 %v951
        %1090 = vmatpush1.bf16.msra.mxu0 %v950
        %1091 = vmatprep.subr.bf16.mxu0 %v953
        %1092 = vmatpush1.bf16.msra.mxu0 %v952
        %1093 = vmatprep.subr.bf16.mxu0 %v955
        %1094 = vmatpush1.bf16.msra.mxu0 %v954
        %1095 = vmatprep.mubr.bf16.mxu0 %v695
        %1096 = vmatmul.mubr.bf16.gmra.mrb[0].mxu0 %v694
        %v1097 = vpop.f32.mrb[0].mxu0
        %v1098 = vadd.f32 %v1055, %v1097
        %v1099 = vpop.f32.mrb[0].mxu0
        %v1100 = vadd.f32 %v1057, %v1099
        %v1101 = vpop.f32.mrb[0].mxu0
        %v1102 = vadd.f32 %v1059, %v1101
        %v1103 = vpop.f32.mrb[0].mxu0
        %v1104 = vadd.f32 %v1061, %v1103
        %1105 = vdwg.mxu0
        %v1106 = vadd.f32 %v608, %v1098
        %v1107 = vadd.f32 %v609, %v1100
        %v1108 = vadd.f32 %v610, %v1102
        %v1109 = vadd.f32 %v611, %v1104
        %1110 = vst [vmem:[#allocation2] sm:$0xff] %v1106
        %1111 = vst [vmem:[#allocation2 + $0x8] sm:$0xff] %v1107
        %1112 = vst [vmem:[#allocation2 + $0x10] sm:$0xff] %v1108
        %1113 = vst [vmem:[#allocation2 + $0x18] sm:$0xff] %v1109
        %p1114 = scmp.eq.s32.totalorder %s22, 7
        // Predicated region
        $region102: #{patch_discriminator_forward.8} parent=88 // pred_check
          %p1115 = pneg %p1114
        $region103: #{patch_discriminator_forward.8} parent=88 // pred_check_branch
          %1117 = sbr.rel (%p1115) target = $region105
        $region104: #{patch_discriminator_forward.8} parent=88 // pred_region
          %v1118 = vld [vmem:[#allocation2] sm:$0xff]
          %v1119 = vld [vmem:[#allocation2 + $0x8] sm:$0xff]
          %v1120 = vld [vmem:[#allocation2 + $0x10] sm:$0xff]
          %v1121 = vld [vmem:[#allocation2 + $0x18] sm:$0xff]
          %v1122 = vld [vmem:[%s591] sm:$0x3]
          %v1124 = vlaneseq
          %v1125 = vshrl.u32 %v1124, 7
          %v1126 = vsub.s32 0, %v1125
          %v1127 = vrot.slane %v1122, %v1126
          %v1128 = vlaneseq
          %v1129 = vshrl.u32 %v1128, 7
          %v1130 = vsub.s32 1, %v1129
          %v1131 = vrot.slane %v1122, %v1130
          %v1134 = vmul.f32 %v1118, %v1127
          %v1135 = vmul.f32 %v1119, %v1131
          %v1136 = vmul.f32 %v1120, %v1127
          %v1137 = vmul.f32 %v1121, %v1131
          %v1138 = vld [vmem:[%s596] sm:$0x3]
          %v1140 = vlaneseq
          %v1141 = vshrl.u32 %v1140, 7
          %v1142 = vsub.s32 0, %v1141
          %v1143 = vrot.slane %v1138, %v1142
          %v1144 = vlaneseq
          %v1145 = vshrl.u32 %v1144, 7
          %v1146 = vsub.s32 1, %v1145
          %v1147 = vrot.slane %v1138, %v1146
          %v1150 = vadd.f32 %v1134, %v1143
          %v1151 = vadd.f32 %v1135, %v1147
          %v1152 = vadd.f32 %v1136, %v1143
          %v1153 = vadd.f32 %v1137, %v1147
          %vm1154 = vcmp.ge.f32.partialorder %v1150, 0.0
          %vm1155 = vcmp.ge.f32.partialorder %v1151, 0.0
          %vm1156 = vcmp.ge.f32.partialorder %v1152, 0.0
          %vm1157 = vcmp.ge.f32.partialorder %v1153, 0.0
          %v1158 = vmul.f32 %v1150, 0.2
          %v1159 = vmul.f32 %v1151, 0.2
          %v1160 = vmul.f32 %v1152, 0.2
          %v1161 = vmul.f32 %v1153, 0.2
          %v1162 = vsel %vm1154, %v1150, %v1158
          %v1163 = vsel %vm1155, %v1151, %v1159
          %v1164 = vsel %vm1156, %v1152, %v1160
          %v1165 = vsel %vm1157, %v1153, %v1161
          %1166 = vst [vmem:[%s583] sm:$0xff] %v1162
          %1167 = vst [vmem:[%s583 + $0x8] sm:$0xff] %v1163
          %1168 = vst [vmem:[%s583 + $0x10] sm:$0xff] %v1164
          %1169 = vst [vmem:[%s583 + $0x18] sm:$0xff] %v1165
        $region105: #{patch_discriminator_forward.8} parent=88 // pred_fallthru
          _
        %s1170 = sand.u32 %s152, 1
        %s1171 = sand.u32 %s152, 1
        %s1172 = smul.addr %s1171, 32
        %s1173 = scalar_lea.vmem [#allocation5], %s1172
        // Predicated region
        $region106: #{patch_discriminator_forward.8} parent=88 // pred_check
          %p1174 = pneg %p162
        $region107: #{patch_discriminator_forward.8} parent=88 // pred_check_branch
          %1176 = sbr.rel (%p1174) target = $region109
        $region108: #{patch_discriminator_forward.8} parent=88 // pred_region
          %s1177 = smul.u32 2, %s20
          %s1178 = smul.u32 2, %s21
          %s1179 = smul.addr %s1177, 4
          %s1180 = sadd.s32 %s1178, %s1179
          %s1181 = smul.addr %s1180, 8
          %s1182 = scalar_lea.vmem %s4, %s1181
          // Predicated region
          $region110: #{patch_discriminator_forward.8} parent=108 // pred_check
            _
          $region111: #{patch_discriminator_forward.8} parent=108 // pred_check_branch
            %1184 = sbr.rel (0) target = $region113
          $region112: #{patch_discriminator_forward.8} parent=108 // pred_region
            // Predicated region
            $region114: #{patch_discriminator_forward.8} parent=112 // pred_check
              _
            $region115: #{patch_discriminator_forward.8} parent=112 // pred_check_branch
              %1186 = sbr.rel (0) target = $region117
            $region116: #{patch_discriminator_forward.8} parent=112 // pred_region
              loop: start=0, step=1, limit=1
              $region118: #{patch_discriminator_forward.8} parent=116 // loop_pre_header
                _
              $region119: #{patch_discriminator_forward.8} parent=116 // loop_header
                %s1188 = sphi 0, %s1192
                %p1189 = scmp.ge.s32.totalorder %s1188, 1
                %s1193 = sphi %s1173, %s1173
                %s1194 = sphi %s1182, %s1182
              $region120: #{patch_discriminator_forward.8} parent=116 // loop_header_branch
                %1191 = sbr.rel (%p1189) target = $region124
              $region121: #{patch_discriminator_forward.8} parent=116 // loop_body
                %v1195 = vld [vmem:[%s1193] sm:$0xff]
                %1196 = vst [vmem:[%s1194] sm:$0xff] %v1195
                %v1197 = vld [vmem:[%s1193 + $0x8] sm:$0xff]
                %1198 = vst [vmem:[%s1194 + $0x8] sm:$0xff] %v1197
                %v1199 = vld [vmem:[%s1193 + $0x10] sm:$0xff]
                %1200 = vst [vmem:[%s1194 + $0x20] sm:$0xff] %v1199
                %v1201 = vld [vmem:[%s1193 + $0x18] sm:$0xff]
                %1202 = vst [vmem:[%s1194 + $0x28] sm:$0xff] %v1201
              $region122: #{patch_discriminator_forward.8} parent=116 // loop_footer
                %s1192 = sadd.s32 1, %s1188
              $region123: #{patch_discriminator_forward.8} parent=116 // loop_footer_branch
                %1187 = sbr.rel target = $region119
              $region124: #{patch_discriminator_forward.8} parent=116 // loop_exit
                _
            $region117: #{patch_discriminator_forward.8} parent=112 // pred_fallthru
              _
            // Predicated region
            $region125: #{patch_discriminator_forward.8} parent=112 // pred_check
              _
            $region126: #{patch_discriminator_forward.8} parent=112 // pred_check_branch
              %1204 = sbr.rel target = $region128
            $region127: #{patch_discriminator_forward.8} parent=112 // pred_region
              _
            $region128: #{patch_discriminator_forward.8} parent=112 // pred_fallthru
              _
          $region113: #{patch_discriminator_forward.8} parent=108 // pred_fallthru
            _
          %1205 = vnop
        $region109: #{patch_discriminator_forward.8} parent=88 // pred_fallthru
          _
      $region89: #{patch_discriminator_forward.8} parent=5 // pred_fallthru
        _
      %p1206 = scmp.le.s32.totalorder 2, %s10
      // Predicated region
      $region129: #{patch_discriminator_forward.8} parent=5 // pred_check
        %p1207 = pneg %p1206
      $region130: #{patch_discriminator_forward.8} parent=5 // pred_check_branch
        %1209 = sbr.rel (%p1207) target = $region132
      $region131: #{patch_discriminator_forward.8} parent=5 // pred_region
        %s1210 = ssub.s32 %s10, 2
        // Predicated region
        $region133: #{patch_discriminator_forward.8} parent=131 // pred_check
          %p1211 = pneg %p168
        $region134: #{patch_discriminator_forward.8} parent=131 // pred_check_branch
          %1213 = sbr.rel (%p1211) target = $region136
        $region135: #{patch_discriminator_forward.8} parent=131 // pred_region
          %s1214 = sand.u32 %s153, 1
          %s1215 = sand.u32 %s153, 1
          %s1216 = smul.addr %s1215, 32
          %s1217 = scalar_lea.vmem [#allocation5], %s1216
        $region136: #{patch_discriminator_forward.8} parent=131 // pred_fallthru
          _
      $region132: #{patch_discriminator_forward.8} parent=5 // pred_fallthru
        _
    $region6: #{patch_discriminator_forward.8} parent=1 // loop_footer
      %s14 = sadd.s32 1, %s10
    $region7: #{patch_discriminator_forward.8} parent=1 // loop_footer_branch
      %9 = sbr.rel target = $region3
    $region8: #{patch_discriminator_forward.8} parent=1 // loop_exit
      _

// kernel: patch_discriminator_forward.9
$region0: #{patch_discriminator_forward.9}
  #allocation0 [shape = 'u32[]', space=smem, size = 0x4, offset = 0x4, fixed_abs, tag = 'smem constant byte address 0x4 - core index']
  #allocation1 [shape = 'u32[144,128]{1,0:T(1,128)}', space=vmem, size = 0x12000, scoped, tag = 'internal scratch']
  #allocation2 [shape = 'f32[16,256]{1,0:T(8,128)}', space=vmem, size = 0x4000, scoped, tag = 'scratch operand']
  %s0 = inlined_call_operand.vmem [shape: bf16[16,8192], index: 0, kind: input, shape index: {}]
  %s1 = inlined_call_operand.vmem [shape: bf16[8192,512], index: 1, kind: input, shape index: {}]
  %s2 = inlined_call_operand.vmem [shape: f32[1,512], index: 2, kind: input, shape index: {}]
  %s3 = inlined_call_operand.vmem [shape: f32[1,512], index: 3, kind: input, shape index: {}]
  %s4 = inlined_call_operand.vmem [shape: f32[16,512], index: 4, kind: output, shape index: {}]
  %s5 = sld [smem:[#allocation0]]
  $region137: #{patch_discriminator_forward.9} parent=0
    _
  %s7 = ssub.s32 1, %s5
  %s8 = scalar_select 0, %s7, %s5
  $region1: #{patch_discriminator_forward.9} parent=0
    #allocation3 [shape = 'u8[32768]{0}', space=vmem, size = 0x8000, scoped, tag = 'input window, operand 0']
    #allocation4 [shape = 'u8[524288]{0}', space=vmem, size = 0x80000, scoped, tag = 'input window, operand 1']
    #allocation5 [shape = 'u8[32768]{0}', space=vmem, size = 0x8000, scoped, tag = 'output window, operand 0']
    loop: start=0, step=1, limit=34
    $region2: #{patch_discriminator_forward.9} parent=1 // loop_pre_header
      _
    $region3: #{patch_discriminator_forward.9} parent=1 // loop_header
      %s10 = sphi 0, %s14
      %p11 = scmp.ge.s32.totalorder %s10, 34
      %s17 = sphi 0, %s36
      %s18 = sphi 0, %s32
      %s19 = sphi 0, %s28
      %s20 = sphi 0, %s17
      %s21 = sphi 0, %s18
      %s22 = sphi 0, %s19
      %s23 = sphi 0, %s20
      %s24 = sphi 0, %s21
      %s25 = sphi 0, %s22
      %s41 = sphi 0, %s43
      %s44 = sphi 0, %s41
      %s45 = sphi 0, %s44
      %s61 = sphi 0, %s45
      %s69 = sphi 0, %s71
      %s72 = sphi 0, %s69
      %s73 = sphi 0, %s72
      %s89 = sphi 0, %s73
      %s95 = sphi 0, %s97
      %s98 = sphi 0, %s95
      %s99 = sphi 0, %s98
      %s115 = sphi 0, %s99
      %s121 = sphi 0, %s123
      %s124 = sphi 0, %s121
      %s125 = sphi 0, %s124
      %s141 = sphi 0, %s125
      %s149 = sphi 0, %s151
      %s152 = sphi 0, %s149
      %s153 = sphi 0, %s152
      %s169 = sphi 0, %s153
    $region4: #{patch_discriminator_forward.9} parent=1 // loop_header_branch
      %13 = sbr.rel (%p11) target = $region8
    $region5: #{patch_discriminator_forward.9} parent=1 // loop_body
      %s15 = ssub.s32 %s10, 1
      %s16 = ssub.s32 %s10, 2
      %s26 = sadd.s32 1, %s19
      %p27 = scmp.ge.s32.totalorder %s26, 16
      %s28 = scalar_select %p27, 0, %s26
      %s29 = sadd.s32 1, %s18
      %s30 = scalar_select %p27, %s29, %s18
      %p31 = scmp.ge.s32.totalorder %s30, 2
      %s32 = scalar_select %p31, 0, %s30
      %s33 = sadd.s32 1, %s17
      %s34 = scalar_select %p31, %s33, %s17
      %p35 = scmp.ge.s32.totalorder %s34, 1
      %s36 = scalar_select %p35, 0, %s34
      %s37 = ssub.s32 %s17, %s36
      %s38 = ssub.s32 %s19, %s28
      %s39 = sor.u32 %s37, %s38
      %p40 = scmp.eq.s32.totalorder %s39, 0
      %s42 = sadd.s32 %s41, 1
      %s43 = scalar_select %p40, %s41, %s42
      %p46 = pneg %p40
      %p47 = scmp.eq.s32.totalorder %s10, 31
      %p48 = por %p46, %p47
      %p49 = scmp.ne.s32.totalorder %s41, %s44
      %p50 = scmp.eq.s32.totalorder %s10, 0
      %p51 = por %p49, %p50
      %p52 = scmp.ne.s32.totalorder %s41, %s44
      %p53 = scmp.eq.s32.totalorder %s15, 31
      %p54 = por %p52, %p53
      %p55 = scmp.ne.s32.totalorder %s44, %s45
      %p56 = scmp.eq.s32.totalorder %s15, 0
      %p57 = por %p55, %p56
      %p58 = scmp.ne.s32.totalorder %s44, %s45
      %p59 = scmp.eq.s32.totalorder %s16, 31
      %p60 = por %p58, %p59
      %p62 = scmp.ne.s32.totalorder %s45, %s61
      %p63 = scmp.eq.s32.totalorder %s16, 0
      %p64 = por %p62, %p63
      %s65 = ssub.s32 %s19, %s28
      %s66 = ssub.s32 %s18, %s32
      %s67 = sor.u32 %s65, %s66
      %p68 = scmp.eq.s32.totalorder %s67, 0
      %s70 = sadd.s32 %s69, 1
      %s71 = scalar_select %p68, %s69, %s70
      %p74 = pneg %p68
      %p75 = scmp.eq.s32.totalorder %s10, 31
      %p76 = por %p74, %p75
      %p77 = scmp.ne.s32.totalorder %s69, %s72
      %p78 = scmp.eq.s32.totalorder %s10, 0
      %p79 = por %p77, %p78
      %p80 = scmp.ne.s32.totalorder %s69, %s72
      %p81 = scmp.eq.s32.totalorder %s15, 31
      %p82 = por %p80, %p81
      %p83 = scmp.ne.s32.totalorder %s72, %s73
      %p84 = scmp.eq.s32.totalorder %s15, 0
      %p85 = por %p83, %p84
      %p86 = scmp.ne.s32.totalorder %s72, %s73
      %p87 = scmp.eq.s32.totalorder %s16, 31
      %p88 = por %p86, %p87
      %p90 = scmp.ne.s32.totalorder %s73, %s89
      %p91 = scmp.eq.s32.totalorder %s16, 0
      %p92 = por %p90, %p91
      %s93 = ssub.s32 %s18, %s32
      %p94 = scmp.eq.s32.totalorder %s93, 0
      %s96 = sadd.s32 %s95, 1
      %s97 = scalar_select %p94, %s95, %s96
      %p100 = pneg %p94
      %p101 = scmp.eq.s32.totalorder %s10, 31
      %p102 = por %p100, %p101
      %p103 = scmp.ne.s32.totalorder %s95, %s98
      %p104 = scmp.eq.s32.totalorder %s10, 0
      %p105 = por %p103, %p104
      %p106 = scmp.ne.s32.totalorder %s95, %s98
      %p107 = scmp.eq.s32.totalorder %s15, 31
      %p108 = por %p106, %p107
      %p109 = scmp.ne.s32.totalorder %s98, %s99
      %p110 = scmp.eq.s32.totalorder %s15, 0
      %p111 = por %p109, %p110
      %p112 = scmp.ne.s32.totalorder %s98, %s99
      %p113 = scmp.eq.s32.totalorder %s16, 31
      %p114 = por %p112, %p113
      %p116 = scmp.ne.s32.totalorder %s99, %s115
      %p117 = scmp.eq.s32.totalorder %s16, 0
      %p118 = por %p116, %p117
      %s119 = ssub.s32 %s18, %s32
      %p120 = scmp.eq.s32.totalorder %s119, 0
      %s122 = sadd.s32 %s121, 1
      %s123 = scalar_select %p120, %s121, %s122
      %p126 = pneg %p120
      %p127 = scmp.eq.s32.totalorder %s10, 31
      %p128 = por %p126, %p127
      %p129 = scmp.ne.s32.totalorder %s121, %s124
      %p130 = scmp.eq.s32.totalorder %s10, 0
      %p131 = por %p129, %p130
      %p132 = scmp.ne.s32.totalorder %s121, %s124
      %p133 = scmp.eq.s32.totalorder %s15, 31
      %p134 = por %p132, %p133
      %p135 = scmp.ne.s32.totalorder %s124, %s125
      %p136 = scmp.eq.s32.totalorder %s15, 0
      %p137 = por %p135, %p136
      %p138 = scmp.ne.s32.totalorder %s124, %s125
      %p139 = scmp.eq.s32.totalorder %s16, 31
      %p140 = por %p138, %p139
      %p142 = scmp.ne.s32.totalorder %s125, %s141
      %p143 = scmp.eq.s32.totalorder %s16, 0
      %p144 = por %p142, %p143
      %s145 = ssub.s32 %s17, %s36
      %s146 = ssub.s32 %s18, %s32
      %s147 = sor.u32 %s145, %s146
      %p148 = scmp.eq.s32.totalorder %s147, 0
      %s150 = sadd.s32 %s149, 1
      %s151 = scalar_select %p148, %s149, %s150
      %p154 = pneg %p148
      %p155 = scmp.eq.s32.totalorder %s10, 31
      %p156 = por %p154, %p155
      %p157 = scmp.ne.s32.totalorder %s149, %s152
      %p158 = scmp.eq.s32.totalorder %s10, 0
      %p159 = por %p157, %p158
      %p160 = scmp.ne.s32.totalorder %s149, %s152
      %p161 = scmp.eq.s32.totalorder %s15, 31
      %p162 = por %p160, %p161
      %p163 = scmp.ne.s32.totalorder %s152, %s153
      %p164 = scmp.eq.s32.totalorder %s15, 0
      %p165 = por %p163, %p164
      %p166 = scmp.ne.s32.totalorder %s152, %s153
      %p167 = scmp.eq.s32.totalorder %s16, 31
      %p168 = por %p166, %p167
      %p170 = scmp.ne.s32.totalorder %s153, %s169
      %p171 = scmp.eq.s32.totalorder %s16, 0
      %p172 = por %p170, %p171
      %p173 = scmp.le.s32.totalorder 1, %s10
      %p174 = scmp.lt.s32.totalorder %s10, 33
      %p175 = pnand %p173, %p174
      %p176 = pneg %p175
      // Predicated region
      $region9: #{patch_discriminator_forward.9} parent=5 // pred_check
        _
      $region10: #{patch_discriminator_forward.9} parent=5 // pred_check_branch
        %178 = sbr.rel (%p175) target = $region12
      $region11: #{patch_discriminator_forward.9} parent=5 // pred_region
        %s179 = ssub.s32 %s10, 1
      $region12: #{patch_discriminator_forward.9} parent=5 // pred_fallthru
        _
      %p180 = scmp.lt.s32.totalorder %s10, 32
      // Predicated region
      $region13: #{patch_discriminator_forward.9} parent=5 // pred_check
        %p181 = pneg %p180
      $region14: #{patch_discriminator_forward.9} parent=5 // pred_check_branch
        %183 = sbr.rel (%p181) target = $region16
      $region15: #{patch_discriminator_forward.9} parent=5 // pred_region
        // Predicated region
        $region17: #{patch_discriminator_forward.9} parent=15 // pred_check
          %p184 = pneg %p51
        $region18: #{patch_discriminator_forward.9} parent=15 // pred_check_branch
          %186 = sbr.rel (%p184) target = $region20
        $region19: #{patch_discriminator_forward.9} parent=15 // pred_region
          %s187 = sand.u32 %s41, 1
          %s188 = sand.u32 %s41, 1
          %s189 = smul.addr %s188, 32
          %s190 = scalar_lea.vmem [#allocation3], %s189
          %s191 = smul.u32 2, %s17
          %s192 = smul.u32 4, %s19
          %s193 = smul.addr %s191, 64
          %s194 = sadd.s32 %s192, %s193
          %s195 = smul.addr %s194, 4
          %s196 = scalar_lea.vmem %s0, %s195
          // Predicated region
          $region21: #{patch_discriminator_forward.9} parent=19 // pred_check
            _
          $region22: #{patch_discriminator_forward.9} parent=19 // pred_check_branch
            %198 = sbr.rel (0) target = $region24
          $region23: #{patch_discriminator_forward.9} parent=19 // pred_region
            // Predicated region
            $region25: #{patch_discriminator_forward.9} parent=23 // pred_check
              _
            $region26: #{patch_discriminator_forward.9} parent=23 // pred_check_branch
              %200 = sbr.rel (0) target = $region28
            $region27: #{patch_discriminator_forward.9} parent=23 // pred_region
              loop: start=0, step=1, limit=1
              $region29: #{patch_discriminator_forward.9} parent=27 // loop_pre_header
                _
              $region30: #{patch_discriminator_forward.9} parent=27 // loop_header
                %s202 = sphi 0, %s206
                %p203 = scmp.ge.s32.totalorder %s202, 1
                %s207 = sphi %s196, %s196
                %s208 = sphi %s190, %s190
              $region31: #{patch_discriminator_forward.9} parent=27 // loop_header_branch
                %205 = sbr.rel (%p203) target = $region35
              $region32: #{patch_discriminator_forward.9} parent=27 // loop_body
                %v209 = vld [vmem:[%s207] sm:$0xff]
                %210 = vst [vmem:[%s208] sm:$0xff] %v209
                %v211 = vld [vmem:[%s207 + $0x8] sm:$0xff]
                %212 = vst [vmem:[%s208 + $0x8] sm:$0xff] %v211
                %v213 = vld [vmem:[%s207 + $0x100] sm:$0xff]
                %214 = vst [vmem:[%s208 + $0x10] sm:$0xff] %v213
                %v215 = vld [vmem:[%s207 + $0x108] sm:$0xff]
                %216 = vst [vmem:[%s208 + $0x18] sm:$0xff] %v215
              $region33: #{patch_discriminator_forward.9} parent=27 // loop_footer
                %s206 = sadd.s32 1, %s202
              $region34: #{patch_discriminator_forward.9} parent=27 // loop_footer_branch
                %201 = sbr.rel target = $region30
              $region35: #{patch_discriminator_forward.9} parent=27 // loop_exit
                _
            $region28: #{patch_discriminator_forward.9} parent=23 // pred_fallthru
              _
            // Predicated region
            $region36: #{patch_discriminator_forward.9} parent=23 // pred_check
              _
            $region37: #{patch_discriminator_forward.9} parent=23 // pred_check_branch
              %218 = sbr.rel target = $region39
            $region38: #{patch_discriminator_forward.9} parent=23 // pred_region
              _
            $region39: #{patch_discriminator_forward.9} parent=23 // pred_fallthru
              _
          $region24: #{patch_discriminator_forward.9} parent=19 // pred_fallthru
            _
          %219 = vnop
        $region20: #{patch_discriminator_forward.9} parent=15 // pred_fallthru
          _
        // Predicated region
        $region40: #{patch_discriminator_forward.9} parent=15 // pred_check
          %p220 = pneg %p79
        $region41: #{patch_discriminator_forward.9} parent=15 // pred_check_branch
          %222 = sbr.rel (%p220) target = $region43
        $region42: #{patch_discriminator_forward.9} parent=15 // pred_region
          %s223 = sand.u32 %s69, 1
          %s224 = sand.u32 %s69, 1
          %s225 = smul.addr %s224, 512
          %s226 = scalar_lea.vmem [#allocation4], %s225
          %s227 = smul.u32 64, %s19
          %s228 = smul.u32 2, %s18
          %s229 = smul.addr %s227, 4
          %s230 = sadd.s32 %s228, %s229
          %s231 = smul.addr %s230, 4
          %s232 = scalar_lea.vmem %s1, %s231
          // Predicated region
          $region44: #{patch_discriminator_forward.9} parent=42 // pred_check
            _
          $region45: #{patch_discriminator_forward.9} parent=42 // pred_check_branch
            %234 = sbr.rel (0) target = $region47
          $region46: #{patch_discriminator_forward.9} parent=42 // pred_region
            // Predicated region
            $region48: #{patch_discriminator_forward.9} parent=46 // pred_check
              _
            $region49: #{patch_discriminator_forward.9} parent=46 // pred_check_branch
              %236 = sbr.rel (0) target = $region51
            $region50: #{patch_discriminator_forward.9} parent=46 // pred_region
              // Predicated region
              $region63: #{patch_discriminator_forward.9} parent=50 // pred_check
                _
              $region64: #{patch_discriminator_forward.9} parent=50 // pred_check_branch
                %377 = sbr.rel (0) target = $region66
              $region65: #{patch_discriminator_forward.9} parent=50 // pred_region
                loop: start=0, step=1, limit=1
                $region67: #{patch_discriminator_forward.9} parent=65 // loop_pre_header
                  _
                $region68: #{patch_discriminator_forward.9} parent=65 // loop_header
                  %s379 = sphi 0, %s383
                  %p380 = scmp.ge.s32.totalorder %s379, 1
                  %s384 = sphi %s232, %s232
                  %s385 = sphi %s226, %s226
                $region69: #{patch_discriminator_forward.9} parent=65 // loop_header_branch
                  %382 = sbr.rel (%p380) target = $region73
                $region70: #{patch_discriminator_forward.9} parent=65 // loop_body
                  %v386 = vld [vmem:[%s384] sm:$0xff]
                  %387 = vst [vmem:[%s385] sm:$0xff] %v386
                  %v388 = vld [vmem:[%s384 + $0x10] sm:$0xff]
                  %389 = vst [vmem:[%s385 + $0x8] sm:$0xff] %v388
                  %v390 = vld [vmem:[%s384 + $0x20] sm:$0xff]
                  %391 = vst [vmem:[%s385 + $0x10] sm:$0xff] %v390
                  %v392 = vld [vmem:[%s384 + $0x30] sm:$0xff]
                  %393 = vst [vmem:[%s385 + $0x18] sm:$0xff] %v392
                  %v394 = vld [vmem:[%s384 + $0x40] sm:$0xff]
                  %395 = vst [vmem:[%s385 + $0x20] sm:$0xff] %v394
                  %v396 = vld [vmem:[%s384 + $0x50] sm:$0xff]
                  %397 = vst [vmem:[%s385 + $0x28] sm:$0xff] %v396
                  %v398 = vld [vmem:[%s384 + $0x60] sm:$0xff]
                  %399 = vst [vmem:[%s385 + $0x30] sm:$0xff] %v398
                  %v400 = vld [vmem:[%s384 + $0x70] sm:$0xff]
                  %401 = vst [vmem:[%s385 + $0x38] sm:$0xff] %v400
                  %v402 = vld [vmem:[%s384 + $0x80] sm:$0xff]
                  %403 = vst [vmem:[%s385 + $0x40] sm:$0xff] %v402
                  %v404 = vld [vmem:[%s384 + $0x90] sm:$0xff]
                  %405 = vst [vmem:[%s385 + $0x48] sm:$0xff] %v404
                  %v406 = vld [vmem:[%s384 + $0xa0] sm:$0xff]
                  %407 = vst [vmem:[%s385 + $0x50] sm:$0xff] %v406
                  %v408 = vld [vmem:[%s384 + $0xb0] sm:$0xff]
                  %409 = vst [vmem:[%s385 + $0x58] sm:$0xff] %v408
                  %v410 = vld [vmem:[%s384 + $0xc0] sm:$0xff]
                  %411 = vst [vmem:[%s385 + $0x60] sm:$0xff] %v410
                  %v412 = vld [vmem:[%s384 + $0xd0] sm:$0xff]
                  %413 = vst [vmem:[%s385 + $0x68] sm:$0xff] %v412
                  %v414 = vld [vmem:[%s384 + $0xe0] sm:$0xff]
                  %415 = vst [vmem:[%s385 + $0x70] sm:$0xff] %v414
                  %v416 = vld [vmem:[%s384 + $0xf0] sm:$0xff]
                  %417 = vst [vmem:[%s385 + $0x78] sm:$0xff] %v416
                  %v418 = vld [vmem:[%s384 + $0x100] sm:$0xff]
                  %419 = vst [vmem:[%s385 + $0x80] sm:$0xff] %v418
                  %v420 = vld [vmem:[%s384 + $0x110] sm:$0xff]
                  %421 = vst [vmem:[%s385 + $0x88] sm:$0xff] %v420
                  %v422 = vld [vmem:[%s384 + $0x120] sm:$0xff]
                  %423 = vst [vmem:[%s385 + $0x90] sm:$0xff] %v422
                  %v424 = vld [vmem:[%s384 + $0x130] sm:$0xff]
                  %425 = vst [vmem:[%s385 + $0x98] sm:$0xff] %v424
                  %v426 = vld [vmem:[%s384 + $0x140] sm:$0xff]
                  %427 = vst [vmem:[%s385 + $0xa0] sm:$0xff] %v426
                  %v428 = vld [vmem:[%s384 + $0x150] sm:$0xff]
                  %429 = vst [vmem:[%s385 + $0xa8] sm:$0xff] %v428
                  %v430 = vld [vmem:[%s384 + $0x160] sm:$0xff]
                  %431 = vst [vmem:[%s385 + $0xb0] sm:$0xff] %v430
                  %v432 = vld [vmem:[%s384 + $0x170] sm:$0xff]
                  %433 = vst [vmem:[%s385 + $0xb8] sm:$0xff] %v432
                  %v434 = vld [vmem:[%s384 + $0x180] sm:$0xff]
                  %435 = vst [vmem:[%s385 + $0xc0] sm:$0xff] %v434
                  %v436 = vld [vmem:[%s384 + $0x190] sm:$0xff]
                  %437 = vst [vmem:[%s385 + $0xc8] sm:$0xff] %v436
                  %v438 = vld [vmem:[%s384 + $0x1a0] sm:$0xff]
                  %439 = vst [vmem:[%s385 + $0xd0] sm:$0xff] %v438
                  %v440 = vld [vmem:[%s384 + $0x1b0] sm:$0xff]
                  %441 = vst [vmem:[%s385 + $0xd8] sm:$0xff] %v440
                  %v442 = vld [vmem:[%s384 + $0x1c0] sm:$0xff]
                  %443 = vst [vmem:[%s385 + $0xe0] sm:$0xff] %v442
                  %v444 = vld [vmem:[%s384 + $0x1d0] sm:$0xff]
                  %445 = vst [vmem:[%s385 + $0xe8] sm:$0xff] %v444
                  %v446 = vld [vmem:[%s384 + $0x1e0] sm:$0xff]
                  %447 = vst [vmem:[%s385 + $0xf0] sm:$0xff] %v446
                  %v448 = vld [vmem:[%s384 + $0x1f0] sm:$0xff]
                  %449 = vst [vmem:[%s385 + $0xf8] sm:$0xff] %v448
                  %v450 = vld [vmem:[%s384 + $0x200] sm:$0xff]
                  %451 = vst [vmem:[%s385 + $0x100] sm:$0xff] %v450
                  %v452 = vld [vmem:[%s384 + $0x210] sm:$0xff]
                  %453 = vst [vmem:[%s385 + $0x108] sm:$0xff] %v452
                  %v454 = vld [vmem:[%s384 + $0x220] sm:$0xff]
                  %455 = vst [vmem:[%s385 + $0x110] sm:$0xff] %v454
                  %v456 = vld [vmem:[%s384 + $0x230] sm:$0xff]
                  %457 = vst [vmem:[%s385 + $0x118] sm:$0xff] %v456
                  %v458 = vld [vmem:[%s384 + $0x240] sm:$0xff]
                  %459 = vst [vmem:[%s385 + $0x120] sm:$0xff] %v458
                  %v460 = vld [vmem:[%s384 + $0x250] sm:$0xff]
                  %461 = vst [vmem:[%s385 + $0x128] sm:$0xff] %v460
                  %v462 = vld [vmem:[%s384 + $0x260] sm:$0xff]
                  %463 = vst [vmem:[%s385 + $0x130] sm:$0xff] %v462
                  %v464 = vld [vmem:[%s384 + $0x270] sm:$0xff]
                  %465 = vst [vmem:[%s385 + $0x138] sm:$0xff] %v464
                  %v466 = vld [vmem:[%s384 + $0x280] sm:$0xff]
                  %467 = vst [vmem:[%s385 + $0x140] sm:$0xff] %v466
                  %v468 = vld [vmem:[%s384 + $0x290] sm:$0xff]
                  %469 = vst [vmem:[%s385 + $0x148] sm:$0xff] %v468
                  %v470 = vld [vmem:[%s384 + $0x2a0] sm:$0xff]
                  %471 = vst [vmem:[%s385 + $0x150] sm:$0xff] %v470
                  %v472 = vld [vmem:[%s384 + $0x2b0] sm:$0xff]
                  %473 = vst [vmem:[%s385 + $0x158] sm:$0xff] %v472
                  %v474 = vld [vmem:[%s384 + $0x2c0] sm:$0xff]
                  %475 = vst [vmem:[%s385 + $0x160] sm:$0xff] %v474
                  %v476 = vld [vmem:[%s384 + $0x2d0] sm:$0xff]
                  %477 = vst [vmem:[%s385 + $0x168] sm:$0xff] %v476
                  %v478 = vld [vmem:[%s384 + $0x2e0] sm:$0xff]
                  %479 = vst [vmem:[%s385 + $0x170] sm:$0xff] %v478
                  %v480 = vld [vmem:[%s384 + $0x2f0] sm:$0xff]
                  %481 = vst [vmem:[%s385 + $0x178] sm:$0xff] %v480
                  %v482 = vld [vmem:[%s384 + $0x300] sm:$0xff]
                  %483 = vst [vmem:[%s385 + $0x180] sm:$0xff] %v482
                  %v484 = vld [vmem:[%s384 + $0x310] sm:$0xff]
                  %485 = vst [vmem:[%s385 + $0x188] sm:$0xff] %v484
                  %v486 = vld [vmem:[%s384 + $0x320] sm:$0xff]
                  %487 = vst [vmem:[%s385 + $0x190] sm:$0xff] %v486
                  %v488 = vld [vmem:[%s384 + $0x330] sm:$0xff]
                  %489 = vst [vmem:[%s385 + $0x198] sm:$0xff] %v488
                  %v490 = vld [vmem:[%s384 + $0x340] sm:$0xff]
                  %491 = vst [vmem:[%s385 + $0x1a0] sm:$0xff] %v490
                  %v492 = vld [vmem:[%s384 + $0x350] sm:$0xff]
                  %493 = vst [vmem:[%s385 + $0x1a8] sm:$0xff] %v492
                  %v494 = vld [vmem:[%s384 + $0x360] sm:$0xff]
                  %495 = vst [vmem:[%s385 + $0x1b0] sm:$0xff] %v494
                  %v496 = vld [vmem:[%s384 + $0x370] sm:$0xff]
                  %497 = vst [vmem:[%s385 + $0x1b8] sm:$0xff] %v496
                  %v498 = vld [vmem:[%s384 + $0x380] sm:$0xff]
                  %499 = vst [vmem:[%s385 + $0x1c0] sm:$0xff] %v498
                  %v500 = vld [vmem:[%s384 + $0x390] sm:$0xff]
                  %501 = vst [vmem:[%s385 + $0x1c8] sm:$0xff] %v500
                  %v502 = vld [vmem:[%s384 + $0x3a0] sm:$0xff]
                  %503 = vst [vmem:[%s385 + $0x1d0] sm:$0xff] %v502
                  %v504 = vld [vmem:[%s384 + $0x3b0] sm:$0xff]
                  %505 = vst [vmem:[%s385 + $0x1d8] sm:$0xff] %v504
                  %v506 = vld [vmem:[%s384 + $0x3c0] sm:$0xff]
                  %507 = vst [vmem:[%s385 + $0x1e0] sm:$0xff] %v506
                  %v508 = vld [vmem:[%s384 + $0x3d0] sm:$0xff]
                  %509 = vst [vmem:[%s385 + $0x1e8] sm:$0xff] %v508
                  %v510 = vld [vmem:[%s384 + $0x3e0] sm:$0xff]
                  %511 = vst [vmem:[%s385 + $0x1f0] sm:$0xff] %v510
                  %v512 = vld [vmem:[%s384 + $0x3f0] sm:$0xff]
                  %513 = vst [vmem:[%s385 + $0x1f8] sm:$0xff] %v512
                $region71: #{patch_discriminator_forward.9} parent=65 // loop_footer
                  %s383 = sadd.s32 1, %s379
                $region72: #{patch_discriminator_forward.9} parent=65 // loop_footer_branch
                  %378 = sbr.rel target = $region68
                $region73: #{patch_discriminator_forward.9} parent=65 // loop_exit
                  _
              $region66: #{patch_discriminator_forward.9} parent=50 // pred_fallthru
                _
              // Predicated region
              $region74: #{patch_discriminator_forward.9} parent=50 // pred_check
                _
              $region75: #{patch_discriminator_forward.9} parent=50 // pred_check_branch
                %515 = sbr.rel target = $region77
              $region76: #{patch_discriminator_forward.9} parent=50 // pred_region
                _
              $region77: #{patch_discriminator_forward.9} parent=50 // pred_fallthru
                _
            $region51: #{patch_discriminator_forward.9} parent=46 // pred_fallthru
              _
            // Predicated region
            $region52: #{patch_discriminator_forward.9} parent=46 // pred_check
              _
            $region53: #{patch_discriminator_forward.9} parent=46 // pred_check_branch
              %238 = sbr.rel target = $region55
            $region54: #{patch_discriminator_forward.9} parent=46 // pred_region
              loop: start=0, step=1, limit=1
              $region56: #{patch_discriminator_forward.9} parent=54 // loop_pre_header
                _
              $region57: #{patch_discriminator_forward.9} parent=54 // loop_header
                %s241 = sphi 0, %s245
                %p242 = scmp.ge.s32.totalorder %s241, 1
                %s246 = sphi %s232, %s232
                %s247 = sphi %s226, %s226
              $region58: #{patch_discriminator_forward.9} parent=54 // loop_header_branch
                %244 = sbr.rel (%p242) target = $region62
              $region59: #{patch_discriminator_forward.9} parent=54 // loop_body
                %v248 = vld [vmem:[%s246] sm:$0xff]
                %249 = vst [vmem:[%s247] sm:$0xff] %v248
                %v250 = vld [vmem:[%s246 + $0x10] sm:$0xff]
                %251 = vst [vmem:[%s247 + $0x8] sm:$0xff] %v250
                %v252 = vld [vmem:[%s246 + $0x20] sm:$0xff]
                %253 = vst [vmem:[%s247 + $0x10] sm:$0xff] %v252
                %v254 = vld [vmem:[%s246 + $0x30] sm:$0xff]
                %255 = vst [vmem:[%s247 + $0x18] sm:$0xff] %v254
                %v256 = vld [vmem:[%s246 + $0x40] sm:$0xff]
                %257 = vst [vmem:[%s247 + $0x20] sm:$0xff] %v256
                %v258 = vld [vmem:[%s246 + $0x50] sm:$0xff]
                %259 = vst [vmem:[%s247 + $0x28] sm:$0xff] %v258
                %v260 = vld [vmem:[%s246 + $0x60] sm:$0xff]
                %261 = vst [vmem:[%s247 + $0x30] sm:$0xff] %v260
                %v262 = vld [vmem:[%s246 + $0x70] sm:$0xff]
                %263 = vst [vmem:[%s247 + $0x38] sm:$0xff] %v262
                %v264 = vld [vmem:[%s246 + $0x80] sm:$0xff]
                %265 = vst [vmem:[%s247 + $0x40] sm:$0xff] %v264
                %v266 = vld [vmem:[%s246 + $0x90] sm:$0xff]
                %267 = vst [vmem:[%s247 + $0x48] sm:$0xff] %v266
                %v268 = vld [vmem:[%s246 + $0xa0] sm:$0xff]
                %269 = vst [vmem:[%s247 + $0x50] sm:$0xff] %v268
                %v270 = vld [vmem:[%s246 + $0xb0] sm:$0xff]
                %271 = vst [vmem:[%s247 + $0x58] sm:$0xff] %v270
                %v272 = vld [vmem:[%s246 + $0xc0] sm:$0xff]
                %273 = vst [vmem:[%s247 + $0x60] sm:$0xff] %v272
                %v274 = vld [vmem:[%s246 + $0xd0] sm:$0xff]
                %275 = vst [vmem:[%s247 + $0x68] sm:$0xff] %v274
                %v276 = vld [vmem:[%s246 + $0xe0] sm:$0xff]
                %277 = vst [vmem:[%s247 + $0x70] sm:$0xff] %v276
                %v278 = vld [vmem:[%s246 + $0xf0] sm:$0xff]
                %279 = vst [vmem:[%s247 + $0x78] sm:$0xff] %v278
                %v280 = vld [vmem:[%s246 + $0x100] sm:$0xff]
                %281 = vst [vmem:[%s247 + $0x80] sm:$0xff] %v280
                %v282 = vld [vmem:[%s246 + $0x110] sm:$0xff]
                %283 = vst [vmem:[%s247 + $0x88] sm:$0xff] %v282
                %v284 = vld [vmem:[%s246 + $0x120] sm:$0xff]
                %285 = vst [vmem:[%s247 + $0x90] sm:$0xff] %v284
                %v286 = vld [vmem:[%s246 + $0x130] sm:$0xff]
                %287 = vst [vmem:[%s247 + $0x98] sm:$0xff] %v286
                %v288 = vld [vmem:[%s246 + $0x140] sm:$0xff]
                %289 = vst [vmem:[%s247 + $0xa0] sm:$0xff] %v288
                %v290 = vld [vmem:[%s246 + $0x150] sm:$0xff]
                %291 = vst [vmem:[%s247 + $0xa8] sm:$0xff] %v290
                %v292 = vld [vmem:[%s246 + $0x160] sm:$0xff]
                %293 = vst [vmem:[%s247 + $0xb0] sm:$0xff] %v292
                %v294 = vld [vmem:[%s246 + $0x170] sm:$0xff]
                %295 = vst [vmem:[%s247 + $0xb8] sm:$0xff] %v294
                %v296 = vld [vmem:[%s246 + $0x180] sm:$0xff]
                %297 = vst [vmem:[%s247 + $0xc0] sm:$0xff] %v296
                %v298 = vld [vmem:[%s246 + $0x190] sm:$0xff]
                %299 = vst [vmem:[%s247 + $0xc8] sm:$0xff] %v298
                %v300 = vld [vmem:[%s246 + $0x1a0] sm:$0xff]
                %301 = vst [vmem:[%s247 + $0xd0] sm:$0xff] %v300
                %v302 = vld [vmem:[%s246 + $0x1b0] sm:$0xff]
                %303 = vst [vmem:[%s247 + $0xd8] sm:$0xff] %v302
                %v304 = vld [vmem:[%s246 + $0x1c0] sm:$0xff]
                %305 = vst [vmem:[%s247 + $0xe0] sm:$0xff] %v304
                %v306 = vld [vmem:[%s246 + $0x1d0] sm:$0xff]
                %307 = vst [vmem:[%s247 + $0xe8] sm:$0xff] %v306
                %v308 = vld [vmem:[%s246 + $0x1e0] sm:$0xff]
                %309 = vst [vmem:[%s247 + $0xf0] sm:$0xff] %v308
                %v310 = vld [vmem:[%s246 + $0x1f0] sm:$0xff]
                %311 = vst [vmem:[%s247 + $0xf8] sm:$0xff] %v310
                %v312 = vld [vmem:[%s246 + $0x200] sm:$0xff]
                %313 = vst [vmem:[%s247 + $0x100] sm:$0xff] %v312
                %v314 = vld [vmem:[%s246 + $0x210] sm:$0xff]
                %315 = vst [vmem:[%s247 + $0x108] sm:$0xff] %v314
                %v316 = vld [vmem:[%s246 + $0x220] sm:$0xff]
                %317 = vst [vmem:[%s247 + $0x110] sm:$0xff] %v316
                %v318 = vld [vmem:[%s246 + $0x230] sm:$0xff]
                %319 = vst [vmem:[%s247 + $0x118] sm:$0xff] %v318
                %v320 = vld [vmem:[%s246 + $0x240] sm:$0xff]
                %321 = vst [vmem:[%s247 + $0x120] sm:$0xff] %v320
                %v322 = vld [vmem:[%s246 + $0x250] sm:$0xff]
                %323 = vst [vmem:[%s247 + $0x128] sm:$0xff] %v322
                %v324 = vld [vmem:[%s246 + $0x260] sm:$0xff]
                %325 = vst [vmem:[%s247 + $0x130] sm:$0xff] %v324
                %v326 = vld [vmem:[%s246 + $0x270] sm:$0xff]
                %327 = vst [vmem:[%s247 + $0x138] sm:$0xff] %v326
                %v328 = vld [vmem:[%s246 + $0x280] sm:$0xff]
                %329 = vst [vmem:[%s247 + $0x140] sm:$0xff] %v328
                %v330 = vld [vmem:[%s246 + $0x290] sm:$0xff]
                %331 = vst [vmem:[%s247 + $0x148] sm:$0xff] %v330
                %v332 = vld [vmem:[%s246 + $0x2a0] sm:$0xff]
                %333 = vst [vmem:[%s247 + $0x150] sm:$0xff] %v332
                %v334 = vld [vmem:[%s246 + $0x2b0] sm:$0xff]
                %335 = vst [vmem:[%s247 + $0x158] sm:$0xff] %v334
                %v336 = vld [vmem:[%s246 + $0x2c0] sm:$0xff]
                %337 = vst [vmem:[%s247 + $0x160] sm:$0xff] %v336
                %v338 = vld [vmem:[%s246 + $0x2d0] sm:$0xff]
                %339 = vst [vmem:[%s247 + $0x168] sm:$0xff] %v338
                %v340 = vld [vmem:[%s246 + $0x2e0] sm:$0xff]
                %341 = vst [vmem:[%s247 + $0x170] sm:$0xff] %v340
                %v342 = vld [vmem:[%s246 + $0x2f0] sm:$0xff]
                %343 = vst [vmem:[%s247 + $0x178] sm:$0xff] %v342
                %v344 = vld [vmem:[%s246 + $0x300] sm:$0xff]
                %345 = vst [vmem:[%s247 + $0x180] sm:$0xff] %v344
                %v346 = vld [vmem:[%s246 + $0x310] sm:$0xff]
                %347 = vst [vmem:[%s247 + $0x188] sm:$0xff] %v346
                %v348 = vld [vmem:[%s246 + $0x320] sm:$0xff]
                %349 = vst [vmem:[%s247 + $0x190] sm:$0xff] %v348
                %v350 = vld [vmem:[%s246 + $0x330] sm:$0xff]
                %351 = vst [vmem:[%s247 + $0x198] sm:$0xff] %v350
                %v352 = vld [vmem:[%s246 + $0x340] sm:$0xff]
                %353 = vst [vmem:[%s247 + $0x1a0] sm:$0xff] %v352
                %v354 = vld [vmem:[%s246 + $0x350] sm:$0xff]
                %355 = vst [vmem:[%s247 + $0x1a8] sm:$0xff] %v354
                %v356 = vld [vmem:[%s246 + $0x360] sm:$0xff]
                %357 = vst [vmem:[%s247 + $0x1b0] sm:$0xff] %v356
                %v358 = vld [vmem:[%s246 + $0x370] sm:$0xff]
                %359 = vst [vmem:[%s247 + $0x1b8] sm:$0xff] %v358
                %v360 = vld [vmem:[%s246 + $0x380] sm:$0xff]
                %361 = vst [vmem:[%s247 + $0x1c0] sm:$0xff] %v360
                %v362 = vld [vmem:[%s246 + $0x390] sm:$0xff]
                %363 = vst [vmem:[%s247 + $0x1c8] sm:$0xff] %v362
                %v364 = vld [vmem:[%s246 + $0x3a0] sm:$0xff]
                %365 = vst [vmem:[%s247 + $0x1d0] sm:$0xff] %v364
                %v366 = vld [vmem:[%s246 + $0x3b0] sm:$0xff]
                %367 = vst [vmem:[%s247 + $0x1d8] sm:$0xff] %v366
                %v368 = vld [vmem:[%s246 + $0x3c0] sm:$0xff]
                %369 = vst [vmem:[%s247 + $0x1e0] sm:$0xff] %v368
                %v370 = vld [vmem:[%s246 + $0x3d0] sm:$0xff]
                %371 = vst [vmem:[%s247 + $0x1e8] sm:$0xff] %v370
                %v372 = vld [vmem:[%s246 + $0x3e0] sm:$0xff]
                %373 = vst [vmem:[%s247 + $0x1f0] sm:$0xff] %v372
                %v374 = vld [vmem:[%s246 + $0x3f0] sm:$0xff]
                %375 = vst [vmem:[%s247 + $0x1f8] sm:$0xff] %v374
              $region60: #{patch_discriminator_forward.9} parent=54 // loop_footer
                %s245 = sadd.s32 1, %s241
              $region61: #{patch_discriminator_forward.9} parent=54 // loop_footer_branch
                %240 = sbr.rel target = $region57
              $region62: #{patch_discriminator_forward.9} parent=54 // loop_exit
                _
            $region55: #{patch_discriminator_forward.9} parent=46 // pred_fallthru
              _
          $region47: #{patch_discriminator_forward.9} parent=42 // pred_fallthru
            _
          %516 = vnop
        $region43: #{patch_discriminator_forward.9} parent=15 // pred_fallthru
          _
        // Predicated region
        $region78: #{patch_discriminator_forward.9} parent=15 // pred_check
          %p517 = pneg %p105
        $region79: #{patch_discriminator_forward.9} parent=15 // pred_check_branch
          %519 = sbr.rel (%p517) target = $region81
        $region80: #{patch_discriminator_forward.9} parent=15 // pred_region
          %s520 = smul.u32 2, %s18
          %p521 = scmp.lt.s32.totalorder %s520, 3
          %s522 = scalar_select %p521, %s520, 3
          %s523 = scalar_lea.vmem %s2, %s522
          %s524 = smul.u32 2, %s18
        $region81: #{patch_discriminator_forward.9} parent=15 // pred_fallthru
          _
        // Predicated region
        $region82: #{patch_discriminator_forward.9} parent=15 // pred_check
          %p525 = pneg %p131
        $region83: #{patch_discriminator_forward.9} parent=15 // pred_check_branch
          %527 = sbr.rel (%p525) target = $region85
        $region84: #{patch_discriminator_forward.9} parent=15 // pred_region
          %s528 = smul.u32 2, %s18
          %p529 = scmp.lt.s32.totalorder %s528, 3
          %s530 = scalar_select %p529, %s528, 3
          %s531 = scalar_lea.vmem %s3, %s530
          %s532 = smul.u32 2, %s18
        $region85: #{patch_discriminator_forward.9} parent=15 // pred_fallthru
          _
      $region16: #{patch_discriminator_forward.9} parent=5 // pred_fallthru
        _
      %p533 = scmp.le.s32.totalorder 1, %s10
      %p534 = scmp.lt.s32.totalorder %s10, 33
      %p535 = pnand %p533, %p534
      %p536 = pneg %p535
      // Predicated region
      $region86: #{patch_discriminator_forward.9} parent=5 // pred_check
        _
      $region87: #{patch_discriminator_forward.9} parent=5 // pred_check_branch
        %538 = sbr.rel (%p535) target = $region89
      $region88: #{patch_discriminator_forward.9} parent=5 // pred_region
        %s539 = ssub.s32 %s10, 1
        %s540 = sand.u32 %s44, 1
        %s541 = sand.u32 %s44, 1
        %s542 = smul.addr %s541, 32
        %s543 = scalar_lea.vmem [#allocation3], %s542
        // Predicated region
        $region90: #{patch_discriminator_forward.9} parent=88 // pred_check
          %p544 = pneg %p57
        $region91: #{patch_discriminator_forward.9} parent=88 // pred_check_branch
          %546 = sbr.rel (%p544) target = $region93
        $region92: #{patch_discriminator_forward.9} parent=88 // pred_region
          _
        $region93: #{patch_discriminator_forward.9} parent=88 // pred_fallthru
          _
        %s547 = sand.u32 %s72, 1
        %s548 = sand.u32 %s72, 1
        %s549 = smul.addr %s548, 512
        %s550 = scalar_lea.vmem [#allocation4], %s549
        // Predicated region
        $region94: #{patch_discriminator_forward.9} parent=88 // pred_check
          %p551 = pneg %p85
        $region95: #{patch_discriminator_forward.9} parent=88 // pred_check_branch
          %553 = sbr.rel (%p551) target = $region97
        $region96: #{patch_discriminator_forward.9} parent=88 // pred_region
          _
        $region97: #{patch_discriminator_forward.9} parent=88 // pred_fallthru
          _
        %s554 = sand.u32 %s44, 1
        %s555 = sand.u32 %s44, 1
        %s556 = smul.addr %s555, 32
        %s557 = scalar_lea.vmem [#allocation3], %s556
        %p558 = pneg %p57
        %p559 = pneg %p54
        %s560 = sand.u32 %s72, 1
        %s561 = sand.u32 %s72, 1
        %s562 = smul.addr %s561, 512
        %s563 = scalar_lea.vmem [#allocation4], %s562
        %p564 = pneg %p85
        %p565 = pneg %p82
        %s566 = smul.u32 2, %s21
        %p567 = scmp.lt.s32.totalorder %s566, 3
        %s568 = scalar_select %p567, %s566, 3
        %s569 = scalar_lea.vmem %s2, %s568
        %p570 = pneg %p111
        %p571 = pneg %p108
        %s572 = smul.u32 2, %s21
        %p573 = scmp.lt.s32.totalorder %s572, 3
        %s574 = scalar_select %p573, %s572, 3
        %s575 = scalar_lea.vmem %s3, %s574
        %p576 = pneg %p137
        %p577 = pneg %p134
        %p578 = pneg %p165
        %p579 = pneg %p162
        %s580 = sand.u32 %s152, 1
        %s581 = sand.u32 %s152, 1
        %s582 = smul.addr %s581, 32
        %s583 = scalar_lea.vmem [#allocation5], %s582
        %s584 = smul.u32 2, %s20
        %s585 = smul.u32 4, %s22
        %s586 = smul.u32 64, %s22
        %s587 = smul.u32 2, %s21
        %s588 = smul.u32 2, %s21
        %p589 = scmp.lt.s32.totalorder %s588, 3
        %s590 = scalar_select %p589, %s588, 3
        %s591 = scalar_lea.vmem %s2, %s590
        %s592 = smul.u32 2, %s21
        %s593 = smul.u32 2, %s21
        %p594 = scmp.lt.s32.totalorder %s593, 3
        %s595 = scalar_select %p594, %s593, 3
        %s596 = scalar_lea.vmem %s3, %s595
        %s597 = smul.u32 2, %s21
        %s598 = smul.u32 2, %s20
        %s599 = smul.u32 2, %s21
        %p600 = scmp.eq.s32.totalorder %s22, 0
        // Predicated region
        $region98: #{patch_discriminator_forward.9} parent=88 // pred_check
          %p601 = pneg %p600
        $region99: #{patch_discriminator_forward.9} parent=88 // pred_check_branch
          %603 = sbr.rel (%p601) target = $region101
        $region100: #{patch_discriminator_forward.9} parent=88 // pred_region
          %604 = vst [vmem:[#allocation2] sm:$0xff] 0.0
          %605 = vst [vmem:[#allocation2 + $0x8] sm:$0xff] 0.0
          %606 = vst [vmem:[#allocation2 + $0x10] sm:$0xff] 0.0
          %607 = vst [vmem:[#allocation2 + $0x18] sm:$0xff] 0.0
        $region101: #{patch_discriminator_forward.9} parent=88 // pred_fallthru
          _
        %v608 = vld [vmem:[#allocation2] sm:$0xff]
        %v609 = vld [vmem:[#allocation2 + $0x8] sm:$0xff]
        %v610 = vld [vmem:[#allocation2 + $0x10] sm:$0xff]
        %v611 = vld [vmem:[#allocation2 + $0x18] sm:$0xff]
        %v612 = vld [vmem:[%s543] sm:$0xff]
        %v613 = vld [vmem:[%s543 + $0x8] sm:$0xff]
        %v614 = vld [vmem:[%s543 + $0x10] sm:$0xff]
        %v615 = vld [vmem:[%s543 + $0x18] sm:$0xff]
        %v616 = vld [vmem:[%s550] sm:$0xff]
        %v617 = vld [vmem:[%s550 + $0x8] sm:$0xff]
        %v618 = vld [vmem:[%s550 + $0x10] sm:$0xff]
        %v619 = vld [vmem:[%s550 + $0x18] sm:$0xff]
        %v620 = vld [vmem:[%s550 + $0x20] sm:$0xff]
        %v621 = vld [vmem:[%s550 + $0x28] sm:$0xff]
        %v622 = vld [vmem:[%s550 + $0x30] sm:$0xff]
        %v623 = vld [vmem:[%s550 + $0x38] sm:$0xff]
        %v624 = vld [vmem:[%s550 + $0x40] sm:$0xff]
        %v625 = vld [vmem:[%s550 + $0x48] sm:$0xff]
        %v626 = vld [vmem:[%s550 + $0x50] sm:$0xff]
        %v627 = vld [vmem:[%s550 + $0x58] sm:$0xff]
        %v628 = vld [vmem:[%s550 + $0x60] sm:$0xff]
        %v629 = vld [vmem:[%s550 + $0x68] sm:$0xff]
        %v630 = vld [vmem:[%s550 + $0x70] sm:$0xff]
        %v631 = vld [vmem:[%s550 + $0x78] sm:$0xff]
        %v632 = vld [vmem:[%s550 + $0x80] sm:$0xff]
        %v633 = vld [vmem:[%s550 + $0x88] sm:$0xff]
        %v634 = vld [vmem:[%s550 + $0x90] sm:$0xff]
        %v635 = vld [vmem:[%s550 + $0x98] sm:$0xff]
        %v636 = vld [vmem:[%s550 + $0xa0] sm:$0xff]
        %v637 = vld [vmem:[%s550 + $0xa8] sm:$0xff]
        %v638 = vld [vmem:[%s550 + $0xb0] sm:$0xff]
        %v639 = vld [vmem:[%s550 + $0xb8] sm:$0xff]
        %v640 = vld [vmem:[%s550 + $0xc0] sm:$0xff]
        %v641 = vld [vmem:[%s550 + $0xc8] sm:$0xff]
        %v642 = vld [vmem:[%s550 + $0xd0] sm:$0xff]
        %v643 = vld [vmem:[%s550 + $0xd8] sm:$0xff]
        %v644 = vld [vmem:[%s550 + $0xe0] sm:$0xff]
        %v645 = vld [vmem:[%s550 + $0xe8] sm:$0xff]
        %v646 = vld [vmem:[%s550 + $0xf0] sm:$0xff]
        %v647 = vld [vmem:[%s550 + $0xf8] sm:$0xff]
        %v648 = vld [vmem:[%s550 + $0x100] sm:$0xff]
        %v649 = vld [vmem:[%s550 + $0x108] sm:$0xff]
        %v650 = vld [vmem:[%s550 + $0x110] sm:$0xff]
        %v651 = vld [vmem:[%s550 + $0x118] sm:$0xff]
        %v652 = vld [vmem:[%s550 + $0x120] sm:$0xff]
        %v653 = vld [vmem:[%s550 + $0x128] sm:$0xff]
        %v654 = vld [vmem:[%s550 + $0x130] sm:$0xff]
        %v655 = vld [vmem:[%s550 + $0x138] sm:$0xff]
        %v656 = vld [vmem:[%s550 + $0x140] sm:$0xff]
        %v657 = vld [vmem:[%s550 + $0x148] sm:$0xff]
        %v658 = vld [vmem:[%s550 + $0x150] sm:$0xff]
        %v659 = vld [vmem:[%s550 + $0x158] sm:$0xff]
        %v660 = vld [vmem:[%s550 + $0x160] sm:$0xff]
        %v661 = vld [vmem:[%s550 + $0x168] sm:$0xff]
        %v662 = vld [vmem:[%s550 + $0x170] sm:$0xff]
        %v663 = vld [vmem:[%s550 + $0x178] sm:$0xff]
        %v664 = vld [vmem:[%s550 + $0x180] sm:$0xff]
        %v665 = vld [vmem:[%s550 + $0x188] sm:$0xff]
        %v666 = vld [vmem:[%s550 + $0x190] sm:$0xff]
        %v667 = vld [vmem:[%s550 + $0x198] sm:$0xff]
        %v668 = vld [vmem:[%s550 + $0x1a0] sm:$0xff]
        %v669 = vld [vmem:[%s550 + $0x1a8] sm:$0xff]
        %v670 = vld [vmem:[%s550 + $0x1b0] sm:$0xff]
        %v671 = vld [vmem:[%s550 + $0x1b8] sm:$0xff]
        %v672 = vld [vmem:[%s550 + $0x1c0] sm:$0xff]
        %v673 = vld [vmem:[%s550 + $0x1c8] sm:$0xff]
        %v674 = vld [vmem:[%s550 + $0x1d0] sm:$0xff]
        %v675 = vld [vmem:[%s550 + $0x1d8] sm:$0xff]
        %v676 = vld [vmem:[%s550 + $0x1e0] sm:$0xff]
        %v677 = vld [vmem:[%s550 + $0x1e8] sm:$0xff]
        %v678 = vld [vmem:[%s550 + $0x1f0] sm:$0xff]
        %v679 = vld [vmem:[%s550 + $0x1f8] sm:$0xff]
        %v684 = vunpack.c.l.b16 %v612
        %v685 = vunpack.c.h.b16 %v612
        %v686 = vunpack.c.l.b16 %v613
        %v687 = vunpack.c.h.b16 %v613
        %v688 = vunpack.c.l.b16 %v614
        %v689 = vunpack.c.h.b16 %v614
        %v690 = vunpack.c.l.b16 %v615
        %v691 = vunpack.c.h.b16 %v615
        %v692 = vpack.c.b16 %v688, %v684
        %v693 = vpack.c.b16 %v689, %v685
        %v694 = vpack.c.b16 %v690, %v686
        %v695 = vpack.c.b16 %v691, %v687
        %v764 = vunpack.c.l.b16 %v616
        %v765 = vunpack.c.h.b16 %v616
        %v766 = vunpack.c.l.b16 %v617
        %v767 = vunpack.c.h.b16 %v617
        %v768 = vunpack.c.l.b16 %v618
        %v769 = vunpack.c.h.b16 %v618
        %v770 = vunpack.c.l.b16 %v619
        %v771 = vunpack.c.h.b16 %v619
        %v772 = vunpack.c.l.b16 %v620
        %v773 = vunpack.c.h.b16 %v620
        %v774 = vunpack.c.l.b16 %v621
        %v775 = vunpack.c.h.b16 %v621
        %v776 = vunpack.c.l.b16 %v622
        %v777 = vunpack.c.h.b16 %v622
        %v778 = vunpack.c.l.b16 %v623
        %v779 = vunpack.c.h.b16 %v623
        %v780 = vunpack.c.l.b16 %v624
        %v781 = vunpack.c.h.b16 %v624
        %v782 = vunpack.c.l.b16 %v625
        %v783 = vunpack.c.h.b16 %v625
        %v784 = vunpack.c.l.b16 %v626
        %v785 = vunpack.c.h.b16 %v626
        %v786 = vunpack.c.l.b16 %v627
        %v787 = vunpack.c.h.b16 %v627
        %v788 = vunpack.c.l.b16 %v628
        %v789 = vunpack.c.h.b16 %v628
        %v790 = vunpack.c.l.b16 %v629
        %v791 = vunpack.c.h.b16 %v629
        %v792 = vunpack.c.l.b16 %v630
        %v793 = vunpack.c.h.b16 %v630
        %v794 = vunpack.c.l.b16 %v631
        %v795 = vunpack.c.h.b16 %v631
        %v796 = vunpack.c.l.b16 %v632
        %v797 = vunpack.c.h.b16 %v632
        %v798 = vunpack.c.l.b16 %v633
        %v799 = vunpack.c.h.b16 %v633
        %v800 = vunpack.c.l.b16 %v634
        %v801 = vunpack.c.h.b16 %v634
        %v802 = vunpack.c.l.b16 %v635
        %v803 = vunpack.c.h.b16 %v635
        %v804 = vunpack.c.l.b16 %v636
        %v805 = vunpack.c.h.b16 %v636
        %v806 = vunpack.c.l.b16 %v637
        %v807 = vunpack.c.h.b16 %v637
        %v808 = vunpack.c.l.b16 %v638
        %v809 = vunpack.c.h.b16 %v638
        %v810 = vunpack.c.l.b16 %v639
        %v811 = vunpack.c.h.b16 %v639
        %v812 = vunpack.c.l.b16 %v640
        %v813 = vunpack.c.h.b16 %v640
        %v814 = vunpack.c.l.b16 %v641
        %v815 = vunpack.c.h.b16 %v641
        %v816 = vunpack.c.l.b16 %v642
        %v817 = vunpack.c.h.b16 %v642
        %v818 = vunpack.c.l.b16 %v643
        %v819 = vunpack.c.h.b16 %v643
        %v820 = vunpack.c.l.b16 %v644
        %v821 = vunpack.c.h.b16 %v644
        %v822 = vunpack.c.l.b16 %v645
        %v823 = vunpack.c.h.b16 %v645
        %v824 = vunpack.c.l.b16 %v646
        %v825 = vunpack.c.h.b16 %v646
        %v826 = vunpack.c.l.b16 %v647
        %v827 = vunpack.c.h.b16 %v647
        %v828 = vunpack.c.l.b16 %v648
        %v829 = vunpack.c.h.b16 %v648
        %v830 = vunpack.c.l.b16 %v649
        %v831 = vunpack.c.h.b16 %v649
        %v832 = vunpack.c.l.b16 %v650
        %v833 = vunpack.c.h.b16 %v650
        %v834 = vunpack.c.l.b16 %v651
        %v835 = vunpack.c.h.b16 %v651
        %v836 = vunpack.c.l.b16 %v652
        %v837 = vunpack.c.h.b16 %v652
        %v838 = vunpack.c.l.b16 %v653
        %v839 = vunpack.c.h.b16 %v653
        %v840 = vunpack.c.l.b16 %v654
        %v841 = vunpack.c.h.b16 %v654
        %v842 = vunpack.c.l.b16 %v655
        %v843 = vunpack.c.h.b16 %v655
        %v844 = vunpack.c.l.b16 %v656
        %v845 = vunpack.c.h.b16 %v656
        %v846 = vunpack.c.l.b16 %v657
        %v847 = vunpack.c.h.b16 %v657
        %v848 = vunpack.c.l.b16 %v658
        %v849 = vunpack.c.h.b16 %v658
        %v850 = vunpack.c.l.b16 %v659
        %v851 = vunpack.c.h.b16 %v659
        %v852 = vunpack.c.l.b16 %v660
        %v853 = vunpack.c.h.b16 %v660
        %v854 = vunpack.c.l.b16 %v661
        %v855 = vunpack.c.h.b16 %v661
        %v856 = vunpack.c.l.b16 %v662
        %v857 = vunpack.c.h.b16 %v662
        %v858 = vunpack.c.l.b16 %v663
        %v859 = vunpack.c.h.b16 %v663
        %v860 = vunpack.c.l.b16 %v664
        %v861 = vunpack.c.h.b16 %v664
        %v862 = vunpack.c.l.b16 %v665
        %v863 = vunpack.c.h.b16 %v665
        %v864 = vunpack.c.l.b16 %v666
        %v865 = vunpack.c.h.b16 %v666
        %v866 = vunpack.c.l.b16 %v667
        %v867 = vunpack.c.h.b16 %v667
        %v868 = vunpack.c.l.b16 %v668
        %v869 = vunpack.c.h.b16 %v668
        %v870 = vunpack.c.l.b16 %v669
        %v871 = vunpack.c.h.b16 %v669
        %v872 = vunpack.c.l.b16 %v670
        %v873 = vunpack.c.h.b16 %v670
        %v874 = vunpack.c.l.b16 %v671
        %v875 = vunpack.c.h.b16 %v671
        %v876 = vunpack.c.l.b16 %v672
        %v877 = vunpack.c.h.b16 %v672
        %v878 = vunpack.c.l.b16 %v673
        %v879 = vunpack.c.h.b16 %v673
        %v880 = vunpack.c.l.b16 %v674
        %v881 = vunpack.c.h.b16 %v674
        %v882 = vunpack.c.l.b16 %v675
        %v883 = vunpack.c.h.b16 %v675
        %v884 = vunpack.c.l.b16 %v676
        %v885 = vunpack.c.h.b16 %v676
        %v886 = vunpack.c.l.b16 %v677
        %v887 = vunpack.c.h.b16 %v677
        %v888 = vunpack.c.l.b16 %v678
        %v889 = vunpack.c.h.b16 %v678
        %v890 = vunpack.c.l.b16 %v679
        %v891 = vunpack.c.h.b16 %v679
        %v892 = vpack.c.b16 %v766, %v764
        %v893 = vpack.c.b16 %v767, %v765
        %v894 = vpack.c.b16 %v770, %v768
        %v895 = vpack.c.b16 %v771, %v769
        %v896 = vpack.c.b16 %v774, %v772
        %v897 = vpack.c.b16 %v775, %v773
        %v898 = vpack.c.b16 %v778, %v776
        %v899 = vpack.c.b16 %v779, %v777
        %v900 = vpack.c.b16 %v782, %v780
        %v901 = vpack.c.b16 %v783, %v781
        %v902 = vpack.c.b16 %v786, %v784
        %v903 = vpack.c.b16 %v787, %v785
        %v904 = vpack.c.b16 %v790, %v788
        %v905 = vpack.c.b16 %v791, %v789
        %v906 = vpack.c.b16 %v794, %v792
        %v907 = vpack.c.b16 %v795, %v793
        %v908 = vpack.c.b16 %v798, %v796
        %v909 = vpack.c.b16 %v799, %v797
        %v910 = vpack.c.b16 %v802, %v800
        %v911 = vpack.c.b16 %v803, %v801
        %v912 = vpack.c.b16 %v806, %v804
        %v913 = vpack.c.b16 %v807, %v805
        %v914 = vpack.c.b16 %v810, %v808
        %v915 = vpack.c.b16 %v811, %v809
        %v916 = vpack.c.b16 %v814, %v812
        %v917 = vpack.c.b16 %v815, %v813
        %v918 = vpack.c.b16 %v818, %v816
        %v919 = vpack.c.b16 %v819, %v817
        %v920 = vpack.c.b16 %v822, %v820
        %v921 = vpack.c.b16 %v823, %v821
        %v922 = vpack.c.b16 %v826, %v824
        %v923 = vpack.c.b16 %v827, %v825
        %v924 = vpack.c.b16 %v830, %v828
        %v925 = vpack.c.b16 %v831, %v829
        %v926 = vpack.c.b16 %v834, %v832
        %v927 = vpack.c.b16 %v835, %v833
        %v928 = vpack.c.b16 %v838, %v836
        %v929 = vpack.c.b16 %v839, %v837
        %v930 = vpack.c.b16 %v842, %v840
        %v931 = vpack.c.b16 %v843, %v841
        %v932 = vpack.c.b16 %v846, %v844
        %v933 = vpack.c.b16 %v847, %v845
        %v934 = vpack.c.b16 %v850, %v848
        %v935 = vpack.c.b16 %v851, %v849
        %v936 = vpack.c.b16 %v854, %v852
        %v937 = vpack.c.b16 %v855, %v853
        %v938 = vpack.c.b16 %v858, %v856
        %v939 = vpack.c.b16 %v859, %v857
        %v940 = vpack.c.b16 %v862, %v860
        %v941 = vpack.c.b16 %v863, %v861
        %v942 = vpack.c.b16 %v866, %v864
        %v943 = vpack.c.b16 %v867, %v865
        %v944 = vpack.c.b16 %v870, %v868
        %v945 = vpack.c.b16 %v871, %v869
        %v946 = vpack.c.b16 %v874, %v872
        %v947 = vpack.c.b16 %v875, %v873
        %v948 = vpack.c.b16 %v878, %v876
        %v949 = vpack.c.b16 %v879, %v877
        %v950 = vpack.c.b16 %v882, %v880
        %v951 = vpack.c.b16 %v883, %v881
        %v952 = vpack.c.b16 %v886, %v884
        %v953 = vpack.c.b16 %v887, %v885
        %v954 = vpack.c.b16 %v890, %v888
        %v955 = vpack.c.b16 %v891, %v889
        %1020 = vmatprep.subr.bf16.mxu0 %v893
        %1021 = vmatpush1.bf16.msra.mxu0 %v892
        %1022 = vmatprep.subr.bf16.mxu0 %v895
        %1023 = vmatpush1.bf16.msra.mxu0 %v894
        %1024 = vmatprep.subr.bf16.mxu0 %v897
        %1025 = vmatpush1.bf16.msra.mxu0 %v896
        %1026 = vmatprep.subr.bf16.mxu0 %v899
        %1027 = vmatpush1.bf16.msra.mxu0 %v898
        %1028 = vmatprep.subr.bf16.mxu0 %v901
        %1029 = vmatpush1.bf16.msra.mxu0 %v900
        %1030 = vmatprep.subr.bf16.mxu0 %v903
        %1031 = vmatpush1.bf16.msra.mxu0 %v902
        %1032 = vmatprep.subr.bf16.mxu0 %v905
        %1033 = vmatpush1.bf16.msra.mxu0 %v904
        %1034 = vmatprep.subr.bf16.mxu0 %v907
        %1035 = vmatpush1.bf16.msra.mxu0 %v906
        %1036 = vmatprep.subr.bf16.mxu0 %v909
        %1037 = vmatpush1.bf16.msra.mxu0 %v908
        %1038 = vmatprep.subr.bf16.mxu0 %v911
        %1039 = vmatpush1.bf16.msra.mxu0 %v910
        %1040 = vmatprep.subr.bf16.mxu0 %v913
        %1041 = vmatpush1.bf16.msra.mxu0 %v912
        %1042 = vmatprep.subr.bf16.mxu0 %v915
        %1043 = vmatpush1.bf16.msra.mxu0 %v914
        %1044 = vmatprep.subr.bf16.mxu0 %v917
        %1045 = vmatpush1.bf16.msra.mxu0 %v916
        %1046 = vmatprep.subr.bf16.mxu0 %v919
        %1047 = vmatpush1.bf16.msra.mxu0 %v918
        %1048 = vmatprep.subr.bf16.mxu0 %v921
        %1049 = vmatpush1.bf16.msra.mxu0 %v920
        %1050 = vmatprep.subr.bf16.mxu0 %v923
        %1051 = vmatpush1.bf16.msra.mxu0 %v922
        %1052 = vmatprep.mubr.bf16.mxu0 %v693
        %1053 = vmatmul.mubr.bf16.gmra.mrb[0].mxu0 %v692
        %v1054 = vpop.f32.mrb[0].mxu0
        %v1055 = vadd.f32 0.0, %v1054
        %v1056 = vpop.f32.mrb[0].mxu0
        %v1057 = vadd.f32 0.0, %v1056
        %v1058 = vpop.f32.mrb[0].mxu0
        %v1059 = vadd.f32 0.0, %v1058
        %v1060 = vpop.f32.mrb[0].mxu0
        %v1061 = vadd.f32 0.0, %v1060
        %1062 = vdwg.mxu0
        %1063 = vmatprep.subr.bf16.mxu0 %v925
        %1064 = vmatpush1.bf16.msra.mxu0 %v924
        %1065 = vmatprep.subr.bf16.mxu0 %v927
        %1066 = vmatpush1.bf16.msra.mxu0 %v926
        %1067 = vmatprep.subr.bf16.mxu0 %v929
        %1068 = vmatpush1.bf16.msra.mxu0 %v928
        %1069 = vmatprep.subr.bf16.mxu0 %v931
        %1070 = vmatpush1.bf16.msra.mxu0 %v930
        %1071 = vmatprep.subr.bf16.mxu0 %v933
        %1072 = vmatpush1.bf16.msra.mxu0 %v932
        %1073 = vmatprep.subr.bf16.mxu0 %v935
        %1074 = vmatpush1.bf16.msra.mxu0 %v934
        %1075 = vmatprep.subr.bf16.mxu0 %v937
        %1076 = vmatpush1.bf16.msra.mxu0 %v936
        %1077 = vmatprep.subr.bf16.mxu0 %v939
        %1078 = vmatpush1.bf16.msra.mxu0 %v938
        %1079 = vmatprep.subr.bf16.mxu0 %v941
        %1080 = vmatpush1.bf16.msra.mxu0 %v940
        %1081 = vmatprep.subr.bf16.mxu0 %v943
        %1082 = vmatpush1.bf16.msra.mxu0 %v942
        %1083 = vmatprep.subr.bf16.mxu0 %v945
        %1084 = vmatpush1.bf16.msra.mxu0 %v944
        %1085 = vmatprep.subr.bf16.mxu0 %v947
        %1086 = vmatpush1.bf16.msra.mxu0 %v946
        %1087 = vmatprep.subr.bf16.mxu0 %v949
        %1088 = vmatpush1.bf16.msra.mxu0 %v948
        %1089 = vmatprep.subr.bf16.mxu0 %v951
        %1090 = vmatpush1.bf16.msra.mxu0 %v950
        %1091 = vmatprep.subr.bf16.mxu0 %v953
        %1092 = vmatpush1.bf16.msra.mxu0 %v952
        %1093 = vmatprep.subr.bf16.mxu0 %v955
        %1094 = vmatpush1.bf16.msra.mxu0 %v954
        %1095 = vmatprep.mubr.bf16.mxu0 %v695
        %1096 = vmatmul.mubr.bf16.gmra.mrb[0].mxu0 %v694
        %v1097 = vpop.f32.mrb[0].mxu0
        %v1098 = vadd.f32 %v1055, %v1097
        %v1099 = vpop.f32.mrb[0].mxu0
        %v1100 = vadd.f32 %v1057, %v1099
        %v1101 = vpop.f32.mrb[0].mxu0
        %v1102 = vadd.f32 %v1059, %v1101
        %v1103 = vpop.f32.mrb[0].mxu0
        %v1104 = vadd.f32 %v1061, %v1103
        %1105 = vdwg.mxu0
        %v1106 = vadd.f32 %v608, %v1098
        %v1107 = vadd.f32 %v609, %v1100
        %v1108 = vadd.f32 %v610, %v1102
        %v1109 = vadd.f32 %v611, %v1104
        %1110 = vst [vmem:[#allocation2] sm:$0xff] %v1106
        %1111 = vst [vmem:[#allocation2 + $0x8] sm:$0xff] %v1107
        %1112 = vst [vmem:[#allocation2 + $0x10] sm:$0xff] %v1108
        %1113 = vst [vmem:[#allocation2 + $0x18] sm:$0xff] %v1109
        %p1114 = scmp.eq.s32.totalorder %s22, 15
        // Predicated region
        $region102: #{patch_discriminator_forward.9} parent=88 // pred_check
          %p1115 = pneg %p1114
        $region103: #{patch_discriminator_forward.9} parent=88 // pred_check_branch
          %1117 = sbr.rel (%p1115) target = $region105
        $region104: #{patch_discriminator_forward.9} parent=88 // pred_region
          %v1118 = vld [vmem:[#allocation2] sm:$0xff]
          %v1119 = vld [vmem:[#allocation2 + $0x8] sm:$0xff]
          %v1120 = vld [vmem:[#allocation2 + $0x10] sm:$0xff]
          %v1121 = vld [vmem:[#allocation2 + $0x18] sm:$0xff]
          %v1122 = vld [vmem:[%s591] sm:$0x3]
          %v1124 = vlaneseq
          %v1125 = vshrl.u32 %v1124, 7
          %v1126 = vsub.s32 0, %v1125
          %v1127 = vrot.slane %v1122, %v1126
          %v1128 = vlaneseq
          %v1129 = vshrl.u32 %v1128, 7
          %v1130 = vsub.s32 1, %v1129
          %v1131 = vrot.slane %v1122, %v1130
          %v1134 = vmul.f32 %v1118, %v1127
          %v1135 = vmul.f32 %v1119, %v1131
          %v1136 = vmul.f32 %v1120, %v1127
          %v1137 = vmul.f32 %v1121, %v1131
          %v1138 = vld [vmem:[%s596] sm:$0x3]
          %v1140 = vlaneseq
          %v1141 = vshrl.u32 %v1140, 7
          %v1142 = vsub.s32 0, %v1141
          %v1143 = vrot.slane %v1138, %v1142
          %v1144 = vlaneseq
          %v1145 = vshrl.u32 %v1144, 7
          %v1146 = vsub.s32 1, %v1145
          %v1147 = vrot.slane %v1138, %v1146
          %v1150 = vadd.f32 %v1134, %v1143
          %v1151 = vadd.f32 %v1135, %v1147
          %v1152 = vadd.f32 %v1136, %v1143
          %v1153 = vadd.f32 %v1137, %v1147
          %1154 = vst [vmem:[%s583] sm:$0xff] %v1150
          %1155 = vst [vmem:[%s583 + $0x8] sm:$0xff] %v1151
          %1156 = vst [vmem:[%s583 + $0x10] sm:$0xff] %v1152
          %1157 = vst [vmem:[%s583 + $0x18] sm:$0xff] %v1153
        $region105: #{patch_discriminator_forward.9} parent=88 // pred_fallthru
          _
        %s1158 = sand.u32 %s152, 1
        %s1159 = sand.u32 %s152, 1
        %s1160 = smul.addr %s1159, 32
        %s1161 = scalar_lea.vmem [#allocation5], %s1160
        // Predicated region
        $region106: #{patch_discriminator_forward.9} parent=88 // pred_check
          %p1162 = pneg %p162
        $region107: #{patch_discriminator_forward.9} parent=88 // pred_check_branch
          %1164 = sbr.rel (%p1162) target = $region109
        $region108: #{patch_discriminator_forward.9} parent=88 // pred_region
          %s1165 = smul.u32 2, %s20
          %s1166 = smul.u32 2, %s21
          %s1167 = smul.addr %s1165, 4
          %s1168 = sadd.s32 %s1166, %s1167
          %s1169 = smul.addr %s1168, 8
          %s1170 = scalar_lea.vmem %s4, %s1169
          // Predicated region
          $region110: #{patch_discriminator_forward.9} parent=108 // pred_check
            _
          $region111: #{patch_discriminator_forward.9} parent=108 // pred_check_branch
            %1172 = sbr.rel (0) target = $region113
          $region112: #{patch_discriminator_forward.9} parent=108 // pred_region
            // Predicated region
            $region114: #{patch_discriminator_forward.9} parent=112 // pred_check
              _
            $region115: #{patch_discriminator_forward.9} parent=112 // pred_check_branch
              %1174 = sbr.rel (0) target = $region117
            $region116: #{patch_discriminator_forward.9} parent=112 // pred_region
              loop: start=0, step=1, limit=1
              $region118: #{patch_discriminator_forward.9} parent=116 // loop_pre_header
                _
              $region119: #{patch_discriminator_forward.9} parent=116 // loop_header
                %s1176 = sphi 0, %s1180
                %p1177 = scmp.ge.s32.totalorder %s1176, 1
                %s1181 = sphi %s1161, %s1161
                %s1182 = sphi %s1170, %s1170
              $region120: #{patch_discriminator_forward.9} parent=116 // loop_header_branch
                %1179 = sbr.rel (%p1177) target = $region124
              $region121: #{patch_discriminator_forward.9} parent=116 // loop_body
                %v1183 = vld [vmem:[%s1181] sm:$0xff]
                %1184 = vst [vmem:[%s1182] sm:$0xff] %v1183
                %v1185 = vld [vmem:[%s1181 + $0x8] sm:$0xff]
                %1186 = vst [vmem:[%s1182 + $0x8] sm:$0xff] %v1185
                %v1187 = vld [vmem:[%s1181 + $0x10] sm:$0xff]
                %1188 = vst [vmem:[%s1182 + $0x20] sm:$0xff] %v1187
                %v1189 = vld [vmem:[%s1181 + $0x18] sm:$0xff]
                %1190 = vst [vmem:[%s1182 + $0x28] sm:$0xff] %v1189
              $region122: #{patch_discriminator_forward.9} parent=116 // loop_footer
                %s1180 = sadd.s32 1, %s1176
              $region123: #{patch_discriminator_forward.9} parent=116 // loop_footer_branch
                %1175 = sbr.rel target = $region119
              $region124: #{patch_discriminator_forward.9} parent=116 // loop_exit
                _
            $region117: #{patch_discriminator_forward.9} parent=112 // pred_fallthru
              _
            // Predicated region
            $region125: #{patch_discriminator_forward.9} parent=112 // pred_check
              _
            $region126: #{patch_discriminator_forward.9} parent=112 // pred_check_branch
              %1192 = sbr.rel target = $region128
            $region127: #{patch_discriminator_forward.9} parent=112 // pred_region
              _
            $region128: #{patch_discriminator_forward.9} parent=112 // pred_fallthru
              _
          $region113: #{patch_discriminator_forward.9} parent=108 // pred_fallthru
            _
          %1193 = vnop
        $region109: #{patch_discriminator_forward.9} parent=88 // pred_fallthru
          _
      $region89: #{patch_discriminator_forward.9} parent=5 // pred_fallthru
        _
      %p1194 = scmp.le.s32.totalorder 2, %s10
      // Predicated region
      $region129: #{patch_discriminator_forward.9} parent=5 // pred_check
        %p1195 = pneg %p1194
      $region130: #{patch_discriminator_forward.9} parent=5 // pred_check_branch
        %1197 = sbr.rel (%p1195) target = $region132
      $region131: #{patch_discriminator_forward.9} parent=5 // pred_region
        %s1198 = ssub.s32 %s10, 2
        // Predicated region
        $region133: #{patch_discriminator_forward.9} parent=131 // pred_check
          %p1199 = pneg %p168
        $region134: #{patch_discriminator_forward.9} parent=131 // pred_check_branch
          %1201 = sbr.rel (%p1199) target = $region136
        $region135: #{patch_discriminator_forward.9} parent=131 // pred_region
          %s1202 = sand.u32 %s153, 1
          %s1203 = sand.u32 %s153, 1
          %s1204 = smul.addr %s1203, 32
          %s1205 = scalar_lea.vmem [#allocation5], %s1204
        $region136: #{patch_discriminator_forward.9} parent=131 // pred_fallthru
          _
      $region132: #{patch_discriminator_forward.9} parent=5 // pred_fallthru
        _
    $region6: #{patch_discriminator_forward.9} parent=1 // loop_footer
      %s14 = sadd.s32 1, %s10
    $region7: #{patch_discriminator_forward.9} parent=1 // loop_footer_branch
      %9 = sbr.rel target = $region3
    $region8: #{patch_discriminator_forward.9} parent=1 // loop_exit
      _

</llo_original>
